<compile_context>
chip_gen: v7x
topology: tpu7x:2x2x1
jax: 0.10.0
libtpu: 0.0.40
codegen_flags: <defaults>
</compile_context>

<pallas_src>
import functools

import numpy as np
import jax
import jax.numpy as jnp
from jax.experimental import pallas as pl
from jax.experimental.pallas import tpu as pltpu

# torch concat order is (x, branch4, branch3, branch2, branch1) == pool sizes 8,16,32,64.
POOL_SIZES = (8, 16, 32, 64)
NB = len(POOL_SIZES)


# ---------------------------------------------------------------------------
# Host-side construction of the separable pooling / bilinear-upsample matrices
# ---------------------------------------------------------------------------
def _avg_pool_matrix(size_in, k):
    """(size_in//k, size_in) matrix averaging non-overlapping k-blocks (AvgPool2d(k, k))."""
    p = size_in // k
    m = np.zeros((p, size_in), dtype=np.float32)
    for i in range(p):
        m[i, i * k:(i + 1) * k] = 1.0 / k
    return m


def _bilinear_up_matrix(size_out, size_in):
    """(size_out, size_in) 1-D linear interpolation matrix, align_corners=False."""
    m = np.zeros((size_out, size_in), dtype=np.float32)
    scale = size_in / size_out
    for o in range(size_out):
        src = max((o + 0.5) * scale - 0.5, 0.0)
        i0 = min(int(np.floor(src)), size_in - 1)
        i1 = min(i0 + 1, size_in - 1)
        frac = src - i0
        m[o, i0] += 1.0 - frac
        m[o, i1] += frac
    return m


def _pooled_layout(H, W):
    """Per-branch pooled grid sizes, their offsets along the fused pooled axis, padded PP."""
    pool_hw = [(H // k, W // k) for k in POOL_SIZES]
    pp_sizes = [ph * pw for ph, pw in pool_hw]
    offs = np.concatenate([[0], np.cumsum(pp_sizes)]).astype(int)
    total_pp = int(offs[-1])
    PP = max(128, ((total_pp + 127) // 128) * 128)   # pad once to a lane multiple
    return pool_hw, offs, PP


# ---------------------------------------------------------------------------
# Pallas kernel: bb batch elements per grid step, three fused 2-D matmuls
# ---------------------------------------------------------------------------
def ssp_kernel(x_ref, k_ref, u_ref, w_ref, b_ref, m_ref, o_ref, *, n_chan, n_batch):
    # x_ref: (bb*C, HW)    f32   bb batch elements, channels stacked along rows
    # k_ref: (HW, PP)      bf16  all-branch avg-pool matrix (VMEM resident)
    # u_ref: (PP, HW)      bf16  all-branch bilinear upsample matrix (VMEM resident)
    # w_ref: (bb*C, bb*C)  bf16  blockdiag(I_bb (x) stacked 1x1 conv weights)
    # b_ref: (bb*C, 1)     f32   stacked conv biases, tiled over bb
    # m_ref: (bb*C, PP)    f32   1.0 where a pooled column belongs to the row's branch
    # o_ref: (bb*2C, HW)   f32   per element: [x (C rows), br8, br16, br32, br64]
    C = n_chan

    # Identity part of the concat: ref-slice -> ref-slice copies (aligned 8-sublane
    # moves; no (bb*C, HW) f32 temporary kept live across the matmuls).
    for e in range(n_batch):
        o_ref[e * 2 * C:e * 2 * C + C, :] = x_ref[e * C:(e + 1) * C, :]

    # (1) One lane-dense pooling matmul covering all 4 branches and bb elements.
    pooled = jnp.dot(x_ref[...].astype(jnp.bfloat16), k_ref[...],
                     preferred_element_type=jnp.float32)           # (bb*C, PP)

    # (2) All-branch 1x1 conv (block-diagonal over batch) + bias + ReLU, f32 VPU
    #     work (v5e has no bf16 VALU; this is filler under MXU slack).
    y = jnp.dot(w_ref[...], pooled.astype(jnp.bfloat16),
                preferred_element_type=jnp.float32)                # (bb*C, PP)
    y = jnp.maximum(y + b_ref[...], 0.0)
    # Zero pooled columns that do not belong to this row-block's branch so the fused
    # upsample cannot mix branches (also kills relu(bias) on the padded columns).
    y = y * m_ref[...]

    # (3) One consolidated bilinear-upsample matmul for all branches.
    up = jnp.dot(y.astype(jnp.bfloat16), u_ref[...],
                 preferred_element_type=jnp.float32)               # (bb*C, HW)

    # (4) Branch outputs written directly into their output slices (no concat temp).
    for e in range(n_batch):
        o_ref[e * 2 * C + C:(e + 1) * 2 * C, :] = up[e * C:(e + 1) * C, :]


# ---------------------------------------------------------------------------
# Batch-fold selection (review: fill the MXU M dimension)
# ---------------------------------------------------------------------------
def _pick_batch_block(B, C, HW, *, target_m=256, block_budget=32 << 20):
    """Fold bb batch elements into the matmul M dim (K/U/W are batch invariant).

    * Aim for bb*C >= target_m (256 rows -> one full MXU tile on v6e/v7x, two
      128-tiles on v5e).  Filling M is the biggest compute lever here.
    * Keep >= 2 grid steps only when each step still reaches target_m so both
      v7x TensorCores get a full tile of rows; otherwise fold the whole batch
      into a single step (best for single-TC v5e/v6e and small B).
    * Respect VMEM: double-buffered x/out blocks plus the (bb*C, HW) upsample
      temporary must stay inside block_budget.
    """
    per_bb = (24 + 4) * C * HW              # 2*(x+out) block bytes + up temp, per unit of bb
    max_bb = max(1, block_budget // per_bb)
    cands = [d for d in range(1, B + 1) if B % d == 0 and d <= max_bb] or [1]
    two_step = [d for d in cands if d * C >= target_m and B // d >= 2]
    if two_step:
        return min(two_step)                # most grid steps while M stays >= target_m
    return max(cands)                       # fold everything (grid often == 1)


# ---------------------------------------------------------------------------
# Cached static operators and cached pallas_call builder
# ---------------------------------------------------------------------------
@functools.lru_cache(maxsize=None)
def _static_operators(C, H, W, bb):
    """Fused pooling / upsample / mask operators, cached per shape (no per-call rebuild)."""
    HW = H * W
    C4 = C // 4
    pool_hw, offs, PP = _pooled_layout(H, W)

    K_cat = np.zeros((HW, PP), np.float32)          # x_rows @ K_cat -> all pooled branches
    U_cat = np.zeros((PP, HW), np.float32)          # y @ U_cat -> all upsampled branches
    mask = np.zeros((NB * C4, PP), np.float32)
    for i, (k, (ph, pw)) in enumerate(zip(POOL_SIZES, pool_hw)):
        lo, hi = int(offs[i]), int(offs[i + 1])
        Ph, Pw = _avg_pool_matrix(H, k), _avg_pool_matrix(W, k)
        Uh, Uw = _bilinear_up_matrix(H, ph), _bilinear_up_matrix(W, pw)
        K_cat[:, lo:hi] = np.kron(Ph, Pw).T
        U_cat[lo:hi, :] = np.kron(Uh, Uw).T
        mask[i * C4:(i + 1) * C4, lo:hi] = 1.0

    # avg-pool (1/k^2) and the 64x64 bilinear weights are powers of two -> exact in bf16.
    k_bf = jnp.asarray(K_cat, dtype=jnp.bfloat16)
    u_bf = jnp.asarray(U_cat, dtype=jnp.bfloat16)
    m_t = jnp.asarray(np.tile(mask, (bb, 1)), dtype=jnp.float32)
    return k_bf, u_bf, m_t


@functools.lru_cache(maxsize=None)
def _build_pallas_fn(B, C, H, W, bb):
    HW = H * W
    C4 = C // 4
    _, _, PP = _pooled_layout(H, W)
    rows_in, rows_out = bb * C, bb * 2 * C
    grid = (B // bb,)

    # Resident dense kron operators: ~2 MiB at 64x64, ~25 MiB at 128x128, > VMEM
    # by ~160x160 on v7x (64 MiB physical).  Guard so growth is loud, not silent.
    # TODO(synk): switch to the separable two-pass pool/upsample form for H,W >= 128.
    const_bytes = 2 * HW * PP * 2 + rows_in * rows_in * 2 + rows_in * 128 * 4 + rows_in * PP * 4
    assert const_bytes < (32 << 20), (
        "dense kron pooling/upsample operators too large for VMEM; "
        "use the separable two-pass form for this feature-map size")

    x_blk = rows_in * HW * 4
    o_blk = rows_out * HW * 4
    tmp_bytes = rows_in * HW * 4 + 4 * rows_in * PP * 4
    vmem_limit = int(min(48 << 20,
                         max(16 << 20,
                             2 * (x_blk + o_blk) + const_bytes + tmp_bytes + (4 << 20))))

    kernel = functools.partial(ssp_kernel, n_chan=C, n_batch=bb)
    x_spec = pl.BlockSpec((rows_in, HW), lambda b: (b, 0))
    out_spec = pl.BlockSpec((rows_out, HW), lambda b: (b, 0))
    # Grid-invariant operands (K, U, W, b, mask): one VMEM-resident copy, no
    # double buffering, no per-step DMA.  This is the only (required) path.
    const_specs = [pl.BlockSpec(memory_space=pltpu.MemorySpace.VMEM)] * 5

    call = pl.pallas_call(
        kernel,
        out_shape=jax.ShapeDtypeStruct((B * 2 * C, HW), jnp.float32),
        grid_spec=pltpu.PrefetchScalarGridSpec(
            num_scalar_prefetch=0,
            grid=grid,
            in_specs=[x_spec] + const_specs,
            out_specs=out_spec,
        ),
        compiler_params=pltpu.CompilerParams(
            dimension_semantics=("parallel",),
            vmem_limit_bytes=vmem_limit,
        ),
    )

    def fn(x, w_all, b_all, k_bf, u_bf, m_t):
        x_rows = x.reshape(B * C, HW).astype(jnp.float32)
        w_stack = w_all.reshape(NB * C4, C).astype(jnp.float32)   # rows: br8, br16, br32, br64
        w_bd = jnp.kron(jnp.eye(bb, dtype=jnp.float32), w_stack).astype(jnp.bfloat16)
        b_bd = jnp.tile(b_all.reshape(NB * C4, 1).astype(jnp.float32), (bb, 1))
        out_rows = call(x_rows, k_bf, u_bf, w_bd, b_bd, m_t)
        return out_rows.reshape(B, 2 * C, H, W)

    return jax.jit(fn)


# ---------------------------------------------------------------------------
# Wrapper (jit-compatible, no device sync, no fallback)
# ---------------------------------------------------------------------------
def ssp_forward(x, w_all, b_all, *, batch_block=None):
    """x: (B, C, H, W) f32, w_all: (4, C//4, C), b_all: (4, C//4, 1) -> (B, 2C, H, W)."""
    B, C, H, W = x.shape
    assert C % 4 == 0, "in_planes must be divisible by 4 (module spec)"
    # C (and hence 2C) multiples of 8 keep every per-element output row offset
    # 8-sublane aligned -> full-speed unmasked f32 stores.
    assert C % 8 == 0, "C must be a multiple of 8 for aligned output stores"
    assert all(H % k == 0 and W % k == 0 for k in POOL_SIZES), \
        "H, W must be multiples of 64 (AvgPool2d(64, stride=64))"

    bb = _pick_batch_block(B, C, H * W) if batch_block is None else batch_block
    assert B % bb == 0
    k_bf, u_bf, m_t = _static_operators(C, H, W, bb)
    fn = _build_pallas_fn(B, C, H, W, bb)
    return fn(x, w_all, b_all, k_bf, u_bf, m_t)


# ---------------------------------------------------------------------------
# Pure-JAX f32 reference (PyTorch module semantics)
# ---------------------------------------------------------------------------
def ssp_reference(x, w_all, b_all):
    B, C, H, W = x.shape
    outs = [x]
    for i, k in enumerate(POOL_SIZES):
        ph, pw = H // k, W // k
        pooled = x.reshape(B, C, ph, k, pw, k).mean(axis=(3, 5))
        y = jnp.einsum('oc,bcpq->bopq', w_all[i], pooled) + b_all[i][None, :, :, None]
        y = jnp.maximum(y, 0.0)
        Uh = jnp.asarray(_bilinear_up_matrix(H, ph))
        Uw = jnp.asarray(_bilinear_up_matrix(W, pw))
        up = jnp.einsum('hp,bopq,wq->bohw', Uh, y, Uw)
        outs.append(up)
    return jnp.concatenate(outs, axis=1)


if __name__ == "__main__":
    # Smallest valid spatial size: AvgPool2d(64) requires H, W >= 64.
    B, C, H, W = 4, 8, 64, 64
    C4 = C // 4

    key = jax.random.PRNGKey(0)
    kx, kw, kb = jax.random.split(key, 3)
    x = jax.random.normal(kx, (B, C, H, W), dtype=jnp.float32)
    # Synthetic 1x1-conv parameters, branch order = [pool8, pool16, pool32, pool64]
    w_all = jax.random.normal(kw, (NB, C4, C), dtype=jnp.float32) * 0.1
    b_all = jax.random.normal(kb, (NB, C4, 1), dtype=jnp.float32) * 0.1

    out = jax.block_until_ready(ssp_forward(x, w_all, b_all))
    assert out.shape == (B, 2 * C, H, W)

    ref = ssp_reference(x, w_all, b_all)
    # bf16 MXU operands with f32 accumulation vs a pure-f32 reference.
    np.testing.assert_allclose(np.asarray(out), np.asarray(ref), rtol=2e-2, atol=5e-3)

    print("KERNEL_OK")
</pallas_src>

<mosaic_0001>
module attributes {stable_mosaic.version = 11 : i64} {
  func.func @ssp_kernel(%arg0: i32, %arg1: memref<32x4096xf32, #tpu.memory_space<vmem>>, %arg2: memref<4096x128xbf16, #tpu.memory_space<vmem>>, %arg3: memref<128x4096xbf16, #tpu.memory_space<vmem>>, %arg4: memref<32x32xbf16, #tpu.memory_space<vmem>>, %arg5: memref<32x1xf32, #tpu.memory_space<vmem>>, %arg6: memref<32x128xf32, #tpu.memory_space<vmem>>, %arg7: memref<64x4096xf32, #tpu.memory_space<vmem>>) attributes {dimension_semantics = [#tpu.dimension_semantics<parallel>], iteration_bounds = array<i64: 1>, scalar_prefetch = 0 : i64, scratch_operands = 0 : i64, tpu.core_type = #tpu.core_type<tc>, window_params = [{transform_indices = @transform_0, window_bounds = array<i64: 32, 4096>}, {pipeline_mode = #tpu.pipeline_mode<synchronous>, transform_indices = @transform_1, window_bounds = array<i64: 4096, 128>}, {pipeline_mode = #tpu.pipeline_mode<synchronous>, transform_indices = @transform_2, window_bounds = array<i64: 128, 4096>}, {pipeline_mode = #tpu.pipeline_mode<synchronous>, transform_indices = @transform_3, window_bounds = array<i64: 32, 32>}, {pipeline_mode = #tpu.pipeline_mode<synchronous>, transform_indices = @transform_4, window_bounds = array<i64: 32, 1>}, {pipeline_mode = #tpu.pipeline_mode<synchronous>, transform_indices = @transform_5, window_bounds = array<i64: 32, 128>}, {transform_indices = @transform_6, window_bounds = array<i64: 64, 4096>}]} {
    %c0 = arith.constant 0 : index
    %c0_0 = arith.constant 0 : index
    %0 = vector.load %arg1[%c0, %c0_0] : memref<32x4096xf32, #tpu.memory_space<vmem>>, vector<8x4096xf32>
    %c0_1 = arith.constant 0 : index
    %c0_2 = arith.constant 0 : index
    %1 = vector.load %arg7[%c0_1, %c0_2] : memref<64x4096xf32, #tpu.memory_space<vmem>>, vector<8x4096xf32>
    tpu.vector_store %arg7[%c0_1, %c0_2], %0 {strides = array<i32>} : memref<64x4096xf32, #tpu.memory_space<vmem>>, vector<8x4096xf32>,
    %c8 = arith.constant 8 : index
    %c0_3 = arith.constant 0 : index
    %2 = vector.load %arg1[%c8, %c0_3] : memref<32x4096xf32, #tpu.memory_space<vmem>>, vector<8x4096xf32>
    %c16 = arith.constant 16 : index
    %c0_4 = arith.constant 0 : index
    %3 = vector.load %arg7[%c16, %c0_4] : memref<64x4096xf32, #tpu.memory_space<vmem>>, vector<8x4096xf32>
    tpu.vector_store %arg7[%c16, %c0_4], %2 {strides = array<i32>} : memref<64x4096xf32, #tpu.memory_space<vmem>>, vector<8x4096xf32>,
    %c16_5 = arith.constant 16 : index
    %c0_6 = arith.constant 0 : index
    %4 = vector.load %arg1[%c16_5, %c0_6] : memref<32x4096xf32, #tpu.memory_space<vmem>>, vector<8x4096xf32>
    %c32 = arith.constant 32 : index
    %c0_7 = arith.constant 0 : index
    %5 = vector.load %arg7[%c32, %c0_7] : memref<64x4096xf32, #tpu.memory_space<vmem>>, vector<8x4096xf32>
    tpu.vector_store %arg7[%c32, %c0_7], %4 {strides = array<i32>} : memref<64x4096xf32, #tpu.memory_space<vmem>>, vector<8x4096xf32>,
    %c24 = arith.constant 24 : index
    %c0_8 = arith.constant 0 : index
    %6 = vector.load %arg1[%c24, %c0_8] : memref<32x4096xf32, #tpu.memory_space<vmem>>, vector<8x4096xf32>
    %c48 = arith.constant 48 : index
    %c0_9 = arith.constant 0 : index
    %7 = vector.load %arg7[%c48, %c0_9] : memref<64x4096xf32, #tpu.memory_space<vmem>>, vector<8x4096xf32>
    tpu.vector_store %arg7[%c48, %c0_9], %6 {strides = array<i32>} : memref<64x4096xf32, #tpu.memory_space<vmem>>, vector<8x4096xf32>,
    %c0_10 = arith.constant 0 : index
    %c0_11 = arith.constant 0 : index
    %8 = vector.load %arg1[%c0_10, %c0_11] : memref<32x4096xf32, #tpu.memory_space<vmem>>, vector<32x4096xf32>
    %9 = arith.truncf %8 : vector<32x4096xf32> to vector<32x4096xbf16>
    %c0_12 = arith.constant 0 : index
    %c0_13 = arith.constant 0 : index
    %10 = vector.load %arg2[%c0_12, %c0_13] : memref<4096x128xbf16, #tpu.memory_space<vmem>>, vector<4096x128xbf16>
    %cst = arith.constant dense<0.000000e+00> : vector<32x128xf32>
    %11 = tpu.matmul %9, %10, %cst {dimension_numbers = #tpu.dot_dimension_numbers<[1], [0], [0], [1], [0, 0, 1, 1], [], []>} : vector<32x4096xbf16>, vector<4096x128xbf16>, vector<32x128xf32> -> vector<32x128xf32>
    %c0_14 = arith.constant 0 : index
    %c0_15 = arith.constant 0 : index
    %12 = vector.load %arg4[%c0_14, %c0_15] : memref<32x32xbf16, #tpu.memory_space<vmem>>, vector<32x32xbf16>
    %13 = arith.truncf %11 : vector<32x128xf32> to vector<32x128xbf16>
    %cst_16 = arith.constant dense<0.000000e+00> : vector<32x128xf32>
    %14 = tpu.matmul %12, %13, %cst_16 {dimension_numbers = #tpu.dot_dimension_numbers<[1], [0], [0], [1], [0, 0, 1, 1], [], []>} : vector<32x32xbf16>, vector<32x128xbf16>, vector<32x128xf32> -> vector<32x128xf32>
    %c0_17 = arith.constant 0 : index
    %c0_18 = arith.constant 0 : index
    %15 = vector.load %arg5[%c0_17, %c0_18] : memref<32x1xf32, #tpu.memory_space<vmem>>, vector<32x1xf32>
    %16 = vector.broadcast %15 : vector<32x1xf32> to vector<32x128xf32>
    %17 = arith.addf %14, %16 : vector<32x128xf32>
    %cst_19 = arith.constant 0.000000e+00 : f32
    %18 = vector.broadcast %cst_19 : f32 to vector<32x128xf32>
    %19 = arith.maximumf %17, %18 : vector<32x128xf32>
    %c0_20 = arith.constant 0 : index
    %c0_21 = arith.constant 0 : index
    %20 = vector.load %arg6[%c0_20, %c0_21] : memref<32x128xf32, #tpu.memory_space<vmem>>, vector<32x128xf32>
    %21 = arith.mulf %19, %20 : vector<32x128xf32>
    %22 = arith.truncf %21 : vector<32x128xf32> to vector<32x128xbf16>
    %c0_22 = arith.constant 0 : index
    %c0_23 = arith.constant 0 : index
    %23 = vector.load %arg3[%c0_22, %c0_23] : memref<128x4096xbf16, #tpu.memory_space<vmem>>, vector<128x4096xbf16>
    %cst_24 = arith.constant dense<0.000000e+00> : vector<32x4096xf32>
    %24 = tpu.matmul %22, %23, %cst_24 {dimension_numbers = #tpu.dot_dimension_numbers<[1], [0], [0], [1], [0, 0, 1, 1], [], []>} : vector<32x128xbf16>, vector<128x4096xbf16>, vector<32x4096xf32> -> vector<32x4096xf32>
    %25 = vector.extract_strided_slice %24 {offsets = [0, 0], sizes = [8, 4096], strides = [1, 1]} : vector<32x4096xf32> to vector<8x4096xf32>
    %c8_25 = arith.constant 8 : index
    %c0_26 = arith.constant 0 : index
    %26 = vector.load %arg7[%c8_25, %c0_26] : memref<64x4096xf32, #tpu.memory_space<vmem>>, vector<8x4096xf32>
    tpu.vector_store %arg7[%c8_25, %c0_26], %25 {strides = array<i32>} : memref<64x4096xf32, #tpu.memory_space<vmem>>, vector<8x4096xf32>,
    %27 = vector.extract_strided_slice %24 {offsets = [8, 0], sizes = [8, 4096], strides = [1, 1]} : vector<32x4096xf32> to vector<8x4096xf32>
    %c24_27 = arith.constant 24 : index
    %c0_28 = arith.constant 0 : index
    %28 = vector.load %arg7[%c24_27, %c0_28] : memref<64x4096xf32, #tpu.memory_space<vmem>>, vector<8x4096xf32>
    tpu.vector_store %arg7[%c24_27, %c0_28], %27 {strides = array<i32>} : memref<64x4096xf32, #tpu.memory_space<vmem>>, vector<8x4096xf32>,
    %29 = vector.extract_strided_slice %24 {offsets = [16, 0], sizes = [8, 4096], strides = [1, 1]} : vector<32x4096xf32> to vector<8x4096xf32>
    %c40 = arith.constant 40 : index
    %c0_29 = arith.constant 0 : index
    %30 = vector.load %arg7[%c40, %c0_29] : memref<64x4096xf32, #tpu.memory_space<vmem>>, vector<8x4096xf32>
    tpu.vector_store %arg7[%c40, %c0_29], %29 {strides = array<i32>} : memref<64x4096xf32, #tpu.memory_space<vmem>>, vector<8x4096xf32>,
    %31 = vector.extract_strided_slice %24 {offsets = [24, 0], sizes = [8, 4096], strides = [1, 1]} : vector<32x4096xf32> to vector<8x4096xf32>
    %c56 = arith.constant 56 : index
    %c0_30 = arith.constant 0 : index
    %32 = vector.load %arg7[%c56, %c0_30] : memref<64x4096xf32, #tpu.memory_space<vmem>>, vector<8x4096xf32>
    tpu.vector_store %arg7[%c56, %c0_30], %31 {strides = array<i32>} : memref<64x4096xf32, #tpu.memory_space<vmem>>, vector<8x4096xf32>,
    return
  }
  func.func @transform_0(%arg0: i32) -> (i32, i32) {
    %c0_i32 = arith.constant 0 : i32
    %c0_i32_0 = arith.constant 0 : i32
    return %arg0, %c0_i32 : i32, i32
  }
  func.func @transform_1(%arg0: i32) -> (i32, i32) {
    %c0_i32 = arith.constant 0 : i32
    %c0_i32_0 = arith.constant 0 : i32
    %c0_i32_1 = arith.constant 0 : i32
    return %c0_i32, %c0_i32_0 : i32, i32
  }
  func.func @transform_2(%arg0: i32) -> (i32, i32) {
    %c0_i32 = arith.constant 0 : i32
    %c0_i32_0 = arith.constant 0 : i32
    %c0_i32_1 = arith.constant 0 : i32
    return %c0_i32, %c0_i32_0 : i32, i32
  }
  func.func @transform_3(%arg0: i32) -> (i32, i32) {
    %c0_i32 = arith.constant 0 : i32
    %c0_i32_0 = arith.constant 0 : i32
    %c0_i32_1 = arith.constant 0 : i32
    return %c0_i32, %c0_i32_0 : i32, i32
  }
  func.func @transform_4(%arg0: i32) -> (i32, i32) {
    %c0_i32 = arith.constant 0 : i32
    %c0_i32_0 = arith.constant 0 : i32
    %c0_i32_1 = arith.constant 0 : i32
    return %c0_i32, %c0_i32_0 : i32, i32
  }
  func.func @transform_5(%arg0: i32) -> (i32, i32) {
    %c0_i32 = arith.constant 0 : i32
    %c0_i32_0 = arith.constant 0 : i32
    %c0_i32_1 = arith.constant 0 : i32
    return %c0_i32, %c0_i32_0 : i32, i32
  }
  func.func @transform_6(%arg0: i32) -> (i32, i32) {
    %c0_i32 = arith.constant 0 : i32
    %c0_i32_0 = arith.constant 0 : i32
    return %arg0, %c0_i32 : i32, i32
  }
}

</mosaic_0001>

<llo_original>
// kernel: fn.1
$region0: #{fn.1}
  #allocation0 [shape = 'u32[]', space=smem, size = 0x4, offset = 0x4, fixed_abs, tag = 'smem constant byte address 0x4 - core index']
  #allocation1 [shape = 'u32[144,128]{1,0:T(1,128)}', space=vmem, size = 0x12000, scoped, tag = 'internal scratch']
  %s0 = inlined_call_operand.vmem [shape: f32[32,4096], index: 0, kind: input, shape index: {}]
  %s1 = inlined_call_operand.vmem [shape: bf16[4096,128], index: 1, kind: input, shape index: {}]
  %s2 = inlined_call_operand.hbm [shape: bf16[128,4096], index: 2, kind: input, shape index: {}]
  %s3 = inlined_call_operand.vmem [shape: bf16[32,32], index: 3, kind: input, shape index: {}]
  %s4 = inlined_call_operand.vmem [shape: f32[32,1], index: 4, kind: input, shape index: {}]
  %s5 = inlined_call_operand.hbm [shape: f32[32,128], index: 5, kind: input, shape index: {}]
  %s6 = inlined_call_operand.vmem [shape: f32[64,4096], index: 6, kind: output, shape index: {}]
  %s7 = sld [smem:[#allocation0]]
  $region42: #{fn.1} parent=0
    _
  %s9 = ssub.s32 1, %s7
  %s10 = scalar_select 0, %s9, %s7
  $region1: #{fn.1} parent=0
    #allocation2 [shape = 'u8[1048576]{0}', space=vmem, size = 0x100000, scoped, tag = 'input window, operand 2, single buffered']
    #allocation3 [shape = 's32[1]{0}', space=sflag, size = 0x4, scoped, tag = 'scoped memory for fn.1']
    #allocation4 [shape = 'u8[16384]{0}', space=vmem, size = 0x4000, scoped, tag = 'input window, operand 5, single buffered']
    #allocation5 [shape = 's32[1]{0}', space=sflag, size = 0x4, scoped, tag = 'scoped memory for fn.1']
    %11 = vsyncpa [#allocation3], 0
    %12 = vsyncpa [#allocation5], 0
    // Predicated region
    $region2: #{fn.1} parent=1 // pred_check
      _
    $region3: #{fn.1} parent=1 // pred_check_branch
      %14 = sbr.rel (0) target = $region5
    $region4: #{fn.1} parent=1 // pred_region
      _
    $region5: #{fn.1} parent=1 // pred_fallthru
      _
    // Predicated region
    $region6: #{fn.1} parent=1 // pred_check
      _
    $region7: #{fn.1} parent=1 // pred_check_branch
      %16 = sbr.rel (0) target = $region9
    $region8: #{fn.1} parent=1 // pred_region
      _
    $region9: #{fn.1} parent=1 // pred_fallthru
      _
    // Predicated region
    $region10: #{fn.1} parent=1 // pred_check
      _
    $region11: #{fn.1} parent=1 // pred_check_branch
      %18 = sbr.rel (0) target = $region13
    $region12: #{fn.1} parent=1 // pred_region
      %s20 = ssub.s32 32768, 32768
      %21 = vsyncadd [#allocation3], %s20
      %s22 = sshll.u32 [#allocation2], 4
      %s23 = int_to_ptr.vmem [resolvable:$true] %s22
      %28 = dma.hbm_to_vmem [thread:$0]  %s2, 32768, %s23, [#allocation3], 2048, 2048, 128
    $region13: #{fn.1} parent=1 // pred_fallthru
      _
    // Predicated region
    $region14: #{fn.1} parent=1 // pred_check
      _
    $region15: #{fn.1} parent=1 // pred_check_branch
      %30 = sbr.rel (0) target = $region17
    $region16: #{fn.1} parent=1 // pred_region
      _
    $region17: #{fn.1} parent=1 // pred_fallthru
      _
    // Predicated region
    $region18: #{fn.1} parent=1 // pred_check
      _
    $region19: #{fn.1} parent=1 // pred_check_branch
      %32 = sbr.rel (0) target = $region21
    $region20: #{fn.1} parent=1 // pred_region
      _
    $region21: #{fn.1} parent=1 // pred_fallthru
      _
    // Predicated region
    $region22: #{fn.1} parent=1 // pred_check
      _
    $region23: #{fn.1} parent=1 // pred_check_branch
      %34 = sbr.rel (0) target = $region25
    $region24: #{fn.1} parent=1 // pred_region
      %s36 = ssub.s32 512, 512
      %37 = vsyncadd [#allocation5], %s36
      %s38 = sshll.u32 [#allocation4], 4
      %s39 = int_to_ptr.vmem [resolvable:$true] %s38
      %44 = dma.hbm_to_vmem [thread:$0]  %s5, 512, %s39, [#allocation5], 128, 128, 8
    $region25: #{fn.1} parent=1 // pred_fallthru
      _
    // Predicated region
    $region26: #{fn.1} parent=1 // pred_check
      _
    $region27: #{fn.1} parent=1 // pred_check_branch
      %46 = sbr.rel (0) target = $region29
    $region28: #{fn.1} parent=1 // pred_region
      %47 = dma.done [#allocation3], 32768
    $region29: #{fn.1} parent=1 // pred_fallthru
      _
    // Predicated region
    $region30: #{fn.1} parent=1 // pred_check
      _
    $region31: #{fn.1} parent=1 // pred_check_branch
      %49 = sbr.rel (0) target = $region33
    $region32: #{fn.1} parent=1 // pred_region
      %50 = dma.done [#allocation5], 512
    $region33: #{fn.1} parent=1 // pred_fallthru
      _
    %v52 = vld [vmem:[%s0] sm:$0xff]
    %v53 = vld [vmem:[%s0 + $0x8] sm:$0xff]
    %v54 = vld [vmem:[%s0 + $0x10] sm:$0xff]
    %v55 = vld [vmem:[%s0 + $0x18] sm:$0xff]
    %v56 = vld [vmem:[%s0 + $0x20] sm:$0xff]
    %v57 = vld [vmem:[%s0 + $0x28] sm:$0xff]
    %v58 = vld [vmem:[%s0 + $0x30] sm:$0xff]
    %v59 = vld [vmem:[%s0 + $0x38] sm:$0xff]
    %v60 = vld [vmem:[%s0 + $0x40] sm:$0xff]
    %v61 = vld [vmem:[%s0 + $0x48] sm:$0xff]
    %v62 = vld [vmem:[%s0 + $0x50] sm:$0xff]
    %v63 = vld [vmem:[%s0 + $0x58] sm:$0xff]
    %v64 = vld [vmem:[%s0 + $0x60] sm:$0xff]
    %v65 = vld [vmem:[%s0 + $0x68] sm:$0xff]
    %v66 = vld [vmem:[%s0 + $0x70] sm:$0xff]
    %v67 = vld [vmem:[%s0 + $0x78] sm:$0xff]
    %v68 = vld [vmem:[%s0 + $0x80] sm:$0xff]
    %v69 = vld [vmem:[%s0 + $0x88] sm:$0xff]
    %v70 = vld [vmem:[%s0 + $0x90] sm:$0xff]
    %v71 = vld [vmem:[%s0 + $0x98] sm:$0xff]
    %v72 = vld [vmem:[%s0 + $0xa0] sm:$0xff]
    %v73 = vld [vmem:[%s0 + $0xa8] sm:$0xff]
    %v74 = vld [vmem:[%s0 + $0xb0] sm:$0xff]
    %v75 = vld [vmem:[%s0 + $0xb8] sm:$0xff]
    %v76 = vld [vmem:[%s0 + $0xc0] sm:$0xff]
    %v77 = vld [vmem:[%s0 + $0xc8] sm:$0xff]
    %v78 = vld [vmem:[%s0 + $0xd0] sm:$0xff]
    %v79 = vld [vmem:[%s0 + $0xd8] sm:$0xff]
    %v80 = vld [vmem:[%s0 + $0xe0] sm:$0xff]
    %v81 = vld [vmem:[%s0 + $0xe8] sm:$0xff]
    %v82 = vld [vmem:[%s0 + $0xf0] sm:$0xff]
    %v83 = vld [vmem:[%s0 + $0xf8] sm:$0xff]
    %84 = vst [vmem:[%s6] sm:$0xff] %v52
    %85 = vst [vmem:[%s6 + $0x8] sm:$0xff] %v53
    %86 = vst [vmem:[%s6 + $0x10] sm:$0xff] %v54
    %87 = vst [vmem:[%s6 + $0x18] sm:$0xff] %v55
    %88 = vst [vmem:[%s6 + $0x20] sm:$0xff] %v56
    %89 = vst [vmem:[%s6 + $0x28] sm:$0xff] %v57
    %90 = vst [vmem:[%s6 + $0x30] sm:$0xff] %v58
    %91 = vst [vmem:[%s6 + $0x38] sm:$0xff] %v59
    %92 = vst [vmem:[%s6 + $0x40] sm:$0xff] %v60
    %93 = vst [vmem:[%s6 + $0x48] sm:$0xff] %v61
    %94 = vst [vmem:[%s6 + $0x50] sm:$0xff] %v62
    %95 = vst [vmem:[%s6 + $0x58] sm:$0xff] %v63
    %96 = vst [vmem:[%s6 + $0x60] sm:$0xff] %v64
    %97 = vst [vmem:[%s6 + $0x68] sm:$0xff] %v65
    %98 = vst [vmem:[%s6 + $0x70] sm:$0xff] %v66
    %99 = vst [vmem:[%s6 + $0x78] sm:$0xff] %v67
    %100 = vst [vmem:[%s6 + $0x80] sm:$0xff] %v68
    %101 = vst [vmem:[%s6 + $0x88] sm:$0xff] %v69
    %102 = vst [vmem:[%s6 + $0x90] sm:$0xff] %v70
    %103 = vst [vmem:[%s6 + $0x98] sm:$0xff] %v71
    %104 = vst [vmem:[%s6 + $0xa0] sm:$0xff] %v72
    %105 = vst [vmem:[%s6 + $0xa8] sm:$0xff] %v73
    %106 = vst [vmem:[%s6 + $0xb0] sm:$0xff] %v74
    %107 = vst [vmem:[%s6 + $0xb8] sm:$0xff] %v75
    %108 = vst [vmem:[%s6 + $0xc0] sm:$0xff] %v76
    %109 = vst [vmem:[%s6 + $0xc8] sm:$0xff] %v77
    %110 = vst [vmem:[%s6 + $0xd0] sm:$0xff] %v78
    %111 = vst [vmem:[%s6 + $0xd8] sm:$0xff] %v79
    %112 = vst [vmem:[%s6 + $0xe0] sm:$0xff] %v80
    %113 = vst [vmem:[%s6 + $0xe8] sm:$0xff] %v81
    %114 = vst [vmem:[%s6 + $0xf0] sm:$0xff] %v82
    %115 = vst [vmem:[%s6 + $0xf8] sm:$0xff] %v83
    %v116 = vld [vmem:[%s0 + $0x100] sm:$0xff]
    %v117 = vld [vmem:[%s0 + $0x108] sm:$0xff]
    %v118 = vld [vmem:[%s0 + $0x110] sm:$0xff]
    %v119 = vld [vmem:[%s0 + $0x118] sm:$0xff]
    %v120 = vld [vmem:[%s0 + $0x120] sm:$0xff]
    %v121 = vld [vmem:[%s0 + $0x128] sm:$0xff]
    %v122 = vld [vmem:[%s0 + $0x130] sm:$0xff]
    %v123 = vld [vmem:[%s0 + $0x138] sm:$0xff]
    %v124 = vld [vmem:[%s0 + $0x140] sm:$0xff]
    %v125 = vld [vmem:[%s0 + $0x148] sm:$0xff]
    %v126 = vld [vmem:[%s0 + $0x150] sm:$0xff]
    %v127 = vld [vmem:[%s0 + $0x158] sm:$0xff]
    %v128 = vld [vmem:[%s0 + $0x160] sm:$0xff]
    %v129 = vld [vmem:[%s0 + $0x168] sm:$0xff]
    %v130 = vld [vmem:[%s0 + $0x170] sm:$0xff]
    %v131 = vld [vmem:[%s0 + $0x178] sm:$0xff]
    %v132 = vld [vmem:[%s0 + $0x180] sm:$0xff]
    %v133 = vld [vmem:[%s0 + $0x188] sm:$0xff]
    %v134 = vld [vmem:[%s0 + $0x190] sm:$0xff]
    %v135 = vld [vmem:[%s0 + $0x198] sm:$0xff]
    %v136 = vld [vmem:[%s0 + $0x1a0] sm:$0xff]
    %v137 = vld [vmem:[%s0 + $0x1a8] sm:$0xff]
    %v138 = vld [vmem:[%s0 + $0x1b0] sm:$0xff]
    %v139 = vld [vmem:[%s0 + $0x1b8] sm:$0xff]
    %v140 = vld [vmem:[%s0 + $0x1c0] sm:$0xff]
    %v141 = vld [vmem:[%s0 + $0x1c8] sm:$0xff]
    %v142 = vld [vmem:[%s0 + $0x1d0] sm:$0xff]
    %v143 = vld [vmem:[%s0 + $0x1d8] sm:$0xff]
    %v144 = vld [vmem:[%s0 + $0x1e0] sm:$0xff]
    %v145 = vld [vmem:[%s0 + $0x1e8] sm:$0xff]
    %v146 = vld [vmem:[%s0 + $0x1f0] sm:$0xff]
    %v147 = vld [vmem:[%s0 + $0x1f8] sm:$0xff]
    %148 = vst [vmem:[%s6 + $0x200] sm:$0xff] %v116
    %149 = vst [vmem:[%s6 + $0x208] sm:$0xff] %v117
    %150 = vst [vmem:[%s6 + $0x210] sm:$0xff] %v118
    %151 = vst [vmem:[%s6 + $0x218] sm:$0xff] %v119
    %152 = vst [vmem:[%s6 + $0x220] sm:$0xff] %v120
    %153 = vst [vmem:[%s6 + $0x228] sm:$0xff] %v121
    %154 = vst [vmem:[%s6 + $0x230] sm:$0xff] %v122
    %155 = vst [vmem:[%s6 + $0x238] sm:$0xff] %v123
    %156 = vst [vmem:[%s6 + $0x240] sm:$0xff] %v124
    %157 = vst [vmem:[%s6 + $0x248] sm:$0xff] %v125
    %158 = vst [vmem:[%s6 + $0x250] sm:$0xff] %v126
    %159 = vst [vmem:[%s6 + $0x258] sm:$0xff] %v127
    %160 = vst [vmem:[%s6 + $0x260] sm:$0xff] %v128
    %161 = vst [vmem:[%s6 + $0x268] sm:$0xff] %v129
    %162 = vst [vmem:[%s6 + $0x270] sm:$0xff] %v130
    %163 = vst [vmem:[%s6 + $0x278] sm:$0xff] %v131
    %164 = vst [vmem:[%s6 + $0x280] sm:$0xff] %v132
    %165 = vst [vmem:[%s6 + $0x288] sm:$0xff] %v133
    %166 = vst [vmem:[%s6 + $0x290] sm:$0xff] %v134
    %167 = vst [vmem:[%s6 + $0x298] sm:$0xff] %v135
    %168 = vst [vmem:[%s6 + $0x2a0] sm:$0xff] %v136
    %169 = vst [vmem:[%s6 + $0x2a8] sm:$0xff] %v137
    %170 = vst [vmem:[%s6 + $0x2b0] sm:$0xff] %v138
    %171 = vst [vmem:[%s6 + $0x2b8] sm:$0xff] %v139
    %172 = vst [vmem:[%s6 + $0x2c0] sm:$0xff] %v140
    %173 = vst [vmem:[%s6 + $0x2c8] sm:$0xff] %v141
    %174 = vst [vmem:[%s6 + $0x2d0] sm:$0xff] %v142
    %175 = vst [vmem:[%s6 + $0x2d8] sm:$0xff] %v143
    %176 = vst [vmem:[%s6 + $0x2e0] sm:$0xff] %v144
    %177 = vst [vmem:[%s6 + $0x2e8] sm:$0xff] %v145
    %178 = vst [vmem:[%s6 + $0x2f0] sm:$0xff] %v146
    %179 = vst [vmem:[%s6 + $0x2f8] sm:$0xff] %v147
    %v180 = vld [vmem:[%s0 + $0x200] sm:$0xff]
    %v181 = vld [vmem:[%s0 + $0x208] sm:$0xff]
    %v182 = vld [vmem:[%s0 + $0x210] sm:$0xff]
    %v183 = vld [vmem:[%s0 + $0x218] sm:$0xff]
    %v184 = vld [vmem:[%s0 + $0x220] sm:$0xff]
    %v185 = vld [vmem:[%s0 + $0x228] sm:$0xff]
    %v186 = vld [vmem:[%s0 + $0x230] sm:$0xff]
    %v187 = vld [vmem:[%s0 + $0x238] sm:$0xff]
    %v188 = vld [vmem:[%s0 + $0x240] sm:$0xff]
    %v189 = vld [vmem:[%s0 + $0x248] sm:$0xff]
    %v190 = vld [vmem:[%s0 + $0x250] sm:$0xff]
    %v191 = vld [vmem:[%s0 + $0x258] sm:$0xff]
    %v192 = vld [vmem:[%s0 + $0x260] sm:$0xff]
    %v193 = vld [vmem:[%s0 + $0x268] sm:$0xff]
    %v194 = vld [vmem:[%s0 + $0x270] sm:$0xff]
    %v195 = vld [vmem:[%s0 + $0x278] sm:$0xff]
    %v196 = vld [vmem:[%s0 + $0x280] sm:$0xff]
    %v197 = vld [vmem:[%s0 + $0x288] sm:$0xff]
    %v198 = vld [vmem:[%s0 + $0x290] sm:$0xff]
    %v199 = vld [vmem:[%s0 + $0x298] sm:$0xff]
    %v200 = vld [vmem:[%s0 + $0x2a0] sm:$0xff]
    %v201 = vld [vmem:[%s0 + $0x2a8] sm:$0xff]
    %v202 = vld [vmem:[%s0 + $0x2b0] sm:$0xff]
    %v203 = vld [vmem:[%s0 + $0x2b8] sm:$0xff]
    %v204 = vld [vmem:[%s0 + $0x2c0] sm:$0xff]
    %v205 = vld [vmem:[%s0 + $0x2c8] sm:$0xff]
    %v206 = vld [vmem:[%s0 + $0x2d0] sm:$0xff]
    %v207 = vld [vmem:[%s0 + $0x2d8] sm:$0xff]
    %v208 = vld [vmem:[%s0 + $0x2e0] sm:$0xff]
    %v209 = vld [vmem:[%s0 + $0x2e8] sm:$0xff]
    %v210 = vld [vmem:[%s0 + $0x2f0] sm:$0xff]
    %v211 = vld [vmem:[%s0 + $0x2f8] sm:$0xff]
    %212 = vst [vmem:[%s6 + $0x400] sm:$0xff] %v180
    %213 = vst [vmem:[%s6 + $0x408] sm:$0xff] %v181
    %214 = vst [vmem:[%s6 + $0x410] sm:$0xff] %v182
    %215 = vst [vmem:[%s6 + $0x418] sm:$0xff] %v183
    %216 = vst [vmem:[%s6 + $0x420] sm:$0xff] %v184
    %217 = vst [vmem:[%s6 + $0x428] sm:$0xff] %v185
    %218 = vst [vmem:[%s6 + $0x430] sm:$0xff] %v186
    %219 = vst [vmem:[%s6 + $0x438] sm:$0xff] %v187
    %220 = vst [vmem:[%s6 + $0x440] sm:$0xff] %v188
    %221 = vst [vmem:[%s6 + $0x448] sm:$0xff] %v189
    %222 = vst [vmem:[%s6 + $0x450] sm:$0xff] %v190
    %223 = vst [vmem:[%s6 + $0x458] sm:$0xff] %v191
    %224 = vst [vmem:[%s6 + $0x460] sm:$0xff] %v192
    %225 = vst [vmem:[%s6 + $0x468] sm:$0xff] %v193
    %226 = vst [vmem:[%s6 + $0x470] sm:$0xff] %v194
    %227 = vst [vmem:[%s6 + $0x478] sm:$0xff] %v195
    %228 = vst [vmem:[%s6 + $0x480] sm:$0xff] %v196
    %229 = vst [vmem:[%s6 + $0x488] sm:$0xff] %v197
    %230 = vst [vmem:[%s6 + $0x490] sm:$0xff] %v198
    %231 = vst [vmem:[%s6 + $0x498] sm:$0xff] %v199
    %232 = vst [vmem:[%s6 + $0x4a0] sm:$0xff] %v200
    %233 = vst [vmem:[%s6 + $0x4a8] sm:$0xff] %v201
    %234 = vst [vmem:[%s6 + $0x4b0] sm:$0xff] %v202
    %235 = vst [vmem:[%s6 + $0x4b8] sm:$0xff] %v203
    %236 = vst [vmem:[%s6 + $0x4c0] sm:$0xff] %v204
    %237 = vst [vmem:[%s6 + $0x4c8] sm:$0xff] %v205
    %238 = vst [vmem:[%s6 + $0x4d0] sm:$0xff] %v206
    %239 = vst [vmem:[%s6 + $0x4d8] sm:$0xff] %v207
    %240 = vst [vmem:[%s6 + $0x4e0] sm:$0xff] %v208
    %241 = vst [vmem:[%s6 + $0x4e8] sm:$0xff] %v209
    %242 = vst [vmem:[%s6 + $0x4f0] sm:$0xff] %v210
    %243 = vst [vmem:[%s6 + $0x4f8] sm:$0xff] %v211
    %v244 = vld [vmem:[%s0 + $0x300] sm:$0xff]
    %v245 = vld [vmem:[%s0 + $0x308] sm:$0xff]
    %v246 = vld [vmem:[%s0 + $0x310] sm:$0xff]
    %v247 = vld [vmem:[%s0 + $0x318] sm:$0xff]
    %v248 = vld [vmem:[%s0 + $0x320] sm:$0xff]
    %v249 = vld [vmem:[%s0 + $0x328] sm:$0xff]
    %v250 = vld [vmem:[%s0 + $0x330] sm:$0xff]
    %v251 = vld [vmem:[%s0 + $0x338] sm:$0xff]
    %v252 = vld [vmem:[%s0 + $0x340] sm:$0xff]
    %v253 = vld [vmem:[%s0 + $0x348] sm:$0xff]
    %v254 = vld [vmem:[%s0 + $0x350] sm:$0xff]
    %v255 = vld [vmem:[%s0 + $0x358] sm:$0xff]
    %v256 = vld [vmem:[%s0 + $0x360] sm:$0xff]
    %v257 = vld [vmem:[%s0 + $0x368] sm:$0xff]
    %v258 = vld [vmem:[%s0 + $0x370] sm:$0xff]
    %v259 = vld [vmem:[%s0 + $0x378] sm:$0xff]
    %v260 = vld [vmem:[%s0 + $0x380] sm:$0xff]
    %v261 = vld [vmem:[%s0 + $0x388] sm:$0xff]
    %v262 = vld [vmem:[%s0 + $0x390] sm:$0xff]
    %v263 = vld [vmem:[%s0 + $0x398] sm:$0xff]
    %v264 = vld [vmem:[%s0 + $0x3a0] sm:$0xff]
    %v265 = vld [vmem:[%s0 + $0x3a8] sm:$0xff]
    %v266 = vld [vmem:[%s0 + $0x3b0] sm:$0xff]
    %v267 = vld [vmem:[%s0 + $0x3b8] sm:$0xff]
    %v268 = vld [vmem:[%s0 + $0x3c0] sm:$0xff]
    %v269 = vld [vmem:[%s0 + $0x3c8] sm:$0xff]
    %v270 = vld [vmem:[%s0 + $0x3d0] sm:$0xff]
    %v271 = vld [vmem:[%s0 + $0x3d8] sm:$0xff]
    %v272 = vld [vmem:[%s0 + $0x3e0] sm:$0xff]
    %v273 = vld [vmem:[%s0 + $0x3e8] sm:$0xff]
    %v274 = vld [vmem:[%s0 + $0x3f0] sm:$0xff]
    %v275 = vld [vmem:[%s0 + $0x3f8] sm:$0xff]
    %276 = vst [vmem:[%s6 + $0x600] sm:$0xff] %v244
    %277 = vst [vmem:[%s6 + $0x608] sm:$0xff] %v245
    %278 = vst [vmem:[%s6 + $0x610] sm:$0xff] %v246
    %279 = vst [vmem:[%s6 + $0x618] sm:$0xff] %v247
    %280 = vst [vmem:[%s6 + $0x620] sm:$0xff] %v248
    %281 = vst [vmem:[%s6 + $0x628] sm:$0xff] %v249
    %282 = vst [vmem:[%s6 + $0x630] sm:$0xff] %v250
    %283 = vst [vmem:[%s6 + $0x638] sm:$0xff] %v251
    %284 = vst [vmem:[%s6 + $0x640] sm:$0xff] %v252
    %285 = vst [vmem:[%s6 + $0x648] sm:$0xff] %v253
    %286 = vst [vmem:[%s6 + $0x650] sm:$0xff] %v254
    %287 = vst [vmem:[%s6 + $0x658] sm:$0xff] %v255
    %288 = vst [vmem:[%s6 + $0x660] sm:$0xff] %v256
    %289 = vst [vmem:[%s6 + $0x668] sm:$0xff] %v257
    %290 = vst [vmem:[%s6 + $0x670] sm:$0xff] %v258
    %291 = vst [vmem:[%s6 + $0x678] sm:$0xff] %v259
    %292 = vst [vmem:[%s6 + $0x680] sm:$0xff] %v260
    %293 = vst [vmem:[%s6 + $0x688] sm:$0xff] %v261
    %294 = vst [vmem:[%s6 + $0x690] sm:$0xff] %v262
    %295 = vst [vmem:[%s6 + $0x698] sm:$0xff] %v263
    %296 = vst [vmem:[%s6 + $0x6a0] sm:$0xff] %v264
    %297 = vst [vmem:[%s6 + $0x6a8] sm:$0xff] %v265
    %298 = vst [vmem:[%s6 + $0x6b0] sm:$0xff] %v266
    %299 = vst [vmem:[%s6 + $0x6b8] sm:$0xff] %v267
    %300 = vst [vmem:[%s6 + $0x6c0] sm:$0xff] %v268
    %301 = vst [vmem:[%s6 + $0x6c8] sm:$0xff] %v269
    %302 = vst [vmem:[%s6 + $0x6d0] sm:$0xff] %v270
    %303 = vst [vmem:[%s6 + $0x6d8] sm:$0xff] %v271
    %304 = vst [vmem:[%s6 + $0x6e0] sm:$0xff] %v272
    %305 = vst [vmem:[%s6 + $0x6e8] sm:$0xff] %v273
    %306 = vst [vmem:[%s6 + $0x6f0] sm:$0xff] %v274
    %307 = vst [vmem:[%s6 + $0x6f8] sm:$0xff] %v275
    %v308 = vld [vmem:[%s0] sm:$0xff]
    %v309 = vld [vmem:[%s0 + $0x8] sm:$0xff]
    %v310 = vld [vmem:[%s0 + $0x10] sm:$0xff]
    %v311 = vld [vmem:[%s0 + $0x18] sm:$0xff]
    %v312 = vld [vmem:[%s0 + $0x20] sm:$0xff]
    %v313 = vld [vmem:[%s0 + $0x28] sm:$0xff]
    %v314 = vld [vmem:[%s0 + $0x30] sm:$0xff]
    %v315 = vld [vmem:[%s0 + $0x38] sm:$0xff]
    %v316 = vld [vmem:[%s0 + $0x40] sm:$0xff]
    %v317 = vld [vmem:[%s0 + $0x48] sm:$0xff]
    %v318 = vld [vmem:[%s0 + $0x50] sm:$0xff]
    %v319 = vld [vmem:[%s0 + $0x58] sm:$0xff]
    %v320 = vld [vmem:[%s0 + $0x60] sm:$0xff]
    %v321 = vld [vmem:[%s0 + $0x68] sm:$0xff]
    %v322 = vld [vmem:[%s0 + $0x70] sm:$0xff]
    %v323 = vld [vmem:[%s0 + $0x78] sm:$0xff]
    %v324 = vld [vmem:[%s0 + $0x80] sm:$0xff]
    %v325 = vld [vmem:[%s0 + $0x88] sm:$0xff]
    %v326 = vld [vmem:[%s0 + $0x90] sm:$0xff]
    %v327 = vld [vmem:[%s0 + $0x98] sm:$0xff]
    %v328 = vld [vmem:[%s0 + $0xa0] sm:$0xff]
    %v329 = vld [vmem:[%s0 + $0xa8] sm:$0xff]
    %v330 = vld [vmem:[%s0 + $0xb0] sm:$0xff]
    %v331 = vld [vmem:[%s0 + $0xb8] sm:$0xff]
    %v332 = vld [vmem:[%s0 + $0xc0] sm:$0xff]
    %v333 = vld [vmem:[%s0 + $0xc8] sm:$0xff]
    %v334 = vld [vmem:[%s0 + $0xd0] sm:$0xff]
    %v335 = vld [vmem:[%s0 + $0xd8] sm:$0xff]
    %v336 = vld [vmem:[%s0 + $0xe0] sm:$0xff]
    %v337 = vld [vmem:[%s0 + $0xe8] sm:$0xff]
    %v338 = vld [vmem:[%s0 + $0xf0] sm:$0xff]
    %v339 = vld [vmem:[%s0 + $0xf8] sm:$0xff]
    %v340 = vld [vmem:[%s0 + $0x100] sm:$0xff]
    %v341 = vld [vmem:[%s0 + $0x108] sm:$0xff]
    %v342 = vld [vmem:[%s0 + $0x110] sm:$0xff]
    %v343 = vld [vmem:[%s0 + $0x118] sm:$0xff]
    %v344 = vld [vmem:[%s0 + $0x120] sm:$0xff]
    %v345 = vld [vmem:[%s0 + $0x128] sm:$0xff]
    %v346 = vld [vmem:[%s0 + $0x130] sm:$0xff]
    %v347 = vld [vmem:[%s0 + $0x138] sm:$0xff]
    %v348 = vld [vmem:[%s0 + $0x140] sm:$0xff]
    %v349 = vld [vmem:[%s0 + $0x148] sm:$0xff]
    %v350 = vld [vmem:[%s0 + $0x150] sm:$0xff]
    %v351 = vld [vmem:[%s0 + $0x158] sm:$0xff]
    %v352 = vld [vmem:[%s0 + $0x160] sm:$0xff]
    %v353 = vld [vmem:[%s0 + $0x168] sm:$0xff]
    %v354 = vld [vmem:[%s0 + $0x170] sm:$0xff]
    %v355 = vld [vmem:[%s0 + $0x178] sm:$0xff]
    %v356 = vld [vmem:[%s0 + $0x180] sm:$0xff]
    %v357 = vld [vmem:[%s0 + $0x188] sm:$0xff]
    %v358 = vld [vmem:[%s0 + $0x190] sm:$0xff]
    %v359 = vld [vmem:[%s0 + $0x198] sm:$0xff]
    %v360 = vld [vmem:[%s0 + $0x1a0] sm:$0xff]
    %v361 = vld [vmem:[%s0 + $0x1a8] sm:$0xff]
    %v362 = vld [vmem:[%s0 + $0x1b0] sm:$0xff]
    %v363 = vld [vmem:[%s0 + $0x1b8] sm:$0xff]
    %v364 = vld [vmem:[%s0 + $0x1c0] sm:$0xff]
    %v365 = vld [vmem:[%s0 + $0x1c8] sm:$0xff]
    %v366 = vld [vmem:[%s0 + $0x1d0] sm:$0xff]
    %v367 = vld [vmem:[%s0 + $0x1d8] sm:$0xff]
    %v368 = vld [vmem:[%s0 + $0x1e0] sm:$0xff]
    %v369 = vld [vmem:[%s0 + $0x1e8] sm:$0xff]
    %v370 = vld [vmem:[%s0 + $0x1f0] sm:$0xff]
    %v371 = vld [vmem:[%s0 + $0x1f8] sm:$0xff]
    %v372 = vld [vmem:[%s0 + $0x200] sm:$0xff]
    %v373 = vld [vmem:[%s0 + $0x208] sm:$0xff]
    %v374 = vld [vmem:[%s0 + $0x210] sm:$0xff]
    %v375 = vld [vmem:[%s0 + $0x218] sm:$0xff]
    %v376 = vld [vmem:[%s0 + $0x220] sm:$0xff]
    %v377 = vld [vmem:[%s0 + $0x228] sm:$0xff]
    %v378 = vld [vmem:[%s0 + $0x230] sm:$0xff]
    %v379 = vld [vmem:[%s0 + $0x238] sm:$0xff]
    %v380 = vld [vmem:[%s0 + $0x240] sm:$0xff]
    %v381 = vld [vmem:[%s0 + $0x248] sm:$0xff]
    %v382 = vld [vmem:[%s0 + $0x250] sm:$0xff]
    %v383 = vld [vmem:[%s0 + $0x258] sm:$0xff]
    %v384 = vld [vmem:[%s0 + $0x260] sm:$0xff]
    %v385 = vld [vmem:[%s0 + $0x268] sm:$0xff]
    %v386 = vld [vmem:[%s0 + $0x270] sm:$0xff]
    %v387 = vld [vmem:[%s0 + $0x278] sm:$0xff]
    %v388 = vld [vmem:[%s0 + $0x280] sm:$0xff]
    %v389 = vld [vmem:[%s0 + $0x288] sm:$0xff]
    %v390 = vld [vmem:[%s0 + $0x290] sm:$0xff]
    %v391 = vld [vmem:[%s0 + $0x298] sm:$0xff]
    %v392 = vld [vmem:[%s0 + $0x2a0] sm:$0xff]
    %v393 = vld [vmem:[%s0 + $0x2a8] sm:$0xff]
    %v394 = vld [vmem:[%s0 + $0x2b0] sm:$0xff]
    %v395 = vld [vmem:[%s0 + $0x2b8] sm:$0xff]
    %v396 = vld [vmem:[%s0 + $0x2c0] sm:$0xff]
    %v397 = vld [vmem:[%s0 + $0x2c8] sm:$0xff]
    %v398 = vld [vmem:[%s0 + $0x2d0] sm:$0xff]
    %v399 = vld [vmem:[%s0 + $0x2d8] sm:$0xff]
    %v400 = vld [vmem:[%s0 + $0x2e0] sm:$0xff]
    %v401 = vld [vmem:[%s0 + $0x2e8] sm:$0xff]
    %v402 = vld [vmem:[%s0 + $0x2f0] sm:$0xff]
    %v403 = vld [vmem:[%s0 + $0x2f8] sm:$0xff]
    %v404 = vld [vmem:[%s0 + $0x300] sm:$0xff]
    %v405 = vld [vmem:[%s0 + $0x308] sm:$0xff]
    %v406 = vld [vmem:[%s0 + $0x310] sm:$0xff]
    %v407 = vld [vmem:[%s0 + $0x318] sm:$0xff]
    %v408 = vld [vmem:[%s0 + $0x320] sm:$0xff]
    %v409 = vld [vmem:[%s0 + $0x328] sm:$0xff]
    %v410 = vld [vmem:[%s0 + $0x330] sm:$0xff]
    %v411 = vld [vmem:[%s0 + $0x338] sm:$0xff]
    %v412 = vld [vmem:[%s0 + $0x340] sm:$0xff]
    %v413 = vld [vmem:[%s0 + $0x348] sm:$0xff]
    %v414 = vld [vmem:[%s0 + $0x350] sm:$0xff]
    %v415 = vld [vmem:[%s0 + $0x358] sm:$0xff]
    %v416 = vld [vmem:[%s0 + $0x360] sm:$0xff]
    %v417 = vld [vmem:[%s0 + $0x368] sm:$0xff]
    %v418 = vld [vmem:[%s0 + $0x370] sm:$0xff]
    %v419 = vld [vmem:[%s0 + $0x378] sm:$0xff]
    %v420 = vld [vmem:[%s0 + $0x380] sm:$0xff]
    %v421 = vld [vmem:[%s0 + $0x388] sm:$0xff]
    %v422 = vld [vmem:[%s0 + $0x390] sm:$0xff]
    %v423 = vld [vmem:[%s0 + $0x398] sm:$0xff]
    %v424 = vld [vmem:[%s0 + $0x3a0] sm:$0xff]
    %v425 = vld [vmem:[%s0 + $0x3a8] sm:$0xff]
    %v426 = vld [vmem:[%s0 + $0x3b0] sm:$0xff]
    %v427 = vld [vmem:[%s0 + $0x3b8] sm:$0xff]
    %v428 = vld [vmem:[%s0 + $0x3c0] sm:$0xff]
    %v429 = vld [vmem:[%s0 + $0x3c8] sm:$0xff]
    %v430 = vld [vmem:[%s0 + $0x3d0] sm:$0xff]
    %v431 = vld [vmem:[%s0 + $0x3d8] sm:$0xff]
    %v432 = vld [vmem:[%s0 + $0x3e0] sm:$0xff]
    %v433 = vld [vmem:[%s0 + $0x3e8] sm:$0xff]
    %v434 = vld [vmem:[%s0 + $0x3f0] sm:$0xff]
    %v435 = vld [vmem:[%s0 + $0x3f8] sm:$0xff]
    %v436 = vpack.c.bf16 %v340, %v308
    %v437 = vpack.c.bf16 %v341, %v309
    %v438 = vpack.c.bf16 %v342, %v310
    %v439 = vpack.c.bf16 %v343, %v311
    %v440 = vpack.c.bf16 %v344, %v312
    %v441 = vpack.c.bf16 %v345, %v313
    %v442 = vpack.c.bf16 %v346, %v314
    %v443 = vpack.c.bf16 %v347, %v315
    %v444 = vpack.c.bf16 %v348, %v316
    %v445 = vpack.c.bf16 %v349, %v317
    %v446 = vpack.c.bf16 %v350, %v318
    %v447 = vpack.c.bf16 %v351, %v319
    %v448 = vpack.c.bf16 %v352, %v320
    %v449 = vpack.c.bf16 %v353, %v321
    %v450 = vpack.c.bf16 %v354, %v322
    %v451 = vpack.c.bf16 %v355, %v323
    %v452 = vpack.c.bf16 %v356, %v324
    %v453 = vpack.c.bf16 %v357, %v325
    %v454 = vpack.c.bf16 %v358, %v326
    %v455 = vpack.c.bf16 %v359, %v327
    %v456 = vpack.c.bf16 %v360, %v328
    %v457 = vpack.c.bf16 %v361, %v329
    %v458 = vpack.c.bf16 %v362, %v330
    %v459 = vpack.c.bf16 %v363, %v331
    %v460 = vpack.c.bf16 %v364, %v332
    %v461 = vpack.c.bf16 %v365, %v333
    %v462 = vpack.c.bf16 %v366, %v334
    %v463 = vpack.c.bf16 %v367, %v335
    %v464 = vpack.c.bf16 %v368, %v336
    %v465 = vpack.c.bf16 %v369, %v337
    %v466 = vpack.c.bf16 %v370, %v338
    %v467 = vpack.c.bf16 %v371, %v339
    %v468 = vpack.c.bf16 %v404, %v372
    %v469 = vpack.c.bf16 %v405, %v373
    %v470 = vpack.c.bf16 %v406, %v374
    %v471 = vpack.c.bf16 %v407, %v375
    %v472 = vpack.c.bf16 %v408, %v376
    %v473 = vpack.c.bf16 %v409, %v377
    %v474 = vpack.c.bf16 %v410, %v378
    %v475 = vpack.c.bf16 %v411, %v379
    %v476 = vpack.c.bf16 %v412, %v380
    %v477 = vpack.c.bf16 %v413, %v381
    %v478 = vpack.c.bf16 %v414, %v382
    %v479 = vpack.c.bf16 %v415, %v383
    %v480 = vpack.c.bf16 %v416, %v384
    %v481 = vpack.c.bf16 %v417, %v385
    %v482 = vpack.c.bf16 %v418, %v386
    %v483 = vpack.c.bf16 %v419, %v387
    %v484 = vpack.c.bf16 %v420, %v388
    %v485 = vpack.c.bf16 %v421, %v389
    %v486 = vpack.c.bf16 %v422, %v390
    %v487 = vpack.c.bf16 %v423, %v391
    %v488 = vpack.c.bf16 %v424, %v392
    %v489 = vpack.c.bf16 %v425, %v393
    %v490 = vpack.c.bf16 %v426, %v394
    %v491 = vpack.c.bf16 %v427, %v395
    %v492 = vpack.c.bf16 %v428, %v396
    %v493 = vpack.c.bf16 %v429, %v397
    %v494 = vpack.c.bf16 %v430, %v398
    %v495 = vpack.c.bf16 %v431, %v399
    %v496 = vpack.c.bf16 %v432, %v400
    %v497 = vpack.c.bf16 %v433, %v401
    %v498 = vpack.c.bf16 %v434, %v402
    %v499 = vpack.c.bf16 %v435, %v403
    %v500 = vld [vmem:[%s1] sm:$0xf]
    %v501 = vld [vmem:[%s1 + $0x4] sm:$0xf]
    %v502 = vld [vmem:[%s1 + $0x8] sm:$0xf]
    %v503 = vld [vmem:[%s1 + $0xc] sm:$0xf]
    %v504 = vld [vmem:[%s1 + $0x10] sm:$0xf]
    %v505 = vld [vmem:[%s1 + $0x14] sm:$0xf]
    %v506 = vld [vmem:[%s1 + $0x18] sm:$0xf]
    %v507 = vld [vmem:[%s1 + $0x1c] sm:$0xf]
    %v508 = vld [vmem:[%s1 + $0x20] sm:$0xf]
    %v509 = vld [vmem:[%s1 + $0x24] sm:$0xf]
    %v510 = vld [vmem:[%s1 + $0x28] sm:$0xf]
    %v511 = vld [vmem:[%s1 + $0x2c] sm:$0xf]
    %v512 = vld [vmem:[%s1 + $0x30] sm:$0xf]
    %v513 = vld [vmem:[%s1 + $0x34] sm:$0xf]
    %v514 = vld [vmem:[%s1 + $0x38] sm:$0xf]
    %v515 = vld [vmem:[%s1 + $0x3c] sm:$0xf]
    %v516 = vld [vmem:[%s1 + $0x40] sm:$0xf]
    %v517 = vld [vmem:[%s1 + $0x44] sm:$0xf]
    %v518 = vld [vmem:[%s1 + $0x48] sm:$0xf]
    %v519 = vld [vmem:[%s1 + $0x4c] sm:$0xf]
    %v520 = vld [vmem:[%s1 + $0x50] sm:$0xf]
    %v521 = vld [vmem:[%s1 + $0x54] sm:$0xf]
    %v522 = vld [vmem:[%s1 + $0x58] sm:$0xf]
    %v523 = vld [vmem:[%s1 + $0x5c] sm:$0xf]
    %v524 = vld [vmem:[%s1 + $0x60] sm:$0xf]
    %v525 = vld [vmem:[%s1 + $0x64] sm:$0xf]
    %v526 = vld [vmem:[%s1 + $0x68] sm:$0xf]
    %v527 = vld [vmem:[%s1 + $0x6c] sm:$0xf]
    %v528 = vld [vmem:[%s1 + $0x70] sm:$0xf]
    %v529 = vld [vmem:[%s1 + $0x74] sm:$0xf]
    %v530 = vld [vmem:[%s1 + $0x78] sm:$0xf]
    %v531 = vld [vmem:[%s1 + $0x7c] sm:$0xf]
    %v532 = vld [vmem:[%s1 + $0x80] sm:$0xf]
    %v533 = vld [vmem:[%s1 + $0x84] sm:$0xf]
    %v534 = vld [vmem:[%s1 + $0x88] sm:$0xf]
    %v535 = vld [vmem:[%s1 + $0x8c] sm:$0xf]
    %v536 = vld [vmem:[%s1 + $0x90] sm:$0xf]
    %v537 = vld [vmem:[%s1 + $0x94] sm:$0xf]
    %v538 = vld [vmem:[%s1 + $0x98] sm:$0xf]
    %v539 = vld [vmem:[%s1 + $0x9c] sm:$0xf]
    %v540 = vld [vmem:[%s1 + $0xa0] sm:$0xf]
    %v541 = vld [vmem:[%s1 + $0xa4] sm:$0xf]
    %v542 = vld [vmem:[%s1 + $0xa8] sm:$0xf]
    %v543 = vld [vmem:[%s1 + $0xac] sm:$0xf]
    %v544 = vld [vmem:[%s1 + $0xb0] sm:$0xf]
    %v545 = vld [vmem:[%s1 + $0xb4] sm:$0xf]
    %v546 = vld [vmem:[%s1 + $0xb8] sm:$0xf]
    %v547 = vld [vmem:[%s1 + $0xbc] sm:$0xf]
    %v548 = vld [vmem:[%s1 + $0xc0] sm:$0xf]
    %v549 = vld [vmem:[%s1 + $0xc4] sm:$0xf]
    %v550 = vld [vmem:[%s1 + $0xc8] sm:$0xf]
    %v551 = vld [vmem:[%s1 + $0xcc] sm:$0xf]
    %v552 = vld [vmem:[%s1 + $0xd0] sm:$0xf]
    %v553 = vld [vmem:[%s1 + $0xd4] sm:$0xf]
    %v554 = vld [vmem:[%s1 + $0xd8] sm:$0xf]
    %v555 = vld [vmem:[%s1 + $0xdc] sm:$0xf]
    %v556 = vld [vmem:[%s1 + $0xe0] sm:$0xf]
    %v557 = vld [vmem:[%s1 + $0xe4] sm:$0xf]
    %v558 = vld [vmem:[%s1 + $0xe8] sm:$0xf]
    %v559 = vld [vmem:[%s1 + $0xec] sm:$0xf]
    %v560 = vld [vmem:[%s1 + $0xf0] sm:$0xf]
    %v561 = vld [vmem:[%s1 + $0xf4] sm:$0xf]
    %v562 = vld [vmem:[%s1 + $0xf8] sm:$0xf]
    %v563 = vld [vmem:[%s1 + $0xfc] sm:$0xf]
    %v564 = vld [vmem:[%s1 + $0x100] sm:$0xf]
    %v565 = vld [vmem:[%s1 + $0x104] sm:$0xf]
    %v566 = vld [vmem:[%s1 + $0x108] sm:$0xf]
    %v567 = vld [vmem:[%s1 + $0x10c] sm:$0xf]
    %v568 = vld [vmem:[%s1 + $0x110] sm:$0xf]
    %v569 = vld [vmem:[%s1 + $0x114] sm:$0xf]
    %v570 = vld [vmem:[%s1 + $0x118] sm:$0xf]
    %v571 = vld [vmem:[%s1 + $0x11c] sm:$0xf]
    %v572 = vld [vmem:[%s1 + $0x120] sm:$0xf]
    %v573 = vld [vmem:[%s1 + $0x124] sm:$0xf]
    %v574 = vld [vmem:[%s1 + $0x128] sm:$0xf]
    %v575 = vld [vmem:[%s1 + $0x12c] sm:$0xf]
    %v576 = vld [vmem:[%s1 + $0x130] sm:$0xf]
    %v577 = vld [vmem:[%s1 + $0x134] sm:$0xf]
    %v578 = vld [vmem:[%s1 + $0x138] sm:$0xf]
    %v579 = vld [vmem:[%s1 + $0x13c] sm:$0xf]
    %v580 = vld [vmem:[%s1 + $0x140] sm:$0xf]
    %v581 = vld [vmem:[%s1 + $0x144] sm:$0xf]
    %v582 = vld [vmem:[%s1 + $0x148] sm:$0xf]
    %v583 = vld [vmem:[%s1 + $0x14c] sm:$0xf]
    %v584 = vld [vmem:[%s1 + $0x150] sm:$0xf]
    %v585 = vld [vmem:[%s1 + $0x154] sm:$0xf]
    %v586 = vld [vmem:[%s1 + $0x158] sm:$0xf]
    %v587 = vld [vmem:[%s1 + $0x15c] sm:$0xf]
    %v588 = vld [vmem:[%s1 + $0x160] sm:$0xf]
    %v589 = vld [vmem:[%s1 + $0x164] sm:$0xf]
    %v590 = vld [vmem:[%s1 + $0x168] sm:$0xf]
    %v591 = vld [vmem:[%s1 + $0x16c] sm:$0xf]
    %v592 = vld [vmem:[%s1 + $0x170] sm:$0xf]
    %v593 = vld [vmem:[%s1 + $0x174] sm:$0xf]
    %v594 = vld [vmem:[%s1 + $0x178] sm:$0xf]
    %v595 = vld [vmem:[%s1 + $0x17c] sm:$0xf]
    %v596 = vld [vmem:[%s1 + $0x180] sm:$0xf]
    %v597 = vld [vmem:[%s1 + $0x184] sm:$0xf]
    %v598 = vld [vmem:[%s1 + $0x188] sm:$0xf]
    %v599 = vld [vmem:[%s1 + $0x18c] sm:$0xf]
    %v600 = vld [vmem:[%s1 + $0x190] sm:$0xf]
    %v601 = vld [vmem:[%s1 + $0x194] sm:$0xf]
    %v602 = vld [vmem:[%s1 + $0x198] sm:$0xf]
    %v603 = vld [vmem:[%s1 + $0x19c] sm:$0xf]
    %v604 = vld [vmem:[%s1 + $0x1a0] sm:$0xf]
    %v605 = vld [vmem:[%s1 + $0x1a4] sm:$0xf]
    %v606 = vld [vmem:[%s1 + $0x1a8] sm:$0xf]
    %v607 = vld [vmem:[%s1 + $0x1ac] sm:$0xf]
    %v608 = vld [vmem:[%s1 + $0x1b0] sm:$0xf]
    %v609 = vld [vmem:[%s1 + $0x1b4] sm:$0xf]
    %v610 = vld [vmem:[%s1 + $0x1b8] sm:$0xf]
    %v611 = vld [vmem:[%s1 + $0x1bc] sm:$0xf]
    %v612 = vld [vmem:[%s1 + $0x1c0] sm:$0xf]
    %v613 = vld [vmem:[%s1 + $0x1c4] sm:$0xf]
    %v614 = vld [vmem:[%s1 + $0x1c8] sm:$0xf]
    %v615 = vld [vmem:[%s1 + $0x1cc] sm:$0xf]
    %v616 = vld [vmem:[%s1 + $0x1d0] sm:$0xf]
    %v617 = vld [vmem:[%s1 + $0x1d4] sm:$0xf]
    %v618 = vld [vmem:[%s1 + $0x1d8] sm:$0xf]
    %v619 = vld [vmem:[%s1 + $0x1dc] sm:$0xf]
    %v620 = vld [vmem:[%s1 + $0x1e0] sm:$0xf]
    %v621 = vld [vmem:[%s1 + $0x1e4] sm:$0xf]
    %v622 = vld [vmem:[%s1 + $0x1e8] sm:$0xf]
    %v623 = vld [vmem:[%s1 + $0x1ec] sm:$0xf]
    %v624 = vld [vmem:[%s1 + $0x1f0] sm:$0xf]
    %v625 = vld [vmem:[%s1 + $0x1f4] sm:$0xf]
    %v626 = vld [vmem:[%s1 + $0x1f8] sm:$0xf]
    %v627 = vld [vmem:[%s1 + $0x1fc] sm:$0xf]
    %v628 = vld [vmem:[%s1 + $0x200] sm:$0xf]
    %v629 = vld [vmem:[%s1 + $0x204] sm:$0xf]
    %v630 = vld [vmem:[%s1 + $0x208] sm:$0xf]
    %v631 = vld [vmem:[%s1 + $0x20c] sm:$0xf]
    %v632 = vld [vmem:[%s1 + $0x210] sm:$0xf]
    %v633 = vld [vmem:[%s1 + $0x214] sm:$0xf]
    %v634 = vld [vmem:[%s1 + $0x218] sm:$0xf]
    %v635 = vld [vmem:[%s1 + $0x21c] sm:$0xf]
    %v636 = vld [vmem:[%s1 + $0x220] sm:$0xf]
    %v637 = vld [vmem:[%s1 + $0x224] sm:$0xf]
    %v638 = vld [vmem:[%s1 + $0x228] sm:$0xf]
    %v639 = vld [vmem:[%s1 + $0x22c] sm:$0xf]
    %v640 = vld [vmem:[%s1 + $0x230] sm:$0xf]
    %v641 = vld [vmem:[%s1 + $0x234] sm:$0xf]
    %v642 = vld [vmem:[%s1 + $0x238] sm:$0xf]
    %v643 = vld [vmem:[%s1 + $0x23c] sm:$0xf]
    %v644 = vld [vmem:[%s1 + $0x240] sm:$0xf]
    %v645 = vld [vmem:[%s1 + $0x244] sm:$0xf]
    %v646 = vld [vmem:[%s1 + $0x248] sm:$0xf]
    %v647 = vld [vmem:[%s1 + $0x24c] sm:$0xf]
    %v648 = vld [vmem:[%s1 + $0x250] sm:$0xf]
    %v649 = vld [vmem:[%s1 + $0x254] sm:$0xf]
    %v650 = vld [vmem:[%s1 + $0x258] sm:$0xf]
    %v651 = vld [vmem:[%s1 + $0x25c] sm:$0xf]
    %v652 = vld [vmem:[%s1 + $0x260] sm:$0xf]
    %v653 = vld [vmem:[%s1 + $0x264] sm:$0xf]
    %v654 = vld [vmem:[%s1 + $0x268] sm:$0xf]
    %v655 = vld [vmem:[%s1 + $0x26c] sm:$0xf]
    %v656 = vld [vmem:[%s1 + $0x270] sm:$0xf]
    %v657 = vld [vmem:[%s1 + $0x274] sm:$0xf]
    %v658 = vld [vmem:[%s1 + $0x278] sm:$0xf]
    %v659 = vld [vmem:[%s1 + $0x27c] sm:$0xf]
    %v660 = vld [vmem:[%s1 + $0x280] sm:$0xf]
    %v661 = vld [vmem:[%s1 + $0x284] sm:$0xf]
    %v662 = vld [vmem:[%s1 + $0x288] sm:$0xf]
    %v663 = vld [vmem:[%s1 + $0x28c] sm:$0xf]
    %v664 = vld [vmem:[%s1 + $0x290] sm:$0xf]
    %v665 = vld [vmem:[%s1 + $0x294] sm:$0xf]
    %v666 = vld [vmem:[%s1 + $0x298] sm:$0xf]
    %v667 = vld [vmem:[%s1 + $0x29c] sm:$0xf]
    %v668 = vld [vmem:[%s1 + $0x2a0] sm:$0xf]
    %v669 = vld [vmem:[%s1 + $0x2a4] sm:$0xf]
    %v670 = vld [vmem:[%s1 + $0x2a8] sm:$0xf]
    %v671 = vld [vmem:[%s1 + $0x2ac] sm:$0xf]
    %v672 = vld [vmem:[%s1 + $0x2b0] sm:$0xf]
    %v673 = vld [vmem:[%s1 + $0x2b4] sm:$0xf]
    %v674 = vld [vmem:[%s1 + $0x2b8] sm:$0xf]
    %v675 = vld [vmem:[%s1 + $0x2bc] sm:$0xf]
    %v676 = vld [vmem:[%s1 + $0x2c0] sm:$0xf]
    %v677 = vld [vmem:[%s1 + $0x2c4] sm:$0xf]
    %v678 = vld [vmem:[%s1 + $0x2c8] sm:$0xf]
    %v679 = vld [vmem:[%s1 + $0x2cc] sm:$0xf]
    %v680 = vld [vmem:[%s1 + $0x2d0] sm:$0xf]
    %v681 = vld [vmem:[%s1 + $0x2d4] sm:$0xf]
    %v682 = vld [vmem:[%s1 + $0x2d8] sm:$0xf]
    %v683 = vld [vmem:[%s1 + $0x2dc] sm:$0xf]
    %v684 = vld [vmem:[%s1 + $0x2e0] sm:$0xf]
    %v685 = vld [vmem:[%s1 + $0x2e4] sm:$0xf]
    %v686 = vld [vmem:[%s1 + $0x2e8] sm:$0xf]
    %v687 = vld [vmem:[%s1 + $0x2ec] sm:$0xf]
    %v688 = vld [vmem:[%s1 + $0x2f0] sm:$0xf]
    %v689 = vld [vmem:[%s1 + $0x2f4] sm:$0xf]
    %v690 = vld [vmem:[%s1 + $0x2f8] sm:$0xf]
    %v691 = vld [vmem:[%s1 + $0x2fc] sm:$0xf]
    %v692 = vld [vmem:[%s1 + $0x300] sm:$0xf]
    %v693 = vld [vmem:[%s1 + $0x304] sm:$0xf]
    %v694 = vld [vmem:[%s1 + $0x308] sm:$0xf]
    %v695 = vld [vmem:[%s1 + $0x30c] sm:$0xf]
    %v696 = vld [vmem:[%s1 + $0x310] sm:$0xf]
    %v697 = vld [vmem:[%s1 + $0x314] sm:$0xf]
    %v698 = vld [vmem:[%s1 + $0x318] sm:$0xf]
    %v699 = vld [vmem:[%s1 + $0x31c] sm:$0xf]
    %v700 = vld [vmem:[%s1 + $0x320] sm:$0xf]
    %v701 = vld [vmem:[%s1 + $0x324] sm:$0xf]
    %v702 = vld [vmem:[%s1 + $0x328] sm:$0xf]
    %v703 = vld [vmem:[%s1 + $0x32c] sm:$0xf]
    %v704 = vld [vmem:[%s1 + $0x330] sm:$0xf]
    %v705 = vld [vmem:[%s1 + $0x334] sm:$0xf]
    %v706 = vld [vmem:[%s1 + $0x338] sm:$0xf]
    %v707 = vld [vmem:[%s1 + $0x33c] sm:$0xf]
    %v708 = vld [vmem:[%s1 + $0x340] sm:$0xf]
    %v709 = vld [vmem:[%s1 + $0x344] sm:$0xf]
    %v710 = vld [vmem:[%s1 + $0x348] sm:$0xf]
    %v711 = vld [vmem:[%s1 + $0x34c] sm:$0xf]
    %v712 = vld [vmem:[%s1 + $0x350] sm:$0xf]
    %v713 = vld [vmem:[%s1 + $0x354] sm:$0xf]
    %v714 = vld [vmem:[%s1 + $0x358] sm:$0xf]
    %v715 = vld [vmem:[%s1 + $0x35c] sm:$0xf]
    %v716 = vld [vmem:[%s1 + $0x360] sm:$0xf]
    %v717 = vld [vmem:[%s1 + $0x364] sm:$0xf]
    %v718 = vld [vmem:[%s1 + $0x368] sm:$0xf]
    %v719 = vld [vmem:[%s1 + $0x36c] sm:$0xf]
    %v720 = vld [vmem:[%s1 + $0x370] sm:$0xf]
    %v721 = vld [vmem:[%s1 + $0x374] sm:$0xf]
    %v722 = vld [vmem:[%s1 + $0x378] sm:$0xf]
    %v723 = vld [vmem:[%s1 + $0x37c] sm:$0xf]
    %v724 = vld [vmem:[%s1 + $0x380] sm:$0xf]
    %v725 = vld [vmem:[%s1 + $0x384] sm:$0xf]
    %v726 = vld [vmem:[%s1 + $0x388] sm:$0xf]
    %v727 = vld [vmem:[%s1 + $0x38c] sm:$0xf]
    %v728 = vld [vmem:[%s1 + $0x390] sm:$0xf]
    %v729 = vld [vmem:[%s1 + $0x394] sm:$0xf]
    %v730 = vld [vmem:[%s1 + $0x398] sm:$0xf]
    %v731 = vld [vmem:[%s1 + $0x39c] sm:$0xf]
    %v732 = vld [vmem:[%s1 + $0x3a0] sm:$0xf]
    %v733 = vld [vmem:[%s1 + $0x3a4] sm:$0xf]
    %v734 = vld [vmem:[%s1 + $0x3a8] sm:$0xf]
    %v735 = vld [vmem:[%s1 + $0x3ac] sm:$0xf]
    %v736 = vld [vmem:[%s1 + $0x3b0] sm:$0xf]
    %v737 = vld [vmem:[%s1 + $0x3b4] sm:$0xf]
    %v738 = vld [vmem:[%s1 + $0x3b8] sm:$0xf]
    %v739 = vld [vmem:[%s1 + $0x3bc] sm:$0xf]
    %v740 = vld [vmem:[%s1 + $0x3c0] sm:$0xf]
    %v741 = vld [vmem:[%s1 + $0x3c4] sm:$0xf]
    %v742 = vld [vmem:[%s1 + $0x3c8] sm:$0xf]
    %v743 = vld [vmem:[%s1 + $0x3cc] sm:$0xf]
    %v744 = vld [vmem:[%s1 + $0x3d0] sm:$0xf]
    %v745 = vld [vmem:[%s1 + $0x3d4] sm:$0xf]
    %v746 = vld [vmem:[%s1 + $0x3d8] sm:$0xf]
    %v747 = vld [vmem:[%s1 + $0x3dc] sm:$0xf]
    %v748 = vld [vmem:[%s1 + $0x3e0] sm:$0xf]
    %v749 = vld [vmem:[%s1 + $0x3e4] sm:$0xf]
    %v750 = vld [vmem:[%s1 + $0x3e8] sm:$0xf]
    %v751 = vld [vmem:[%s1 + $0x3ec] sm:$0xf]
    %v752 = vld [vmem:[%s1 + $0x3f0] sm:$0xf]
    %v753 = vld [vmem:[%s1 + $0x3f4] sm:$0xf]
    %v754 = vld [vmem:[%s1 + $0x3f8] sm:$0xf]
    %v755 = vld [vmem:[%s1 + $0x3fc] sm:$0xf]
    %v756 = vld [vmem:[%s1 + $0x400] sm:$0xf]
    %v757 = vld [vmem:[%s1 + $0x404] sm:$0xf]
    %v758 = vld [vmem:[%s1 + $0x408] sm:$0xf]
    %v759 = vld [vmem:[%s1 + $0x40c] sm:$0xf]
    %v760 = vld [vmem:[%s1 + $0x410] sm:$0xf]
    %v761 = vld [vmem:[%s1 + $0x414] sm:$0xf]
    %v762 = vld [vmem:[%s1 + $0x418] sm:$0xf]
    %v763 = vld [vmem:[%s1 + $0x41c] sm:$0xf]
    %v764 = vld [vmem:[%s1 + $0x420] sm:$0xf]
    %v765 = vld [vmem:[%s1 + $0x424] sm:$0xf]
    %v766 = vld [vmem:[%s1 + $0x428] sm:$0xf]
    %v767 = vld [vmem:[%s1 + $0x42c] sm:$0xf]
    %v768 = vld [vmem:[%s1 + $0x430] sm:$0xf]
    %v769 = vld [vmem:[%s1 + $0x434] sm:$0xf]
    %v770 = vld [vmem:[%s1 + $0x438] sm:$0xf]
    %v771 = vld [vmem:[%s1 + $0x43c] sm:$0xf]
    %v772 = vld [vmem:[%s1 + $0x440] sm:$0xf]
    %v773 = vld [vmem:[%s1 + $0x444] sm:$0xf]
    %v774 = vld [vmem:[%s1 + $0x448] sm:$0xf]
    %v775 = vld [vmem:[%s1 + $0x44c] sm:$0xf]
    %v776 = vld [vmem:[%s1 + $0x450] sm:$0xf]
    %v777 = vld [vmem:[%s1 + $0x454] sm:$0xf]
    %v778 = vld [vmem:[%s1 + $0x458] sm:$0xf]
    %v779 = vld [vmem:[%s1 + $0x45c] sm:$0xf]
    %v780 = vld [vmem:[%s1 + $0x460] sm:$0xf]
    %v781 = vld [vmem:[%s1 + $0x464] sm:$0xf]
    %v782 = vld [vmem:[%s1 + $0x468] sm:$0xf]
    %v783 = vld [vmem:[%s1 + $0x46c] sm:$0xf]
    %v784 = vld [vmem:[%s1 + $0x470] sm:$0xf]
    %v785 = vld [vmem:[%s1 + $0x474] sm:$0xf]
    %v786 = vld [vmem:[%s1 + $0x478] sm:$0xf]
    %v787 = vld [vmem:[%s1 + $0x47c] sm:$0xf]
    %v788 = vld [vmem:[%s1 + $0x480] sm:$0xf]
    %v789 = vld [vmem:[%s1 + $0x484] sm:$0xf]
    %v790 = vld [vmem:[%s1 + $0x488] sm:$0xf]
    %v791 = vld [vmem:[%s1 + $0x48c] sm:$0xf]
    %v792 = vld [vmem:[%s1 + $0x490] sm:$0xf]
    %v793 = vld [vmem:[%s1 + $0x494] sm:$0xf]
    %v794 = vld [vmem:[%s1 + $0x498] sm:$0xf]
    %v795 = vld [vmem:[%s1 + $0x49c] sm:$0xf]
    %v796 = vld [vmem:[%s1 + $0x4a0] sm:$0xf]
    %v797 = vld [vmem:[%s1 + $0x4a4] sm:$0xf]
    %v798 = vld [vmem:[%s1 + $0x4a8] sm:$0xf]
    %v799 = vld [vmem:[%s1 + $0x4ac] sm:$0xf]
    %v800 = vld [vmem:[%s1 + $0x4b0] sm:$0xf]
    %v801 = vld [vmem:[%s1 + $0x4b4] sm:$0xf]
    %v802 = vld [vmem:[%s1 + $0x4b8] sm:$0xf]
    %v803 = vld [vmem:[%s1 + $0x4bc] sm:$0xf]
    %v804 = vld [vmem:[%s1 + $0x4c0] sm:$0xf]
    %v805 = vld [vmem:[%s1 + $0x4c4] sm:$0xf]
    %v806 = vld [vmem:[%s1 + $0x4c8] sm:$0xf]
    %v807 = vld [vmem:[%s1 + $0x4cc] sm:$0xf]
    %v808 = vld [vmem:[%s1 + $0x4d0] sm:$0xf]
    %v809 = vld [vmem:[%s1 + $0x4d4] sm:$0xf]
    %v810 = vld [vmem:[%s1 + $0x4d8] sm:$0xf]
    %v811 = vld [vmem:[%s1 + $0x4dc] sm:$0xf]
    %v812 = vld [vmem:[%s1 + $0x4e0] sm:$0xf]
    %v813 = vld [vmem:[%s1 + $0x4e4] sm:$0xf]
    %v814 = vld [vmem:[%s1 + $0x4e8] sm:$0xf]
    %v815 = vld [vmem:[%s1 + $0x4ec] sm:$0xf]
    %v816 = vld [vmem:[%s1 + $0x4f0] sm:$0xf]
    %v817 = vld [vmem:[%s1 + $0x4f4] sm:$0xf]
    %v818 = vld [vmem:[%s1 + $0x4f8] sm:$0xf]
    %v819 = vld [vmem:[%s1 + $0x4fc] sm:$0xf]
    %v820 = vld [vmem:[%s1 + $0x500] sm:$0xf]
    %v821 = vld [vmem:[%s1 + $0x504] sm:$0xf]
    %v822 = vld [vmem:[%s1 + $0x508] sm:$0xf]
    %v823 = vld [vmem:[%s1 + $0x50c] sm:$0xf]
    %v824 = vld [vmem:[%s1 + $0x510] sm:$0xf]
    %v825 = vld [vmem:[%s1 + $0x514] sm:$0xf]
    %v826 = vld [vmem:[%s1 + $0x518] sm:$0xf]
    %v827 = vld [vmem:[%s1 + $0x51c] sm:$0xf]
    %v828 = vld [vmem:[%s1 + $0x520] sm:$0xf]
    %v829 = vld [vmem:[%s1 + $0x524] sm:$0xf]
    %v830 = vld [vmem:[%s1 + $0x528] sm:$0xf]
    %v831 = vld [vmem:[%s1 + $0x52c] sm:$0xf]
    %v832 = vld [vmem:[%s1 + $0x530] sm:$0xf]
    %v833 = vld [vmem:[%s1 + $0x534] sm:$0xf]
    %v834 = vld [vmem:[%s1 + $0x538] sm:$0xf]
    %v835 = vld [vmem:[%s1 + $0x53c] sm:$0xf]
    %v836 = vld [vmem:[%s1 + $0x540] sm:$0xf]
    %v837 = vld [vmem:[%s1 + $0x544] sm:$0xf]
    %v838 = vld [vmem:[%s1 + $0x548] sm:$0xf]
    %v839 = vld [vmem:[%s1 + $0x54c] sm:$0xf]
    %v840 = vld [vmem:[%s1 + $0x550] sm:$0xf]
    %v841 = vld [vmem:[%s1 + $0x554] sm:$0xf]
    %v842 = vld [vmem:[%s1 + $0x558] sm:$0xf]
    %v843 = vld [vmem:[%s1 + $0x55c] sm:$0xf]
    %v844 = vld [vmem:[%s1 + $0x560] sm:$0xf]
    %v845 = vld [vmem:[%s1 + $0x564] sm:$0xf]
    %v846 = vld [vmem:[%s1 + $0x568] sm:$0xf]
    %v847 = vld [vmem:[%s1 + $0x56c] sm:$0xf]
    %v848 = vld [vmem:[%s1 + $0x570] sm:$0xf]
    %v849 = vld [vmem:[%s1 + $0x574] sm:$0xf]
    %v850 = vld [vmem:[%s1 + $0x578] sm:$0xf]
    %v851 = vld [vmem:[%s1 + $0x57c] sm:$0xf]
    %v852 = vld [vmem:[%s1 + $0x580] sm:$0xf]
    %v853 = vld [vmem:[%s1 + $0x584] sm:$0xf]
    %v854 = vld [vmem:[%s1 + $0x588] sm:$0xf]
    %v855 = vld [vmem:[%s1 + $0x58c] sm:$0xf]
    %v856 = vld [vmem:[%s1 + $0x590] sm:$0xf]
    %v857 = vld [vmem:[%s1 + $0x594] sm:$0xf]
    %v858 = vld [vmem:[%s1 + $0x598] sm:$0xf]
    %v859 = vld [vmem:[%s1 + $0x59c] sm:$0xf]
    %v860 = vld [vmem:[%s1 + $0x5a0] sm:$0xf]
    %v861 = vld [vmem:[%s1 + $0x5a4] sm:$0xf]
    %v862 = vld [vmem:[%s1 + $0x5a8] sm:$0xf]
    %v863 = vld [vmem:[%s1 + $0x5ac] sm:$0xf]
    %v864 = vld [vmem:[%s1 + $0x5b0] sm:$0xf]
    %v865 = vld [vmem:[%s1 + $0x5b4] sm:$0xf]
    %v866 = vld [vmem:[%s1 + $0x5b8] sm:$0xf]
    %v867 = vld [vmem:[%s1 + $0x5bc] sm:$0xf]
    %v868 = vld [vmem:[%s1 + $0x5c0] sm:$0xf]
    %v869 = vld [vmem:[%s1 + $0x5c4] sm:$0xf]
    %v870 = vld [vmem:[%s1 + $0x5c8] sm:$0xf]
    %v871 = vld [vmem:[%s1 + $0x5cc] sm:$0xf]
    %v872 = vld [vmem:[%s1 + $0x5d0] sm:$0xf]
    %v873 = vld [vmem:[%s1 + $0x5d4] sm:$0xf]
    %v874 = vld [vmem:[%s1 + $0x5d8] sm:$0xf]
    %v875 = vld [vmem:[%s1 + $0x5dc] sm:$0xf]
    %v876 = vld [vmem:[%s1 + $0x5e0] sm:$0xf]
    %v877 = vld [vmem:[%s1 + $0x5e4] sm:$0xf]
    %v878 = vld [vmem:[%s1 + $0x5e8] sm:$0xf]
    %v879 = vld [vmem:[%s1 + $0x5ec] sm:$0xf]
    %v880 = vld [vmem:[%s1 + $0x5f0] sm:$0xf]
    %v881 = vld [vmem:[%s1 + $0x5f4] sm:$0xf]
    %v882 = vld [vmem:[%s1 + $0x5f8] sm:$0xf]
    %v883 = vld [vmem:[%s1 + $0x5fc] sm:$0xf]
    %v884 = vld [vmem:[%s1 + $0x600] sm:$0xf]
    %v885 = vld [vmem:[%s1 + $0x604] sm:$0xf]
    %v886 = vld [vmem:[%s1 + $0x608] sm:$0xf]
    %v887 = vld [vmem:[%s1 + $0x60c] sm:$0xf]
    %v888 = vld [vmem:[%s1 + $0x610] sm:$0xf]
    %v889 = vld [vmem:[%s1 + $0x614] sm:$0xf]
    %v890 = vld [vmem:[%s1 + $0x618] sm:$0xf]
    %v891 = vld [vmem:[%s1 + $0x61c] sm:$0xf]
    %v892 = vld [vmem:[%s1 + $0x620] sm:$0xf]
    %v893 = vld [vmem:[%s1 + $0x624] sm:$0xf]
    %v894 = vld [vmem:[%s1 + $0x628] sm:$0xf]
    %v895 = vld [vmem:[%s1 + $0x62c] sm:$0xf]
    %v896 = vld [vmem:[%s1 + $0x630] sm:$0xf]
    %v897 = vld [vmem:[%s1 + $0x634] sm:$0xf]
    %v898 = vld [vmem:[%s1 + $0x638] sm:$0xf]
    %v899 = vld [vmem:[%s1 + $0x63c] sm:$0xf]
    %v900 = vld [vmem:[%s1 + $0x640] sm:$0xf]
    %v901 = vld [vmem:[%s1 + $0x644] sm:$0xf]
    %v902 = vld [vmem:[%s1 + $0x648] sm:$0xf]
    %v903 = vld [vmem:[%s1 + $0x64c] sm:$0xf]
    %v904 = vld [vmem:[%s1 + $0x650] sm:$0xf]
    %v905 = vld [vmem:[%s1 + $0x654] sm:$0xf]
    %v906 = vld [vmem:[%s1 + $0x658] sm:$0xf]
    %v907 = vld [vmem:[%s1 + $0x65c] sm:$0xf]
    %v908 = vld [vmem:[%s1 + $0x660] sm:$0xf]
    %v909 = vld [vmem:[%s1 + $0x664] sm:$0xf]
    %v910 = vld [vmem:[%s1 + $0x668] sm:$0xf]
    %v911 = vld [vmem:[%s1 + $0x66c] sm:$0xf]
    %v912 = vld [vmem:[%s1 + $0x670] sm:$0xf]
    %v913 = vld [vmem:[%s1 + $0x674] sm:$0xf]
    %v914 = vld [vmem:[%s1 + $0x678] sm:$0xf]
    %v915 = vld [vmem:[%s1 + $0x67c] sm:$0xf]
    %v916 = vld [vmem:[%s1 + $0x680] sm:$0xf]
    %v917 = vld [vmem:[%s1 + $0x684] sm:$0xf]
    %v918 = vld [vmem:[%s1 + $0x688] sm:$0xf]
    %v919 = vld [vmem:[%s1 + $0x68c] sm:$0xf]
    %v920 = vld [vmem:[%s1 + $0x690] sm:$0xf]
    %v921 = vld [vmem:[%s1 + $0x694] sm:$0xf]
    %v922 = vld [vmem:[%s1 + $0x698] sm:$0xf]
    %v923 = vld [vmem:[%s1 + $0x69c] sm:$0xf]
    %v924 = vld [vmem:[%s1 + $0x6a0] sm:$0xf]
    %v925 = vld [vmem:[%s1 + $0x6a4] sm:$0xf]
    %v926 = vld [vmem:[%s1 + $0x6a8] sm:$0xf]
    %v927 = vld [vmem:[%s1 + $0x6ac] sm:$0xf]
    %v928 = vld [vmem:[%s1 + $0x6b0] sm:$0xf]
    %v929 = vld [vmem:[%s1 + $0x6b4] sm:$0xf]
    %v930 = vld [vmem:[%s1 + $0x6b8] sm:$0xf]
    %v931 = vld [vmem:[%s1 + $0x6bc] sm:$0xf]
    %v932 = vld [vmem:[%s1 + $0x6c0] sm:$0xf]
    %v933 = vld [vmem:[%s1 + $0x6c4] sm:$0xf]
    %v934 = vld [vmem:[%s1 + $0x6c8] sm:$0xf]
    %v935 = vld [vmem:[%s1 + $0x6cc] sm:$0xf]
    %v936 = vld [vmem:[%s1 + $0x6d0] sm:$0xf]
    %v937 = vld [vmem:[%s1 + $0x6d4] sm:$0xf]
    %v938 = vld [vmem:[%s1 + $0x6d8] sm:$0xf]
    %v939 = vld [vmem:[%s1 + $0x6dc] sm:$0xf]
    %v940 = vld [vmem:[%s1 + $0x6e0] sm:$0xf]
    %v941 = vld [vmem:[%s1 + $0x6e4] sm:$0xf]
    %v942 = vld [vmem:[%s1 + $0x6e8] sm:$0xf]
    %v943 = vld [vmem:[%s1 + $0x6ec] sm:$0xf]
    %v944 = vld [vmem:[%s1 + $0x6f0] sm:$0xf]
    %v945 = vld [vmem:[%s1 + $0x6f4] sm:$0xf]
    %v946 = vld [vmem:[%s1 + $0x6f8] sm:$0xf]
    %v947 = vld [vmem:[%s1 + $0x6fc] sm:$0xf]
    %v948 = vld [vmem:[%s1 + $0x700] sm:$0xf]
    %v949 = vld [vmem:[%s1 + $0x704] sm:$0xf]
    %v950 = vld [vmem:[%s1 + $0x708] sm:$0xf]
    %v951 = vld [vmem:[%s1 + $0x70c] sm:$0xf]
    %v952 = vld [vmem:[%s1 + $0x710] sm:$0xf]
    %v953 = vld [vmem:[%s1 + $0x714] sm:$0xf]
    %v954 = vld [vmem:[%s1 + $0x718] sm:$0xf]
    %v955 = vld [vmem:[%s1 + $0x71c] sm:$0xf]
    %v956 = vld [vmem:[%s1 + $0x720] sm:$0xf]
    %v957 = vld [vmem:[%s1 + $0x724] sm:$0xf]
    %v958 = vld [vmem:[%s1 + $0x728] sm:$0xf]
    %v959 = vld [vmem:[%s1 + $0x72c] sm:$0xf]
    %v960 = vld [vmem:[%s1 + $0x730] sm:$0xf]
    %v961 = vld [vmem:[%s1 + $0x734] sm:$0xf]
    %v962 = vld [vmem:[%s1 + $0x738] sm:$0xf]
    %v963 = vld [vmem:[%s1 + $0x73c] sm:$0xf]
    %v964 = vld [vmem:[%s1 + $0x740] sm:$0xf]
    %v965 = vld [vmem:[%s1 + $0x744] sm:$0xf]
    %v966 = vld [vmem:[%s1 + $0x748] sm:$0xf]
    %v967 = vld [vmem:[%s1 + $0x74c] sm:$0xf]
    %v968 = vld [vmem:[%s1 + $0x750] sm:$0xf]
    %v969 = vld [vmem:[%s1 + $0x754] sm:$0xf]
    %v970 = vld [vmem:[%s1 + $0x758] sm:$0xf]
    %v971 = vld [vmem:[%s1 + $0x75c] sm:$0xf]
    %v972 = vld [vmem:[%s1 + $0x760] sm:$0xf]
    %v973 = vld [vmem:[%s1 + $0x764] sm:$0xf]
    %v974 = vld [vmem:[%s1 + $0x768] sm:$0xf]
    %v975 = vld [vmem:[%s1 + $0x76c] sm:$0xf]
    %v976 = vld [vmem:[%s1 + $0x770] sm:$0xf]
    %v977 = vld [vmem:[%s1 + $0x774] sm:$0xf]
    %v978 = vld [vmem:[%s1 + $0x778] sm:$0xf]
    %v979 = vld [vmem:[%s1 + $0x77c] sm:$0xf]
    %v980 = vld [vmem:[%s1 + $0x780] sm:$0xf]
    %v981 = vld [vmem:[%s1 + $0x784] sm:$0xf]
    %v982 = vld [vmem:[%s1 + $0x788] sm:$0xf]
    %v983 = vld [vmem:[%s1 + $0x78c] sm:$0xf]
    %v984 = vld [vmem:[%s1 + $0x790] sm:$0xf]
    %v985 = vld [vmem:[%s1 + $0x794] sm:$0xf]
    %v986 = vld [vmem:[%s1 + $0x798] sm:$0xf]
    %v987 = vld [vmem:[%s1 + $0x79c] sm:$0xf]
    %v988 = vld [vmem:[%s1 + $0x7a0] sm:$0xf]
    %v989 = vld [vmem:[%s1 + $0x7a4] sm:$0xf]
    %v990 = vld [vmem:[%s1 + $0x7a8] sm:$0xf]
    %v991 = vld [vmem:[%s1 + $0x7ac] sm:$0xf]
    %v992 = vld [vmem:[%s1 + $0x7b0] sm:$0xf]
    %v993 = vld [vmem:[%s1 + $0x7b4] sm:$0xf]
    %v994 = vld [vmem:[%s1 + $0x7b8] sm:$0xf]
    %v995 = vld [vmem:[%s1 + $0x7bc] sm:$0xf]
    %v996 = vld [vmem:[%s1 + $0x7c0] sm:$0xf]
    %v997 = vld [vmem:[%s1 + $0x7c4] sm:$0xf]
    %v998 = vld [vmem:[%s1 + $0x7c8] sm:$0xf]
    %v999 = vld [vmem:[%s1 + $0x7cc] sm:$0xf]
    %v1000 = vld [vmem:[%s1 + $0x7d0] sm:$0xf]
    %v1001 = vld [vmem:[%s1 + $0x7d4] sm:$0xf]
    %v1002 = vld [vmem:[%s1 + $0x7d8] sm:$0xf]
    %v1003 = vld [vmem:[%s1 + $0x7dc] sm:$0xf]
    %v1004 = vld [vmem:[%s1 + $0x7e0] sm:$0xf]
    %v1005 = vld [vmem:[%s1 + $0x7e4] sm:$0xf]
    %v1006 = vld [vmem:[%s1 + $0x7e8] sm:$0xf]
    %v1007 = vld [vmem:[%s1 + $0x7ec] sm:$0xf]
    %v1008 = vld [vmem:[%s1 + $0x7f0] sm:$0xf]
    %v1009 = vld [vmem:[%s1 + $0x7f4] sm:$0xf]
    %v1010 = vld [vmem:[%s1 + $0x7f8] sm:$0xf]
    %v1011 = vld [vmem:[%s1 + $0x7fc] sm:$0xf]
    %v1524 = vunpack.c.l.b16 %v500
    %v1525 = vunpack.c.l.b16 %v501
    %v1526 = vunpack.c.l.b16 %v502
    %v1527 = vunpack.c.l.b16 %v503
    %v1528 = vunpack.c.l.b16 %v504
    %v1529 = vunpack.c.l.b16 %v505
    %v1530 = vunpack.c.l.b16 %v506
    %v1531 = vunpack.c.l.b16 %v507
    %v1532 = vunpack.c.l.b16 %v508
    %v1533 = vunpack.c.l.b16 %v509
    %v1534 = vunpack.c.l.b16 %v510
    %v1535 = vunpack.c.l.b16 %v511
    %v1536 = vunpack.c.l.b16 %v512
    %v1537 = vunpack.c.l.b16 %v513
    %v1538 = vunpack.c.l.b16 %v514
    %v1539 = vunpack.c.l.b16 %v515
    %v1540 = vunpack.c.l.b16 %v516
    %v1541 = vunpack.c.l.b16 %v517
    %v1542 = vunpack.c.l.b16 %v518
    %v1543 = vunpack.c.l.b16 %v519
    %v1544 = vunpack.c.l.b16 %v520
    %v1545 = vunpack.c.l.b16 %v521
    %v1546 = vunpack.c.l.b16 %v522
    %v1547 = vunpack.c.l.b16 %v523
    %v1548 = vunpack.c.l.b16 %v524
    %v1549 = vunpack.c.l.b16 %v525
    %v1550 = vunpack.c.l.b16 %v526
    %v1551 = vunpack.c.l.b16 %v527
    %v1552 = vunpack.c.l.b16 %v528
    %v1553 = vunpack.c.l.b16 %v529
    %v1554 = vunpack.c.l.b16 %v530
    %v1555 = vunpack.c.l.b16 %v531
    %v1556 = vunpack.c.l.b16 %v532
    %v1557 = vunpack.c.l.b16 %v533
    %v1558 = vunpack.c.l.b16 %v534
    %v1559 = vunpack.c.l.b16 %v535
    %v1560 = vunpack.c.l.b16 %v536
    %v1561 = vunpack.c.l.b16 %v537
    %v1562 = vunpack.c.l.b16 %v538
    %v1563 = vunpack.c.l.b16 %v539
    %v1564 = vunpack.c.l.b16 %v540
    %v1565 = vunpack.c.l.b16 %v541
    %v1566 = vunpack.c.l.b16 %v542
    %v1567 = vunpack.c.l.b16 %v543
    %v1568 = vunpack.c.l.b16 %v544
    %v1569 = vunpack.c.l.b16 %v545
    %v1570 = vunpack.c.l.b16 %v546
    %v1571 = vunpack.c.l.b16 %v547
    %v1572 = vunpack.c.l.b16 %v548
    %v1573 = vunpack.c.l.b16 %v549
    %v1574 = vunpack.c.l.b16 %v550
    %v1575 = vunpack.c.l.b16 %v551
    %v1576 = vunpack.c.l.b16 %v552
    %v1577 = vunpack.c.l.b16 %v553
    %v1578 = vunpack.c.l.b16 %v554
    %v1579 = vunpack.c.l.b16 %v555
    %v1580 = vunpack.c.l.b16 %v556
    %v1581 = vunpack.c.l.b16 %v557
    %v1582 = vunpack.c.l.b16 %v558
    %v1583 = vunpack.c.l.b16 %v559
    %v1584 = vunpack.c.l.b16 %v560
    %v1585 = vunpack.c.l.b16 %v561
    %v1586 = vunpack.c.l.b16 %v562
    %v1587 = vunpack.c.l.b16 %v563
    %v1588 = vunpack.c.l.b16 %v564
    %v1589 = vunpack.c.l.b16 %v565
    %v1590 = vunpack.c.l.b16 %v566
    %v1591 = vunpack.c.l.b16 %v567
    %v1592 = vunpack.c.l.b16 %v568
    %v1593 = vunpack.c.l.b16 %v569
    %v1594 = vunpack.c.l.b16 %v570
    %v1595 = vunpack.c.l.b16 %v571
    %v1596 = vunpack.c.l.b16 %v572
    %v1597 = vunpack.c.l.b16 %v573
    %v1598 = vunpack.c.l.b16 %v574
    %v1599 = vunpack.c.l.b16 %v575
    %v1600 = vunpack.c.l.b16 %v576
    %v1601 = vunpack.c.l.b16 %v577
    %v1602 = vunpack.c.l.b16 %v578
    %v1603 = vunpack.c.l.b16 %v579
    %v1604 = vunpack.c.l.b16 %v580
    %v1605 = vunpack.c.l.b16 %v581
    %v1606 = vunpack.c.l.b16 %v582
    %v1607 = vunpack.c.l.b16 %v583
    %v1608 = vunpack.c.l.b16 %v584
    %v1609 = vunpack.c.l.b16 %v585
    %v1610 = vunpack.c.l.b16 %v586
    %v1611 = vunpack.c.l.b16 %v587
    %v1612 = vunpack.c.l.b16 %v588
    %v1613 = vunpack.c.l.b16 %v589
    %v1614 = vunpack.c.l.b16 %v590
    %v1615 = vunpack.c.l.b16 %v591
    %v1616 = vunpack.c.l.b16 %v592
    %v1617 = vunpack.c.l.b16 %v593
    %v1618 = vunpack.c.l.b16 %v594
    %v1619 = vunpack.c.l.b16 %v595
    %v1620 = vunpack.c.l.b16 %v596
    %v1621 = vunpack.c.l.b16 %v597
    %v1622 = vunpack.c.l.b16 %v598
    %v1623 = vunpack.c.l.b16 %v599
    %v1624 = vunpack.c.l.b16 %v600
    %v1625 = vunpack.c.l.b16 %v601
    %v1626 = vunpack.c.l.b16 %v602
    %v1627 = vunpack.c.l.b16 %v603
    %v1628 = vunpack.c.l.b16 %v604
    %v1629 = vunpack.c.l.b16 %v605
    %v1630 = vunpack.c.l.b16 %v606
    %v1631 = vunpack.c.l.b16 %v607
    %v1632 = vunpack.c.l.b16 %v608
    %v1633 = vunpack.c.l.b16 %v609
    %v1634 = vunpack.c.l.b16 %v610
    %v1635 = vunpack.c.l.b16 %v611
    %v1636 = vunpack.c.l.b16 %v612
    %v1637 = vunpack.c.l.b16 %v613
    %v1638 = vunpack.c.l.b16 %v614
    %v1639 = vunpack.c.l.b16 %v615
    %v1640 = vunpack.c.l.b16 %v616
    %v1641 = vunpack.c.l.b16 %v617
    %v1642 = vunpack.c.l.b16 %v618
    %v1643 = vunpack.c.l.b16 %v619
    %v1644 = vunpack.c.l.b16 %v620
    %v1645 = vunpack.c.l.b16 %v621
    %v1646 = vunpack.c.l.b16 %v622
    %v1647 = vunpack.c.l.b16 %v623
    %v1648 = vunpack.c.l.b16 %v624
    %v1649 = vunpack.c.l.b16 %v625
    %v1650 = vunpack.c.l.b16 %v626
    %v1651 = vunpack.c.l.b16 %v627
    %v1652 = vunpack.c.l.b16 %v628
    %v1653 = vunpack.c.l.b16 %v629
    %v1654 = vunpack.c.l.b16 %v630
    %v1655 = vunpack.c.l.b16 %v631
    %v1656 = vunpack.c.l.b16 %v632
    %v1657 = vunpack.c.l.b16 %v633
    %v1658 = vunpack.c.l.b16 %v634
    %v1659 = vunpack.c.l.b16 %v635
    %v1660 = vunpack.c.l.b16 %v636
    %v1661 = vunpack.c.l.b16 %v637
    %v1662 = vunpack.c.l.b16 %v638
    %v1663 = vunpack.c.l.b16 %v639
    %v1664 = vunpack.c.l.b16 %v640
    %v1665 = vunpack.c.l.b16 %v641
    %v1666 = vunpack.c.l.b16 %v642
    %v1667 = vunpack.c.l.b16 %v643
    %v1668 = vunpack.c.l.b16 %v644
    %v1669 = vunpack.c.l.b16 %v645
    %v1670 = vunpack.c.l.b16 %v646
    %v1671 = vunpack.c.l.b16 %v647
    %v1672 = vunpack.c.l.b16 %v648
    %v1673 = vunpack.c.l.b16 %v649
    %v1674 = vunpack.c.l.b16 %v650
    %v1675 = vunpack.c.l.b16 %v651
    %v1676 = vunpack.c.l.b16 %v652
    %v1677 = vunpack.c.l.b16 %v653
    %v1678 = vunpack.c.l.b16 %v654
    %v1679 = vunpack.c.l.b16 %v655
    %v1680 = vunpack.c.l.b16 %v656
    %v1681 = vunpack.c.l.b16 %v657
    %v1682 = vunpack.c.l.b16 %v658
    %v1683 = vunpack.c.l.b16 %v659
    %v1684 = vunpack.c.l.b16 %v660
    %v1685 = vunpack.c.l.b16 %v661
    %v1686 = vunpack.c.l.b16 %v662
    %v1687 = vunpack.c.l.b16 %v663
    %v1688 = vunpack.c.l.b16 %v664
    %v1689 = vunpack.c.l.b16 %v665
    %v1690 = vunpack.c.l.b16 %v666
    %v1691 = vunpack.c.l.b16 %v667
    %v1692 = vunpack.c.l.b16 %v668
    %v1693 = vunpack.c.l.b16 %v669
    %v1694 = vunpack.c.l.b16 %v670
    %v1695 = vunpack.c.l.b16 %v671
    %v1696 = vunpack.c.l.b16 %v672
    %v1697 = vunpack.c.l.b16 %v673
    %v1698 = vunpack.c.l.b16 %v674
    %v1699 = vunpack.c.l.b16 %v675
    %v1700 = vunpack.c.l.b16 %v676
    %v1701 = vunpack.c.l.b16 %v677
    %v1702 = vunpack.c.l.b16 %v678
    %v1703 = vunpack.c.l.b16 %v679
    %v1704 = vunpack.c.l.b16 %v680
    %v1705 = vunpack.c.l.b16 %v681
    %v1706 = vunpack.c.l.b16 %v682
    %v1707 = vunpack.c.l.b16 %v683
    %v1708 = vunpack.c.l.b16 %v684
    %v1709 = vunpack.c.l.b16 %v685
    %v1710 = vunpack.c.l.b16 %v686
    %v1711 = vunpack.c.l.b16 %v687
    %v1712 = vunpack.c.l.b16 %v688
    %v1713 = vunpack.c.l.b16 %v689
    %v1714 = vunpack.c.l.b16 %v690
    %v1715 = vunpack.c.l.b16 %v691
    %v1716 = vunpack.c.l.b16 %v692
    %v1717 = vunpack.c.l.b16 %v693
    %v1718 = vunpack.c.l.b16 %v694
    %v1719 = vunpack.c.l.b16 %v695
    %v1720 = vunpack.c.l.b16 %v696
    %v1721 = vunpack.c.l.b16 %v697
    %v1722 = vunpack.c.l.b16 %v698
    %v1723 = vunpack.c.l.b16 %v699
    %v1724 = vunpack.c.l.b16 %v700
    %v1725 = vunpack.c.l.b16 %v701
    %v1726 = vunpack.c.l.b16 %v702
    %v1727 = vunpack.c.l.b16 %v703
    %v1728 = vunpack.c.l.b16 %v704
    %v1729 = vunpack.c.l.b16 %v705
    %v1730 = vunpack.c.l.b16 %v706
    %v1731 = vunpack.c.l.b16 %v707
    %v1732 = vunpack.c.l.b16 %v708
    %v1733 = vunpack.c.l.b16 %v709
    %v1734 = vunpack.c.l.b16 %v710
    %v1735 = vunpack.c.l.b16 %v711
    %v1736 = vunpack.c.l.b16 %v712
    %v1737 = vunpack.c.l.b16 %v713
    %v1738 = vunpack.c.l.b16 %v714
    %v1739 = vunpack.c.l.b16 %v715
    %v1740 = vunpack.c.l.b16 %v716
    %v1741 = vunpack.c.l.b16 %v717
    %v1742 = vunpack.c.l.b16 %v718
    %v1743 = vunpack.c.l.b16 %v719
    %v1744 = vunpack.c.l.b16 %v720
    %v1745 = vunpack.c.l.b16 %v721
    %v1746 = vunpack.c.l.b16 %v722
    %v1747 = vunpack.c.l.b16 %v723
    %v1748 = vunpack.c.l.b16 %v724
    %v1749 = vunpack.c.l.b16 %v725
    %v1750 = vunpack.c.l.b16 %v726
    %v1751 = vunpack.c.l.b16 %v727
    %v1752 = vunpack.c.l.b16 %v728
    %v1753 = vunpack.c.l.b16 %v729
    %v1754 = vunpack.c.l.b16 %v730
    %v1755 = vunpack.c.l.b16 %v731
    %v1756 = vunpack.c.l.b16 %v732
    %v1757 = vunpack.c.l.b16 %v733
    %v1758 = vunpack.c.l.b16 %v734
    %v1759 = vunpack.c.l.b16 %v735
    %v1760 = vunpack.c.l.b16 %v736
    %v1761 = vunpack.c.l.b16 %v737
    %v1762 = vunpack.c.l.b16 %v738
    %v1763 = vunpack.c.l.b16 %v739
    %v1764 = vunpack.c.l.b16 %v740
    %v1765 = vunpack.c.l.b16 %v741
    %v1766 = vunpack.c.l.b16 %v742
    %v1767 = vunpack.c.l.b16 %v743
    %v1768 = vunpack.c.l.b16 %v744
    %v1769 = vunpack.c.l.b16 %v745
    %v1770 = vunpack.c.l.b16 %v746
    %v1771 = vunpack.c.l.b16 %v747
    %v1772 = vunpack.c.l.b16 %v748
    %v1773 = vunpack.c.l.b16 %v749
    %v1774 = vunpack.c.l.b16 %v750
    %v1775 = vunpack.c.l.b16 %v751
    %v1776 = vunpack.c.l.b16 %v752
    %v1777 = vunpack.c.l.b16 %v753
    %v1778 = vunpack.c.l.b16 %v754
    %v1779 = vunpack.c.l.b16 %v755
    %v1780 = vunpack.c.l.b16 %v756
    %v1781 = vunpack.c.l.b16 %v757
    %v1782 = vunpack.c.l.b16 %v758
    %v1783 = vunpack.c.l.b16 %v759
    %v1784 = vunpack.c.l.b16 %v760
    %v1785 = vunpack.c.l.b16 %v761
    %v1786 = vunpack.c.l.b16 %v762
    %v1787 = vunpack.c.l.b16 %v763
    %v1788 = vunpack.c.l.b16 %v764
    %v1789 = vunpack.c.l.b16 %v765
    %v1790 = vunpack.c.l.b16 %v766
    %v1791 = vunpack.c.l.b16 %v767
    %v1792 = vunpack.c.l.b16 %v768
    %v1793 = vunpack.c.l.b16 %v769
    %v1794 = vunpack.c.l.b16 %v770
    %v1795 = vunpack.c.l.b16 %v771
    %v1796 = vunpack.c.l.b16 %v772
    %v1797 = vunpack.c.l.b16 %v773
    %v1798 = vunpack.c.l.b16 %v774
    %v1799 = vunpack.c.l.b16 %v775
    %v1800 = vunpack.c.l.b16 %v776
    %v1801 = vunpack.c.l.b16 %v777
    %v1802 = vunpack.c.l.b16 %v778
    %v1803 = vunpack.c.l.b16 %v779
    %v1804 = vunpack.c.l.b16 %v780
    %v1805 = vunpack.c.l.b16 %v781
    %v1806 = vunpack.c.l.b16 %v782
    %v1807 = vunpack.c.l.b16 %v783
    %v1808 = vunpack.c.l.b16 %v784
    %v1809 = vunpack.c.l.b16 %v785
    %v1810 = vunpack.c.l.b16 %v786
    %v1811 = vunpack.c.l.b16 %v787
    %v1812 = vunpack.c.l.b16 %v788
    %v1813 = vunpack.c.l.b16 %v789
    %v1814 = vunpack.c.l.b16 %v790
    %v1815 = vunpack.c.l.b16 %v791
    %v1816 = vunpack.c.l.b16 %v792
    %v1817 = vunpack.c.l.b16 %v793
    %v1818 = vunpack.c.l.b16 %v794
    %v1819 = vunpack.c.l.b16 %v795
    %v1820 = vunpack.c.l.b16 %v796
    %v1821 = vunpack.c.l.b16 %v797
    %v1822 = vunpack.c.l.b16 %v798
    %v1823 = vunpack.c.l.b16 %v799
    %v1824 = vunpack.c.l.b16 %v800
    %v1825 = vunpack.c.l.b16 %v801
    %v1826 = vunpack.c.l.b16 %v802
    %v1827 = vunpack.c.l.b16 %v803
    %v1828 = vunpack.c.l.b16 %v804
    %v1829 = vunpack.c.l.b16 %v805
    %v1830 = vunpack.c.l.b16 %v806
    %v1831 = vunpack.c.l.b16 %v807
    %v1832 = vunpack.c.l.b16 %v808
    %v1833 = vunpack.c.l.b16 %v809
    %v1834 = vunpack.c.l.b16 %v810
    %v1835 = vunpack.c.l.b16 %v811
    %v1836 = vunpack.c.l.b16 %v812
    %v1837 = vunpack.c.l.b16 %v813
    %v1838 = vunpack.c.l.b16 %v814
    %v1839 = vunpack.c.l.b16 %v815
    %v1840 = vunpack.c.l.b16 %v816
    %v1841 = vunpack.c.l.b16 %v817
    %v1842 = vunpack.c.l.b16 %v818
    %v1843 = vunpack.c.l.b16 %v819
    %v1844 = vunpack.c.l.b16 %v820
    %v1845 = vunpack.c.l.b16 %v821
    %v1846 = vunpack.c.l.b16 %v822
    %v1847 = vunpack.c.l.b16 %v823
    %v1848 = vunpack.c.l.b16 %v824
    %v1849 = vunpack.c.l.b16 %v825
    %v1850 = vunpack.c.l.b16 %v826
    %v1851 = vunpack.c.l.b16 %v827
    %v1852 = vunpack.c.l.b16 %v828
    %v1853 = vunpack.c.l.b16 %v829
    %v1854 = vunpack.c.l.b16 %v830
    %v1855 = vunpack.c.l.b16 %v831
    %v1856 = vunpack.c.l.b16 %v832
    %v1857 = vunpack.c.l.b16 %v833
    %v1858 = vunpack.c.l.b16 %v834
    %v1859 = vunpack.c.l.b16 %v835
    %v1860 = vunpack.c.l.b16 %v836
    %v1861 = vunpack.c.l.b16 %v837
    %v1862 = vunpack.c.l.b16 %v838
    %v1863 = vunpack.c.l.b16 %v839
    %v1864 = vunpack.c.l.b16 %v840
    %v1865 = vunpack.c.l.b16 %v841
    %v1866 = vunpack.c.l.b16 %v842
    %v1867 = vunpack.c.l.b16 %v843
    %v1868 = vunpack.c.l.b16 %v844
    %v1869 = vunpack.c.l.b16 %v845
    %v1870 = vunpack.c.l.b16 %v846
    %v1871 = vunpack.c.l.b16 %v847
    %v1872 = vunpack.c.l.b16 %v848
    %v1873 = vunpack.c.l.b16 %v849
    %v1874 = vunpack.c.l.b16 %v850
    %v1875 = vunpack.c.l.b16 %v851
    %v1876 = vunpack.c.l.b16 %v852
    %v1877 = vunpack.c.l.b16 %v853
    %v1878 = vunpack.c.l.b16 %v854
    %v1879 = vunpack.c.l.b16 %v855
    %v1880 = vunpack.c.l.b16 %v856
    %v1881 = vunpack.c.l.b16 %v857
    %v1882 = vunpack.c.l.b16 %v858
    %v1883 = vunpack.c.l.b16 %v859
    %v1884 = vunpack.c.l.b16 %v860
    %v1885 = vunpack.c.l.b16 %v861
    %v1886 = vunpack.c.l.b16 %v862
    %v1887 = vunpack.c.l.b16 %v863
    %v1888 = vunpack.c.l.b16 %v864
    %v1889 = vunpack.c.l.b16 %v865
    %v1890 = vunpack.c.l.b16 %v866
    %v1891 = vunpack.c.l.b16 %v867
    %v1892 = vunpack.c.l.b16 %v868
    %v1893 = vunpack.c.l.b16 %v869
    %v1894 = vunpack.c.l.b16 %v870
    %v1895 = vunpack.c.l.b16 %v871
    %v1896 = vunpack.c.l.b16 %v872
    %v1897 = vunpack.c.l.b16 %v873
    %v1898 = vunpack.c.l.b16 %v874
    %v1899 = vunpack.c.l.b16 %v875
    %v1900 = vunpack.c.l.b16 %v876
    %v1901 = vunpack.c.l.b16 %v877
    %v1902 = vunpack.c.l.b16 %v878
    %v1903 = vunpack.c.l.b16 %v879
    %v1904 = vunpack.c.l.b16 %v880
    %v1905 = vunpack.c.l.b16 %v881
    %v1906 = vunpack.c.l.b16 %v882
    %v1907 = vunpack.c.l.b16 %v883
    %v1908 = vunpack.c.l.b16 %v884
    %v1909 = vunpack.c.l.b16 %v885
    %v1910 = vunpack.c.l.b16 %v886
    %v1911 = vunpack.c.l.b16 %v887
    %v1912 = vunpack.c.l.b16 %v888
    %v1913 = vunpack.c.l.b16 %v889
    %v1914 = vunpack.c.l.b16 %v890
    %v1915 = vunpack.c.l.b16 %v891
    %v1916 = vunpack.c.l.b16 %v892
    %v1917 = vunpack.c.l.b16 %v893
    %v1918 = vunpack.c.l.b16 %v894
    %v1919 = vunpack.c.l.b16 %v895
    %v1920 = vunpack.c.l.b16 %v896
    %v1921 = vunpack.c.l.b16 %v897
    %v1922 = vunpack.c.l.b16 %v898
    %v1923 = vunpack.c.l.b16 %v899
    %v1924 = vunpack.c.l.b16 %v900
    %v1925 = vunpack.c.l.b16 %v901
    %v1926 = vunpack.c.l.b16 %v902
    %v1927 = vunpack.c.l.b16 %v903
    %v1928 = vunpack.c.l.b16 %v904
    %v1929 = vunpack.c.l.b16 %v905
    %v1930 = vunpack.c.l.b16 %v906
    %v1931 = vunpack.c.l.b16 %v907
    %v1932 = vunpack.c.l.b16 %v908
    %v1933 = vunpack.c.l.b16 %v909
    %v1934 = vunpack.c.l.b16 %v910
    %v1935 = vunpack.c.l.b16 %v911
    %v1936 = vunpack.c.l.b16 %v912
    %v1937 = vunpack.c.l.b16 %v913
    %v1938 = vunpack.c.l.b16 %v914
    %v1939 = vunpack.c.l.b16 %v915
    %v1940 = vunpack.c.l.b16 %v916
    %v1941 = vunpack.c.l.b16 %v917
    %v1942 = vunpack.c.l.b16 %v918
    %v1943 = vunpack.c.l.b16 %v919
    %v1944 = vunpack.c.l.b16 %v920
    %v1945 = vunpack.c.l.b16 %v921
    %v1946 = vunpack.c.l.b16 %v922
    %v1947 = vunpack.c.l.b16 %v923
    %v1948 = vunpack.c.l.b16 %v924
    %v1949 = vunpack.c.l.b16 %v925
    %v1950 = vunpack.c.l.b16 %v926
    %v1951 = vunpack.c.l.b16 %v927
    %v1952 = vunpack.c.l.b16 %v928
    %v1953 = vunpack.c.l.b16 %v929
    %v1954 = vunpack.c.l.b16 %v930
    %v1955 = vunpack.c.l.b16 %v931
    %v1956 = vunpack.c.l.b16 %v932
    %v1957 = vunpack.c.l.b16 %v933
    %v1958 = vunpack.c.l.b16 %v934
    %v1959 = vunpack.c.l.b16 %v935
    %v1960 = vunpack.c.l.b16 %v936
    %v1961 = vunpack.c.l.b16 %v937
    %v1962 = vunpack.c.l.b16 %v938
    %v1963 = vunpack.c.l.b16 %v939
    %v1964 = vunpack.c.l.b16 %v940
    %v1965 = vunpack.c.l.b16 %v941
    %v1966 = vunpack.c.l.b16 %v942
    %v1967 = vunpack.c.l.b16 %v943
    %v1968 = vunpack.c.l.b16 %v944
    %v1969 = vunpack.c.l.b16 %v945
    %v1970 = vunpack.c.l.b16 %v946
    %v1971 = vunpack.c.l.b16 %v947
    %v1972 = vunpack.c.l.b16 %v948
    %v1973 = vunpack.c.l.b16 %v949
    %v1974 = vunpack.c.l.b16 %v950
    %v1975 = vunpack.c.l.b16 %v951
    %v1976 = vunpack.c.l.b16 %v952
    %v1977 = vunpack.c.l.b16 %v953
    %v1978 = vunpack.c.l.b16 %v954
    %v1979 = vunpack.c.l.b16 %v955
    %v1980 = vunpack.c.l.b16 %v956
    %v1981 = vunpack.c.l.b16 %v957
    %v1982 = vunpack.c.l.b16 %v958
    %v1983 = vunpack.c.l.b16 %v959
    %v1984 = vunpack.c.l.b16 %v960
    %v1985 = vunpack.c.l.b16 %v961
    %v1986 = vunpack.c.l.b16 %v962
    %v1987 = vunpack.c.l.b16 %v963
    %v1988 = vunpack.c.l.b16 %v964
    %v1989 = vunpack.c.l.b16 %v965
    %v1990 = vunpack.c.l.b16 %v966
    %v1991 = vunpack.c.l.b16 %v967
    %v1992 = vunpack.c.l.b16 %v968
    %v1993 = vunpack.c.l.b16 %v969
    %v1994 = vunpack.c.l.b16 %v970
    %v1995 = vunpack.c.l.b16 %v971
    %v1996 = vunpack.c.l.b16 %v972
    %v1997 = vunpack.c.l.b16 %v973
    %v1998 = vunpack.c.l.b16 %v974
    %v1999 = vunpack.c.l.b16 %v975
    %v2000 = vunpack.c.l.b16 %v976
    %v2001 = vunpack.c.l.b16 %v977
    %v2002 = vunpack.c.l.b16 %v978
    %v2003 = vunpack.c.l.b16 %v979
    %v2004 = vunpack.c.l.b16 %v980
    %v2005 = vunpack.c.l.b16 %v981
    %v2006 = vunpack.c.l.b16 %v982
    %v2007 = vunpack.c.l.b16 %v983
    %v2008 = vunpack.c.l.b16 %v984
    %v2009 = vunpack.c.l.b16 %v985
    %v2010 = vunpack.c.l.b16 %v986
    %v2011 = vunpack.c.l.b16 %v987
    %v2012 = vunpack.c.l.b16 %v988
    %v2013 = vunpack.c.l.b16 %v989
    %v2014 = vunpack.c.l.b16 %v990
    %v2015 = vunpack.c.l.b16 %v991
    %v2016 = vunpack.c.l.b16 %v992
    %v2017 = vunpack.c.l.b16 %v993
    %v2018 = vunpack.c.l.b16 %v994
    %v2019 = vunpack.c.l.b16 %v995
    %v2020 = vunpack.c.l.b16 %v996
    %v2021 = vunpack.c.l.b16 %v997
    %v2022 = vunpack.c.l.b16 %v998
    %v2023 = vunpack.c.l.b16 %v999
    %v2024 = vunpack.c.l.b16 %v1000
    %v2025 = vunpack.c.l.b16 %v1001
    %v2026 = vunpack.c.l.b16 %v1002
    %v2027 = vunpack.c.l.b16 %v1003
    %v2028 = vunpack.c.l.b16 %v1004
    %v2029 = vunpack.c.l.b16 %v1005
    %v2030 = vunpack.c.l.b16 %v1006
    %v2031 = vunpack.c.l.b16 %v1007
    %v2032 = vunpack.c.l.b16 %v1008
    %v2033 = vunpack.c.l.b16 %v1009
    %v2034 = vunpack.c.l.b16 %v1010
    %v2035 = vunpack.c.l.b16 %v1011
    %v2036 = vpack.c.b16 %v1525, %v1524
    %v2037 = vpack.c.b16 %v1527, %v1526
    %v2038 = vpack.c.b16 %v1529, %v1528
    %v2039 = vpack.c.b16 %v1531, %v1530
    %v2040 = vpack.c.b16 %v1533, %v1532
    %v2041 = vpack.c.b16 %v1535, %v1534
    %v2042 = vpack.c.b16 %v1537, %v1536
    %v2043 = vpack.c.b16 %v1539, %v1538
    %v2044 = vpack.c.b16 %v1541, %v1540
    %v2045 = vpack.c.b16 %v1543, %v1542
    %v2046 = vpack.c.b16 %v1545, %v1544
    %v2047 = vpack.c.b16 %v1547, %v1546
    %v2048 = vpack.c.b16 %v1549, %v1548
    %v2049 = vpack.c.b16 %v1551, %v1550
    %v2050 = vpack.c.b16 %v1553, %v1552
    %v2051 = vpack.c.b16 %v1555, %v1554
    %v2052 = vpack.c.b16 %v1557, %v1556
    %v2053 = vpack.c.b16 %v1559, %v1558
    %v2054 = vpack.c.b16 %v1561, %v1560
    %v2055 = vpack.c.b16 %v1563, %v1562
    %v2056 = vpack.c.b16 %v1565, %v1564
    %v2057 = vpack.c.b16 %v1567, %v1566
    %v2058 = vpack.c.b16 %v1569, %v1568
    %v2059 = vpack.c.b16 %v1571, %v1570
    %v2060 = vpack.c.b16 %v1573, %v1572
    %v2061 = vpack.c.b16 %v1575, %v1574
    %v2062 = vpack.c.b16 %v1577, %v1576
    %v2063 = vpack.c.b16 %v1579, %v1578
    %v2064 = vpack.c.b16 %v1581, %v1580
    %v2065 = vpack.c.b16 %v1583, %v1582
    %v2066 = vpack.c.b16 %v1585, %v1584
    %v2067 = vpack.c.b16 %v1587, %v1586
    %v2068 = vpack.c.b16 %v1589, %v1588
    %v2069 = vpack.c.b16 %v1591, %v1590
    %v2070 = vpack.c.b16 %v1593, %v1592
    %v2071 = vpack.c.b16 %v1595, %v1594
    %v2072 = vpack.c.b16 %v1597, %v1596
    %v2073 = vpack.c.b16 %v1599, %v1598
    %v2074 = vpack.c.b16 %v1601, %v1600
    %v2075 = vpack.c.b16 %v1603, %v1602
    %v2076 = vpack.c.b16 %v1605, %v1604
    %v2077 = vpack.c.b16 %v1607, %v1606
    %v2078 = vpack.c.b16 %v1609, %v1608
    %v2079 = vpack.c.b16 %v1611, %v1610
    %v2080 = vpack.c.b16 %v1613, %v1612
    %v2081 = vpack.c.b16 %v1615, %v1614
    %v2082 = vpack.c.b16 %v1617, %v1616
    %v2083 = vpack.c.b16 %v1619, %v1618
    %v2084 = vpack.c.b16 %v1621, %v1620
    %v2085 = vpack.c.b16 %v1623, %v1622
    %v2086 = vpack.c.b16 %v1625, %v1624
    %v2087 = vpack.c.b16 %v1627, %v1626
    %v2088 = vpack.c.b16 %v1629, %v1628
    %v2089 = vpack.c.b16 %v1631, %v1630
    %v2090 = vpack.c.b16 %v1633, %v1632
    %v2091 = vpack.c.b16 %v1635, %v1634
    %v2092 = vpack.c.b16 %v1637, %v1636
    %v2093 = vpack.c.b16 %v1639, %v1638
    %v2094 = vpack.c.b16 %v1641, %v1640
    %v2095 = vpack.c.b16 %v1643, %v1642
    %v2096 = vpack.c.b16 %v1645, %v1644
    %v2097 = vpack.c.b16 %v1647, %v1646
    %v2098 = vpack.c.b16 %v1649, %v1648
    %v2099 = vpack.c.b16 %v1651, %v1650
    %v2100 = vpack.c.b16 %v1653, %v1652
    %v2101 = vpack.c.b16 %v1655, %v1654
    %v2102 = vpack.c.b16 %v1657, %v1656
    %v2103 = vpack.c.b16 %v1659, %v1658
    %v2104 = vpack.c.b16 %v1661, %v1660
    %v2105 = vpack.c.b16 %v1663, %v1662
    %v2106 = vpack.c.b16 %v1665, %v1664
    %v2107 = vpack.c.b16 %v1667, %v1666
    %v2108 = vpack.c.b16 %v1669, %v1668
    %v2109 = vpack.c.b16 %v1671, %v1670
    %v2110 = vpack.c.b16 %v1673, %v1672
    %v2111 = vpack.c.b16 %v1675, %v1674
    %v2112 = vpack.c.b16 %v1677, %v1676
    %v2113 = vpack.c.b16 %v1679, %v1678
    %v2114 = vpack.c.b16 %v1681, %v1680
    %v2115 = vpack.c.b16 %v1683, %v1682
    %v2116 = vpack.c.b16 %v1685, %v1684
    %v2117 = vpack.c.b16 %v1687, %v1686
    %v2118 = vpack.c.b16 %v1689, %v1688
    %v2119 = vpack.c.b16 %v1691, %v1690
    %v2120 = vpack.c.b16 %v1693, %v1692
    %v2121 = vpack.c.b16 %v1695, %v1694
    %v2122 = vpack.c.b16 %v1697, %v1696
    %v2123 = vpack.c.b16 %v1699, %v1698
    %v2124 = vpack.c.b16 %v1701, %v1700
    %v2125 = vpack.c.b16 %v1703, %v1702
    %v2126 = vpack.c.b16 %v1705, %v1704
    %v2127 = vpack.c.b16 %v1707, %v1706
    %v2128 = vpack.c.b16 %v1709, %v1708
    %v2129 = vpack.c.b16 %v1711, %v1710
    %v2130 = vpack.c.b16 %v1713, %v1712
    %v2131 = vpack.c.b16 %v1715, %v1714
    %v2132 = vpack.c.b16 %v1717, %v1716
    %v2133 = vpack.c.b16 %v1719, %v1718
    %v2134 = vpack.c.b16 %v1721, %v1720
    %v2135 = vpack.c.b16 %v1723, %v1722
    %v2136 = vpack.c.b16 %v1725, %v1724
    %v2137 = vpack.c.b16 %v1727, %v1726
    %v2138 = vpack.c.b16 %v1729, %v1728
    %v2139 = vpack.c.b16 %v1731, %v1730
    %v2140 = vpack.c.b16 %v1733, %v1732
    %v2141 = vpack.c.b16 %v1735, %v1734
    %v2142 = vpack.c.b16 %v1737, %v1736
    %v2143 = vpack.c.b16 %v1739, %v1738
    %v2144 = vpack.c.b16 %v1741, %v1740
    %v2145 = vpack.c.b16 %v1743, %v1742
    %v2146 = vpack.c.b16 %v1745, %v1744
    %v2147 = vpack.c.b16 %v1747, %v1746
    %v2148 = vpack.c.b16 %v1749, %v1748
    %v2149 = vpack.c.b16 %v1751, %v1750
    %v2150 = vpack.c.b16 %v1753, %v1752
    %v2151 = vpack.c.b16 %v1755, %v1754
    %v2152 = vpack.c.b16 %v1757, %v1756
    %v2153 = vpack.c.b16 %v1759, %v1758
    %v2154 = vpack.c.b16 %v1761, %v1760
    %v2155 = vpack.c.b16 %v1763, %v1762
    %v2156 = vpack.c.b16 %v1765, %v1764
    %v2157 = vpack.c.b16 %v1767, %v1766
    %v2158 = vpack.c.b16 %v1769, %v1768
    %v2159 = vpack.c.b16 %v1771, %v1770
    %v2160 = vpack.c.b16 %v1773, %v1772
    %v2161 = vpack.c.b16 %v1775, %v1774
    %v2162 = vpack.c.b16 %v1777, %v1776
    %v2163 = vpack.c.b16 %v1779, %v1778
    %v2164 = vpack.c.b16 %v1781, %v1780
    %v2165 = vpack.c.b16 %v1783, %v1782
    %v2166 = vpack.c.b16 %v1785, %v1784
    %v2167 = vpack.c.b16 %v1787, %v1786
    %v2168 = vpack.c.b16 %v1789, %v1788
    %v2169 = vpack.c.b16 %v1791, %v1790
    %v2170 = vpack.c.b16 %v1793, %v1792
    %v2171 = vpack.c.b16 %v1795, %v1794
    %v2172 = vpack.c.b16 %v1797, %v1796
    %v2173 = vpack.c.b16 %v1799, %v1798
    %v2174 = vpack.c.b16 %v1801, %v1800
    %v2175 = vpack.c.b16 %v1803, %v1802
    %v2176 = vpack.c.b16 %v1805, %v1804
    %v2177 = vpack.c.b16 %v1807, %v1806
    %v2178 = vpack.c.b16 %v1809, %v1808
    %v2179 = vpack.c.b16 %v1811, %v1810
    %v2180 = vpack.c.b16 %v1813, %v1812
    %v2181 = vpack.c.b16 %v1815, %v1814
    %v2182 = vpack.c.b16 %v1817, %v1816
    %v2183 = vpack.c.b16 %v1819, %v1818
    %v2184 = vpack.c.b16 %v1821, %v1820
    %v2185 = vpack.c.b16 %v1823, %v1822
    %v2186 = vpack.c.b16 %v1825, %v1824
    %v2187 = vpack.c.b16 %v1827, %v1826
    %v2188 = vpack.c.b16 %v1829, %v1828
    %v2189 = vpack.c.b16 %v1831, %v1830
    %v2190 = vpack.c.b16 %v1833, %v1832
    %v2191 = vpack.c.b16 %v1835, %v1834
    %v2192 = vpack.c.b16 %v1837, %v1836
    %v2193 = vpack.c.b16 %v1839, %v1838
    %v2194 = vpack.c.b16 %v1841, %v1840
    %v2195 = vpack.c.b16 %v1843, %v1842
    %v2196 = vpack.c.b16 %v1845, %v1844
    %v2197 = vpack.c.b16 %v1847, %v1846
    %v2198 = vpack.c.b16 %v1849, %v1848
    %v2199 = vpack.c.b16 %v1851, %v1850
    %v2200 = vpack.c.b16 %v1853, %v1852
    %v2201 = vpack.c.b16 %v1855, %v1854
    %v2202 = vpack.c.b16 %v1857, %v1856
    %v2203 = vpack.c.b16 %v1859, %v1858
    %v2204 = vpack.c.b16 %v1861, %v1860
    %v2205 = vpack.c.b16 %v1863, %v1862
    %v2206 = vpack.c.b16 %v1865, %v1864
    %v2207 = vpack.c.b16 %v1867, %v1866
    %v2208 = vpack.c.b16 %v1869, %v1868
    %v2209 = vpack.c.b16 %v1871, %v1870
    %v2210 = vpack.c.b16 %v1873, %v1872
    %v2211 = vpack.c.b16 %v1875, %v1874
    %v2212 = vpack.c.b16 %v1877, %v1876
    %v2213 = vpack.c.b16 %v1879, %v1878
    %v2214 = vpack.c.b16 %v1881, %v1880
    %v2215 = vpack.c.b16 %v1883, %v1882
    %v2216 = vpack.c.b16 %v1885, %v1884
    %v2217 = vpack.c.b16 %v1887, %v1886
    %v2218 = vpack.c.b16 %v1889, %v1888
    %v2219 = vpack.c.b16 %v1891, %v1890
    %v2220 = vpack.c.b16 %v1893, %v1892
    %v2221 = vpack.c.b16 %v1895, %v1894
    %v2222 = vpack.c.b16 %v1897, %v1896
    %v2223 = vpack.c.b16 %v1899, %v1898
    %v2224 = vpack.c.b16 %v1901, %v1900
    %v2225 = vpack.c.b16 %v1903, %v1902
    %v2226 = vpack.c.b16 %v1905, %v1904
    %v2227 = vpack.c.b16 %v1907, %v1906
    %v2228 = vpack.c.b16 %v1909, %v1908
    %v2229 = vpack.c.b16 %v1911, %v1910
    %v2230 = vpack.c.b16 %v1913, %v1912
    %v2231 = vpack.c.b16 %v1915, %v1914
    %v2232 = vpack.c.b16 %v1917, %v1916
    %v2233 = vpack.c.b16 %v1919, %v1918
    %v2234 = vpack.c.b16 %v1921, %v1920
    %v2235 = vpack.c.b16 %v1923, %v1922
    %v2236 = vpack.c.b16 %v1925, %v1924
    %v2237 = vpack.c.b16 %v1927, %v1926
    %v2238 = vpack.c.b16 %v1929, %v1928
    %v2239 = vpack.c.b16 %v1931, %v1930
    %v2240 = vpack.c.b16 %v1933, %v1932
    %v2241 = vpack.c.b16 %v1935, %v1934
    %v2242 = vpack.c.b16 %v1937, %v1936
    %v2243 = vpack.c.b16 %v1939, %v1938
    %v2244 = vpack.c.b16 %v1941, %v1940
    %v2245 = vpack.c.b16 %v1943, %v1942
    %v2246 = vpack.c.b16 %v1945, %v1944
    %v2247 = vpack.c.b16 %v1947, %v1946
    %v2248 = vpack.c.b16 %v1949, %v1948
    %v2249 = vpack.c.b16 %v1951, %v1950
    %v2250 = vpack.c.b16 %v1953, %v1952
    %v2251 = vpack.c.b16 %v1955, %v1954
    %v2252 = vpack.c.b16 %v1957, %v1956
    %v2253 = vpack.c.b16 %v1959, %v1958
    %v2254 = vpack.c.b16 %v1961, %v1960
    %v2255 = vpack.c.b16 %v1963, %v1962
    %v2256 = vpack.c.b16 %v1965, %v1964
    %v2257 = vpack.c.b16 %v1967, %v1966
    %v2258 = vpack.c.b16 %v1969, %v1968
    %v2259 = vpack.c.b16 %v1971, %v1970
    %v2260 = vpack.c.b16 %v1973, %v1972
    %v2261 = vpack.c.b16 %v1975, %v1974
    %v2262 = vpack.c.b16 %v1977, %v1976
    %v2263 = vpack.c.b16 %v1979, %v1978
    %v2264 = vpack.c.b16 %v1981, %v1980
    %v2265 = vpack.c.b16 %v1983, %v1982
    %v2266 = vpack.c.b16 %v1985, %v1984
    %v2267 = vpack.c.b16 %v1987, %v1986
    %v2268 = vpack.c.b16 %v1989, %v1988
    %v2269 = vpack.c.b16 %v1991, %v1990
    %v2270 = vpack.c.b16 %v1993, %v1992
    %v2271 = vpack.c.b16 %v1995, %v1994
    %v2272 = vpack.c.b16 %v1997, %v1996
    %v2273 = vpack.c.b16 %v1999, %v1998
    %v2274 = vpack.c.b16 %v2001, %v2000
    %v2275 = vpack.c.b16 %v2003, %v2002
    %v2276 = vpack.c.b16 %v2005, %v2004
    %v2277 = vpack.c.b16 %v2007, %v2006
    %v2278 = vpack.c.b16 %v2009, %v2008
    %v2279 = vpack.c.b16 %v2011, %v2010
    %v2280 = vpack.c.b16 %v2013, %v2012
    %v2281 = vpack.c.b16 %v2015, %v2014
    %v2282 = vpack.c.b16 %v2017, %v2016
    %v2283 = vpack.c.b16 %v2019, %v2018
    %v2284 = vpack.c.b16 %v2021, %v2020
    %v2285 = vpack.c.b16 %v2023, %v2022
    %v2286 = vpack.c.b16 %v2025, %v2024
    %v2287 = vpack.c.b16 %v2027, %v2026
    %v2288 = vpack.c.b16 %v2029, %v2028
    %v2289 = vpack.c.b16 %v2031, %v2030
    %v2290 = vpack.c.b16 %v2033, %v2032
    %v2291 = vpack.c.b16 %v2035, %v2034
    %2548 = vmatprep.subr.bf16.mxu0 0
    %2549 = vmatpush1.bf16.msra.mxu0 %v2036
    %2550 = vmatprep.subr.bf16.mxu0 0
    %2551 = vmatpush1.bf16.msra.mxu0 %v2037
    %2552 = vmatprep.subr.bf16.mxu0 0
    %2553 = vmatpush1.bf16.msra.mxu0 %v2038
    %2554 = vmatprep.subr.bf16.mxu0 0
    %2555 = vmatpush1.bf16.msra.mxu0 %v2039
    %2556 = vmatprep.subr.bf16.mxu0 0
    %2557 = vmatpush1.bf16.msra.mxu0 %v2040
    %2558 = vmatprep.subr.bf16.mxu0 0
    %2559 = vmatpush1.bf16.msra.mxu0 %v2041
    %2560 = vmatprep.subr.bf16.mxu0 0
    %2561 = vmatpush1.bf16.msra.mxu0 %v2042
    %2562 = vmatprep.subr.bf16.mxu0 0
    %2563 = vmatpush1.bf16.msra.mxu0 %v2043
    %2564 = vmatprep.subr.bf16.mxu0 0
    %2565 = vmatpush1.bf16.msra.mxu0 %v2044
    %2566 = vmatprep.subr.bf16.mxu0 0
    %2567 = vmatpush1.bf16.msra.mxu0 %v2045
    %2568 = vmatprep.subr.bf16.mxu0 0
    %2569 = vmatpush1.bf16.msra.mxu0 %v2046
    %2570 = vmatprep.subr.bf16.mxu0 0
    %2571 = vmatpush1.bf16.msra.mxu0 %v2047
    %2572 = vmatprep.subr.bf16.mxu0 0
    %2573 = vmatpush1.bf16.msra.mxu0 %v2048
    %2574 = vmatprep.subr.bf16.mxu0 0
    %2575 = vmatpush1.bf16.msra.mxu0 %v2049
    %2576 = vmatprep.subr.bf16.mxu0 0
    %2577 = vmatpush1.bf16.msra.mxu0 %v2050
    %2578 = vmatprep.subr.bf16.mxu0 0
    %2579 = vmatpush1.bf16.msra.mxu0 %v2051
    %2580 = vmatprep.mubr.bf16.mxu0 %v437
    %2581 = vmatmul.mubr.bf16.gmra.mrb[0].mxu0 %v436
    %v2582 = vpop.f32.mrb[0].mxu0
    %v2583 = vadd.f32 0.0, %v2582
    %v2584 = vpop.f32.mrb[0].mxu0
    %v2585 = vpop.f32.mrb[0].mxu0
    %v2586 = vadd.f32 0.0, %v2585
    %v2587 = vpop.f32.mrb[0].mxu0
    %2588 = vmatprep.mubr.bf16.mxu0 %v469
    %2589 = vmatmul.mubr.bf16.gmra.mrb[0].mxu0 %v468
    %v2590 = vpop.f32.mrb[0].mxu0
    %v2591 = vadd.f32 0.0, %v2590
    %v2592 = vpop.f32.mrb[0].mxu0
    %v2593 = vpop.f32.mrb[0].mxu0
    %v2594 = vadd.f32 0.0, %v2593
    %v2595 = vpop.f32.mrb[0].mxu0
    %2596 = vdwg.mxu0
    %2597 = vmatprep.subr.bf16.mxu0 0
    %2598 = vmatpush1.bf16.msra.mxu0 %v2052
    %2599 = vmatprep.subr.bf16.mxu0 0
    %2600 = vmatpush1.bf16.msra.mxu0 %v2053
    %2601 = vmatprep.subr.bf16.mxu0 0
    %2602 = vmatpush1.bf16.msra.mxu0 %v2054
    %2603 = vmatprep.subr.bf16.mxu0 0
    %2604 = vmatpush1.bf16.msra.mxu0 %v2055
    %2605 = vmatprep.subr.bf16.mxu0 0
    %2606 = vmatpush1.bf16.msra.mxu0 %v2056
    %2607 = vmatprep.subr.bf16.mxu0 0
    %2608 = vmatpush1.bf16.msra.mxu0 %v2057
    %2609 = vmatprep.subr.bf16.mxu0 0
    %2610 = vmatpush1.bf16.msra.mxu0 %v2058
    %2611 = vmatprep.subr.bf16.mxu0 0
    %2612 = vmatpush1.bf16.msra.mxu0 %v2059
    %2613 = vmatprep.subr.bf16.mxu0 0
    %2614 = vmatpush1.bf16.msra.mxu0 %v2060
    %2615 = vmatprep.subr.bf16.mxu0 0
    %2616 = vmatpush1.bf16.msra.mxu0 %v2061
    %2617 = vmatprep.subr.bf16.mxu0 0
    %2618 = vmatpush1.bf16.msra.mxu0 %v2062
    %2619 = vmatprep.subr.bf16.mxu0 0
    %2620 = vmatpush1.bf16.msra.mxu0 %v2063
    %2621 = vmatprep.subr.bf16.mxu0 0
    %2622 = vmatpush1.bf16.msra.mxu0 %v2064
    %2623 = vmatprep.subr.bf16.mxu0 0
    %2624 = vmatpush1.bf16.msra.mxu0 %v2065
    %2625 = vmatprep.subr.bf16.mxu0 0
    %2626 = vmatpush1.bf16.msra.mxu0 %v2066
    %2627 = vmatprep.subr.bf16.mxu0 0
    %2628 = vmatpush1.bf16.msra.mxu0 %v2067
    %2629 = vmatprep.mubr.bf16.mxu0 %v439
    %2630 = vmatmul.mubr.bf16.gmra.mrb[0].mxu0 %v438
    %v2631 = vpop.f32.mrb[0].mxu0
    %v2632 = vadd.f32 %v2583, %v2631
    %v2633 = vpop.f32.mrb[0].mxu0
    %v2634 = vpop.f32.mrb[0].mxu0
    %v2635 = vadd.f32 %v2586, %v2634
    %v2636 = vpop.f32.mrb[0].mxu0
    %2637 = vmatprep.mubr.bf16.mxu0 %v471
    %2638 = vmatmul.mubr.bf16.gmra.mrb[0].mxu0 %v470
    %v2639 = vpop.f32.mrb[0].mxu0
    %v2640 = vadd.f32 %v2591, %v2639
    %v2641 = vpop.f32.mrb[0].mxu0
    %v2642 = vpop.f32.mrb[0].mxu0
    %v2643 = vadd.f32 %v2594, %v2642
    %v2644 = vpop.f32.mrb[0].mxu0
    %2645 = vdwg.mxu0
    %2646 = vmatprep.subr.bf16.mxu0 0
    %2647 = vmatpush1.bf16.msra.mxu0 %v2068
    %2648 = vmatprep.subr.bf16.mxu0 0
    %2649 = vmatpush1.bf16.msra.mxu0 %v2069
    %2650 = vmatprep.subr.bf16.mxu0 0
    %2651 = vmatpush1.bf16.msra.mxu0 %v2070
    %2652 = vmatprep.subr.bf16.mxu0 0
    %2653 = vmatpush1.bf16.msra.mxu0 %v2071
    %2654 = vmatprep.subr.bf16.mxu0 0
    %2655 = vmatpush1.bf16.msra.mxu0 %v2072
    %2656 = vmatprep.subr.bf16.mxu0 0
    %2657 = vmatpush1.bf16.msra.mxu0 %v2073
    %2658 = vmatprep.subr.bf16.mxu0 0
    %2659 = vmatpush1.bf16.msra.mxu0 %v2074
    %2660 = vmatprep.subr.bf16.mxu0 0
    %2661 = vmatpush1.bf16.msra.mxu0 %v2075
    %2662 = vmatprep.subr.bf16.mxu0 0
    %2663 = vmatpush1.bf16.msra.mxu0 %v2076
    %2664 = vmatprep.subr.bf16.mxu0 0
    %2665 = vmatpush1.bf16.msra.mxu0 %v2077
    %2666 = vmatprep.subr.bf16.mxu0 0
    %2667 = vmatpush1.bf16.msra.mxu0 %v2078
    %2668 = vmatprep.subr.bf16.mxu0 0
    %2669 = vmatpush1.bf16.msra.mxu0 %v2079
    %2670 = vmatprep.subr.bf16.mxu0 0
    %2671 = vmatpush1.bf16.msra.mxu0 %v2080
    %2672 = vmatprep.subr.bf16.mxu0 0
    %2673 = vmatpush1.bf16.msra.mxu0 %v2081
    %2674 = vmatprep.subr.bf16.mxu0 0
    %2675 = vmatpush1.bf16.msra.mxu0 %v2082
    %2676 = vmatprep.subr.bf16.mxu0 0
    %2677 = vmatpush1.bf16.msra.mxu0 %v2083
    %2678 = vmatprep.mubr.bf16.mxu0 %v441
    %2679 = vmatmul.mubr.bf16.gmra.mrb[0].mxu0 %v440
    %v2680 = vpop.f32.mrb[0].mxu0
    %v2681 = vadd.f32 %v2632, %v2680
    %v2682 = vpop.f32.mrb[0].mxu0
    %v2683 = vpop.f32.mrb[0].mxu0
    %v2684 = vadd.f32 %v2635, %v2683
    %v2685 = vpop.f32.mrb[0].mxu0
    %2686 = vmatprep.mubr.bf16.mxu0 %v473
    %2687 = vmatmul.mubr.bf16.gmra.mrb[0].mxu0 %v472
    %v2688 = vpop.f32.mrb[0].mxu0
    %v2689 = vadd.f32 %v2640, %v2688
    %v2690 = vpop.f32.mrb[0].mxu0
    %v2691 = vpop.f32.mrb[0].mxu0
    %v2692 = vadd.f32 %v2643, %v2691
    %v2693 = vpop.f32.mrb[0].mxu0
    %2694 = vdwg.mxu0
    %2695 = vmatprep.subr.bf16.mxu0 0
    %2696 = vmatpush1.bf16.msra.mxu0 %v2084
    %2697 = vmatprep.subr.bf16.mxu0 0
    %2698 = vmatpush1.bf16.msra.mxu0 %v2085
    %2699 = vmatprep.subr.bf16.mxu0 0
    %2700 = vmatpush1.bf16.msra.mxu0 %v2086
    %2701 = vmatprep.subr.bf16.mxu0 0
    %2702 = vmatpush1.bf16.msra.mxu0 %v2087
    %2703 = vmatprep.subr.bf16.mxu0 0
    %2704 = vmatpush1.bf16.msra.mxu0 %v2088
    %2705 = vmatprep.subr.bf16.mxu0 0
    %2706 = vmatpush1.bf16.msra.mxu0 %v2089
    %2707 = vmatprep.subr.bf16.mxu0 0
    %2708 = vmatpush1.bf16.msra.mxu0 %v2090
    %2709 = vmatprep.subr.bf16.mxu0 0
    %2710 = vmatpush1.bf16.msra.mxu0 %v2091
    %2711 = vmatprep.subr.bf16.mxu0 0
    %2712 = vmatpush1.bf16.msra.mxu0 %v2092
    %2713 = vmatprep.subr.bf16.mxu0 0
    %2714 = vmatpush1.bf16.msra.mxu0 %v2093
    %2715 = vmatprep.subr.bf16.mxu0 0
    %2716 = vmatpush1.bf16.msra.mxu0 %v2094
    %2717 = vmatprep.subr.bf16.mxu0 0
    %2718 = vmatpush1.bf16.msra.mxu0 %v2095
    %2719 = vmatprep.subr.bf16.mxu0 0
    %2720 = vmatpush1.bf16.msra.mxu0 %v2096
    %2721 = vmatprep.subr.bf16.mxu0 0
    %2722 = vmatpush1.bf16.msra.mxu0 %v2097
    %2723 = vmatprep.subr.bf16.mxu0 0
    %2724 = vmatpush1.bf16.msra.mxu0 %v2098
    %2725 = vmatprep.subr.bf16.mxu0 0
    %2726 = vmatpush1.bf16.msra.mxu0 %v2099
    %2727 = vmatprep.mubr.bf16.mxu0 %v443
    %2728 = vmatmul.mubr.bf16.gmra.mrb[0].mxu0 %v442
    %v2729 = vpop.f32.mrb[0].mxu0
    %v2730 = vadd.f32 %v2681, %v2729
    %v2731 = vpop.f32.mrb[0].mxu0
    %v2732 = vpop.f32.mrb[0].mxu0
    %v2733 = vadd.f32 %v2684, %v2732
    %v2734 = vpop.f32.mrb[0].mxu0
    %2735 = vmatprep.mubr.bf16.mxu0 %v475
    %2736 = vmatmul.mubr.bf16.gmra.mrb[0].mxu0 %v474
    %v2737 = vpop.f32.mrb[0].mxu0
    %v2738 = vadd.f32 %v2689, %v2737
    %v2739 = vpop.f32.mrb[0].mxu0
    %v2740 = vpop.f32.mrb[0].mxu0
    %v2741 = vadd.f32 %v2692, %v2740
    %v2742 = vpop.f32.mrb[0].mxu0
    %2743 = vdwg.mxu0
    %2744 = vmatprep.subr.bf16.mxu0 0
    %2745 = vmatpush1.bf16.msra.mxu0 %v2100
    %2746 = vmatprep.subr.bf16.mxu0 0
    %2747 = vmatpush1.bf16.msra.mxu0 %v2101
    %2748 = vmatprep.subr.bf16.mxu0 0
    %2749 = vmatpush1.bf16.msra.mxu0 %v2102
    %2750 = vmatprep.subr.bf16.mxu0 0
    %2751 = vmatpush1.bf16.msra.mxu0 %v2103
    %2752 = vmatprep.subr.bf16.mxu0 0
    %2753 = vmatpush1.bf16.msra.mxu0 %v2104
    %2754 = vmatprep.subr.bf16.mxu0 0
    %2755 = vmatpush1.bf16.msra.mxu0 %v2105
    %2756 = vmatprep.subr.bf16.mxu0 0
    %2757 = vmatpush1.bf16.msra.mxu0 %v2106
    %2758 = vmatprep.subr.bf16.mxu0 0
    %2759 = vmatpush1.bf16.msra.mxu0 %v2107
    %2760 = vmatprep.subr.bf16.mxu0 0
    %2761 = vmatpush1.bf16.msra.mxu0 %v2108
    %2762 = vmatprep.subr.bf16.mxu0 0
    %2763 = vmatpush1.bf16.msra.mxu0 %v2109
    %2764 = vmatprep.subr.bf16.mxu0 0
    %2765 = vmatpush1.bf16.msra.mxu0 %v2110
    %2766 = vmatprep.subr.bf16.mxu0 0
    %2767 = vmatpush1.bf16.msra.mxu0 %v2111
    %2768 = vmatprep.subr.bf16.mxu0 0
    %2769 = vmatpush1.bf16.msra.mxu0 %v2112
    %2770 = vmatprep.subr.bf16.mxu0 0
    %2771 = vmatpush1.bf16.msra.mxu0 %v2113
    %2772 = vmatprep.subr.bf16.mxu0 0
    %2773 = vmatpush1.bf16.msra.mxu0 %v2114
    %2774 = vmatprep.subr.bf16.mxu0 0
    %2775 = vmatpush1.bf16.msra.mxu0 %v2115
    %2776 = vmatprep.mubr.bf16.mxu0 %v445
    %2777 = vmatmul.mubr.bf16.gmra.mrb[0].mxu0 %v444
    %v2778 = vpop.f32.mrb[0].mxu0
    %v2779 = vadd.f32 %v2730, %v2778
    %v2780 = vpop.f32.mrb[0].mxu0
    %v2781 = vpop.f32.mrb[0].mxu0
    %v2782 = vadd.f32 %v2733, %v2781
    %v2783 = vpop.f32.mrb[0].mxu0
    %2784 = vmatprep.mubr.bf16.mxu0 %v477
    %2785 = vmatmul.mubr.bf16.gmra.mrb[0].mxu0 %v476
    %v2786 = vpop.f32.mrb[0].mxu0
    %v2787 = vadd.f32 %v2738, %v2786
    %v2788 = vpop.f32.mrb[0].mxu0
    %v2789 = vpop.f32.mrb[0].mxu0
    %v2790 = vadd.f32 %v2741, %v2789
    %v2791 = vpop.f32.mrb[0].mxu0
    %2792 = vdwg.mxu0
    %2793 = vmatprep.subr.bf16.mxu0 0
    %2794 = vmatpush1.bf16.msra.mxu0 %v2116
    %2795 = vmatprep.subr.bf16.mxu0 0
    %2796 = vmatpush1.bf16.msra.mxu0 %v2117
    %2797 = vmatprep.subr.bf16.mxu0 0
    %2798 = vmatpush1.bf16.msra.mxu0 %v2118
    %2799 = vmatprep.subr.bf16.mxu0 0
    %2800 = vmatpush1.bf16.msra.mxu0 %v2119
    %2801 = vmatprep.subr.bf16.mxu0 0
    %2802 = vmatpush1.bf16.msra.mxu0 %v2120
    %2803 = vmatprep.subr.bf16.mxu0 0
    %2804 = vmatpush1.bf16.msra.mxu0 %v2121
    %2805 = vmatprep.subr.bf16.mxu0 0
    %2806 = vmatpush1.bf16.msra.mxu0 %v2122
    %2807 = vmatprep.subr.bf16.mxu0 0
    %2808 = vmatpush1.bf16.msra.mxu0 %v2123
    %2809 = vmatprep.subr.bf16.mxu0 0
    %2810 = vmatpush1.bf16.msra.mxu0 %v2124
    %2811 = vmatprep.subr.bf16.mxu0 0
    %2812 = vmatpush1.bf16.msra.mxu0 %v2125
    %2813 = vmatprep.subr.bf16.mxu0 0
    %2814 = vmatpush1.bf16.msra.mxu0 %v2126
    %2815 = vmatprep.subr.bf16.mxu0 0
    %2816 = vmatpush1.bf16.msra.mxu0 %v2127
    %2817 = vmatprep.subr.bf16.mxu0 0
    %2818 = vmatpush1.bf16.msra.mxu0 %v2128
    %2819 = vmatprep.subr.bf16.mxu0 0
    %2820 = vmatpush1.bf16.msra.mxu0 %v2129
    %2821 = vmatprep.subr.bf16.mxu0 0
    %2822 = vmatpush1.bf16.msra.mxu0 %v2130
    %2823 = vmatprep.subr.bf16.mxu0 0
    %2824 = vmatpush1.bf16.msra.mxu0 %v2131
    %2825 = vmatprep.mubr.bf16.mxu0 %v447
    %2826 = vmatmul.mubr.bf16.gmra.mrb[0].mxu0 %v446
    %v2827 = vpop.f32.mrb[0].mxu0
    %v2828 = vadd.f32 %v2779, %v2827
    %v2829 = vpop.f32.mrb[0].mxu0
    %v2830 = vpop.f32.mrb[0].mxu0
    %v2831 = vadd.f32 %v2782, %v2830
    %v2832 = vpop.f32.mrb[0].mxu0
    %2833 = vmatprep.mubr.bf16.mxu0 %v479
    %2834 = vmatmul.mubr.bf16.gmra.mrb[0].mxu0 %v478
    %v2835 = vpop.f32.mrb[0].mxu0
    %v2836 = vadd.f32 %v2787, %v2835
    %v2837 = vpop.f32.mrb[0].mxu0
    %v2838 = vpop.f32.mrb[0].mxu0
    %v2839 = vadd.f32 %v2790, %v2838
    %v2840 = vpop.f32.mrb[0].mxu0
    %2841 = vdwg.mxu0
    %2842 = vmatprep.subr.bf16.mxu0 0
    %2843 = vmatpush1.bf16.msra.mxu0 %v2132
    %2844 = vmatprep.subr.bf16.mxu0 0
    %2845 = vmatpush1.bf16.msra.mxu0 %v2133
    %2846 = vmatprep.subr.bf16.mxu0 0
    %2847 = vmatpush1.bf16.msra.mxu0 %v2134
    %2848 = vmatprep.subr.bf16.mxu0 0
    %2849 = vmatpush1.bf16.msra.mxu0 %v2135
    %2850 = vmatprep.subr.bf16.mxu0 0
    %2851 = vmatpush1.bf16.msra.mxu0 %v2136
    %2852 = vmatprep.subr.bf16.mxu0 0
    %2853 = vmatpush1.bf16.msra.mxu0 %v2137
    %2854 = vmatprep.subr.bf16.mxu0 0
    %2855 = vmatpush1.bf16.msra.mxu0 %v2138
    %2856 = vmatprep.subr.bf16.mxu0 0
    %2857 = vmatpush1.bf16.msra.mxu0 %v2139
    %2858 = vmatprep.subr.bf16.mxu0 0
    %2859 = vmatpush1.bf16.msra.mxu0 %v2140
    %2860 = vmatprep.subr.bf16.mxu0 0
    %2861 = vmatpush1.bf16.msra.mxu0 %v2141
    %2862 = vmatprep.subr.bf16.mxu0 0
    %2863 = vmatpush1.bf16.msra.mxu0 %v2142
    %2864 = vmatprep.subr.bf16.mxu0 0
    %2865 = vmatpush1.bf16.msra.mxu0 %v2143
    %2866 = vmatprep.subr.bf16.mxu0 0
    %2867 = vmatpush1.bf16.msra.mxu0 %v2144
    %2868 = vmatprep.subr.bf16.mxu0 0
    %2869 = vmatpush1.bf16.msra.mxu0 %v2145
    %2870 = vmatprep.subr.bf16.mxu0 0
    %2871 = vmatpush1.bf16.msra.mxu0 %v2146
    %2872 = vmatprep.subr.bf16.mxu0 0
    %2873 = vmatpush1.bf16.msra.mxu0 %v2147
    %2874 = vmatprep.mubr.bf16.mxu0 %v449
    %2875 = vmatmul.mubr.bf16.gmra.mrb[0].mxu0 %v448
    %v2876 = vpop.f32.mrb[0].mxu0
    %v2877 = vadd.f32 %v2828, %v2876
    %v2878 = vpop.f32.mrb[0].mxu0
    %v2879 = vpop.f32.mrb[0].mxu0
    %v2880 = vadd.f32 %v2831, %v2879
    %v2881 = vpop.f32.mrb[0].mxu0
    %2882 = vmatprep.mubr.bf16.mxu0 %v481
    %2883 = vmatmul.mubr.bf16.gmra.mrb[0].mxu0 %v480
    %v2884 = vpop.f32.mrb[0].mxu0
    %v2885 = vadd.f32 %v2836, %v2884
    %v2886 = vpop.f32.mrb[0].mxu0
    %v2887 = vpop.f32.mrb[0].mxu0
    %v2888 = vadd.f32 %v2839, %v2887
    %v2889 = vpop.f32.mrb[0].mxu0
    %2890 = vdwg.mxu0
    %2891 = vmatprep.subr.bf16.mxu0 0
    %2892 = vmatpush1.bf16.msra.mxu0 %v2148
    %2893 = vmatprep.subr.bf16.mxu0 0
    %2894 = vmatpush1.bf16.msra.mxu0 %v2149
    %2895 = vmatprep.subr.bf16.mxu0 0
    %2896 = vmatpush1.bf16.msra.mxu0 %v2150
    %2897 = vmatprep.subr.bf16.mxu0 0
    %2898 = vmatpush1.bf16.msra.mxu0 %v2151
    %2899 = vmatprep.subr.bf16.mxu0 0
    %2900 = vmatpush1.bf16.msra.mxu0 %v2152
    %2901 = vmatprep.subr.bf16.mxu0 0
    %2902 = vmatpush1.bf16.msra.mxu0 %v2153
    %2903 = vmatprep.subr.bf16.mxu0 0
    %2904 = vmatpush1.bf16.msra.mxu0 %v2154
    %2905 = vmatprep.subr.bf16.mxu0 0
    %2906 = vmatpush1.bf16.msra.mxu0 %v2155
    %2907 = vmatprep.subr.bf16.mxu0 0
    %2908 = vmatpush1.bf16.msra.mxu0 %v2156
    %2909 = vmatprep.subr.bf16.mxu0 0
    %2910 = vmatpush1.bf16.msra.mxu0 %v2157
    %2911 = vmatprep.subr.bf16.mxu0 0
    %2912 = vmatpush1.bf16.msra.mxu0 %v2158
    %2913 = vmatprep.subr.bf16.mxu0 0
    %2914 = vmatpush1.bf16.msra.mxu0 %v2159
    %2915 = vmatprep.subr.bf16.mxu0 0
    %2916 = vmatpush1.bf16.msra.mxu0 %v2160
    %2917 = vmatprep.subr.bf16.mxu0 0
    %2918 = vmatpush1.bf16.msra.mxu0 %v2161
    %2919 = vmatprep.subr.bf16.mxu0 0
    %2920 = vmatpush1.bf16.msra.mxu0 %v2162
    %2921 = vmatprep.subr.bf16.mxu0 0
    %2922 = vmatpush1.bf16.msra.mxu0 %v2163
    %2923 = vmatprep.mubr.bf16.mxu0 %v451
    %2924 = vmatmul.mubr.bf16.gmra.mrb[0].mxu0 %v450
    %v2925 = vpop.f32.mrb[0].mxu0
    %v2926 = vadd.f32 %v2877, %v2925
    %v2927 = vpop.f32.mrb[0].mxu0
    %v2928 = vpop.f32.mrb[0].mxu0
    %v2929 = vadd.f32 %v2880, %v2928
    %v2930 = vpop.f32.mrb[0].mxu0
    %2931 = vmatprep.mubr.bf16.mxu0 %v483
    %2932 = vmatmul.mubr.bf16.gmra.mrb[0].mxu0 %v482
    %v2933 = vpop.f32.mrb[0].mxu0
    %v2934 = vadd.f32 %v2885, %v2933
    %v2935 = vpop.f32.mrb[0].mxu0
    %v2936 = vpop.f32.mrb[0].mxu0
    %v2937 = vadd.f32 %v2888, %v2936
    %v2938 = vpop.f32.mrb[0].mxu0
    %2939 = vdwg.mxu0
    %2940 = vmatprep.subr.bf16.mxu0 0
    %2941 = vmatpush1.bf16.msra.mxu0 %v2164
    %2942 = vmatprep.subr.bf16.mxu0 0
    %2943 = vmatpush1.bf16.msra.mxu0 %v2165
    %2944 = vmatprep.subr.bf16.mxu0 0
    %2945 = vmatpush1.bf16.msra.mxu0 %v2166
    %2946 = vmatprep.subr.bf16.mxu0 0
    %2947 = vmatpush1.bf16.msra.mxu0 %v2167
    %2948 = vmatprep.subr.bf16.mxu0 0
    %2949 = vmatpush1.bf16.msra.mxu0 %v2168
    %2950 = vmatprep.subr.bf16.mxu0 0
    %2951 = vmatpush1.bf16.msra.mxu0 %v2169
    %2952 = vmatprep.subr.bf16.mxu0 0
    %2953 = vmatpush1.bf16.msra.mxu0 %v2170
    %2954 = vmatprep.subr.bf16.mxu0 0
    %2955 = vmatpush1.bf16.msra.mxu0 %v2171
    %2956 = vmatprep.subr.bf16.mxu0 0
    %2957 = vmatpush1.bf16.msra.mxu0 %v2172
    %2958 = vmatprep.subr.bf16.mxu0 0
    %2959 = vmatpush1.bf16.msra.mxu0 %v2173
    %2960 = vmatprep.subr.bf16.mxu0 0
    %2961 = vmatpush1.bf16.msra.mxu0 %v2174
    %2962 = vmatprep.subr.bf16.mxu0 0
    %2963 = vmatpush1.bf16.msra.mxu0 %v2175
    %2964 = vmatprep.subr.bf16.mxu0 0
    %2965 = vmatpush1.bf16.msra.mxu0 %v2176
    %2966 = vmatprep.subr.bf16.mxu0 0
    %2967 = vmatpush1.bf16.msra.mxu0 %v2177
    %2968 = vmatprep.subr.bf16.mxu0 0
    %2969 = vmatpush1.bf16.msra.mxu0 %v2178
    %2970 = vmatprep.subr.bf16.mxu0 0
    %2971 = vmatpush1.bf16.msra.mxu0 %v2179
    %2972 = vmatprep.mubr.bf16.mxu0 %v453
    %2973 = vmatmul.mubr.bf16.gmra.mrb[0].mxu0 %v452
    %v2974 = vpop.f32.mrb[0].mxu0
    %v2975 = vadd.f32 %v2926, %v2974
    %v2976 = vpop.f32.mrb[0].mxu0
    %v2977 = vpop.f32.mrb[0].mxu0
    %v2978 = vadd.f32 %v2929, %v2977
    %v2979 = vpop.f32.mrb[0].mxu0
    %2980 = vmatprep.mubr.bf16.mxu0 %v485
    %2981 = vmatmul.mubr.bf16.gmra.mrb[0].mxu0 %v484
    %v2982 = vpop.f32.mrb[0].mxu0
    %v2983 = vadd.f32 %v2934, %v2982
    %v2984 = vpop.f32.mrb[0].mxu0
    %v2985 = vpop.f32.mrb[0].mxu0
    %v2986 = vadd.f32 %v2937, %v2985
    %v2987 = vpop.f32.mrb[0].mxu0
    %2988 = vdwg.mxu0
    %2989 = vmatprep.subr.bf16.mxu0 0
    %2990 = vmatpush1.bf16.msra.mxu0 %v2180
    %2991 = vmatprep.subr.bf16.mxu0 0
    %2992 = vmatpush1.bf16.msra.mxu0 %v2181
    %2993 = vmatprep.subr.bf16.mxu0 0
    %2994 = vmatpush1.bf16.msra.mxu0 %v2182
    %2995 = vmatprep.subr.bf16.mxu0 0
    %2996 = vmatpush1.bf16.msra.mxu0 %v2183
    %2997 = vmatprep.subr.bf16.mxu0 0
    %2998 = vmatpush1.bf16.msra.mxu0 %v2184
    %2999 = vmatprep.subr.bf16.mxu0 0
    %3000 = vmatpush1.bf16.msra.mxu0 %v2185
    %3001 = vmatprep.subr.bf16.mxu0 0
    %3002 = vmatpush1.bf16.msra.mxu0 %v2186
    %3003 = vmatprep.subr.bf16.mxu0 0
    %3004 = vmatpush1.bf16.msra.mxu0 %v2187
    %3005 = vmatprep.subr.bf16.mxu0 0
    %3006 = vmatpush1.bf16.msra.mxu0 %v2188
    %3007 = vmatprep.subr.bf16.mxu0 0
    %3008 = vmatpush1.bf16.msra.mxu0 %v2189
    %3009 = vmatprep.subr.bf16.mxu0 0
    %3010 = vmatpush1.bf16.msra.mxu0 %v2190
    %3011 = vmatprep.subr.bf16.mxu0 0
    %3012 = vmatpush1.bf16.msra.mxu0 %v2191
    %3013 = vmatprep.subr.bf16.mxu0 0
    %3014 = vmatpush1.bf16.msra.mxu0 %v2192
    %3015 = vmatprep.subr.bf16.mxu0 0
    %3016 = vmatpush1.bf16.msra.mxu0 %v2193
    %3017 = vmatprep.subr.bf16.mxu0 0
    %3018 = vmatpush1.bf16.msra.mxu0 %v2194
    %3019 = vmatprep.subr.bf16.mxu0 0
    %3020 = vmatpush1.bf16.msra.mxu0 %v2195
    %3021 = vmatprep.mubr.bf16.mxu0 %v455
    %3022 = vmatmul.mubr.bf16.gmra.mrb[0].mxu0 %v454
    %v3023 = vpop.f32.mrb[0].mxu0
    %v3024 = vadd.f32 %v2975, %v3023
    %v3025 = vpop.f32.mrb[0].mxu0
    %v3026 = vpop.f32.mrb[0].mxu0
    %v3027 = vadd.f32 %v2978, %v3026
    %v3028 = vpop.f32.mrb[0].mxu0
    %3029 = vmatprep.mubr.bf16.mxu0 %v487
    %3030 = vmatmul.mubr.bf16.gmra.mrb[0].mxu0 %v486
    %v3031 = vpop.f32.mrb[0].mxu0
    %v3032 = vadd.f32 %v2983, %v3031
    %v3033 = vpop.f32.mrb[0].mxu0
    %v3034 = vpop.f32.mrb[0].mxu0
    %v3035 = vadd.f32 %v2986, %v3034
    %v3036 = vpop.f32.mrb[0].mxu0
    %3037 = vdwg.mxu0
    %3038 = vmatprep.subr.bf16.mxu0 0
    %3039 = vmatpush1.bf16.msra.mxu0 %v2196
    %3040 = vmatprep.subr.bf16.mxu0 0
    %3041 = vmatpush1.bf16.msra.mxu0 %v2197
    %3042 = vmatprep.subr.bf16.mxu0 0
    %3043 = vmatpush1.bf16.msra.mxu0 %v2198
    %3044 = vmatprep.subr.bf16.mxu0 0
    %3045 = vmatpush1.bf16.msra.mxu0 %v2199
    %3046 = vmatprep.subr.bf16.mxu0 0
    %3047 = vmatpush1.bf16.msra.mxu0 %v2200
    %3048 = vmatprep.subr.bf16.mxu0 0
    %3049 = vmatpush1.bf16.msra.mxu0 %v2201
    %3050 = vmatprep.subr.bf16.mxu0 0
    %3051 = vmatpush1.bf16.msra.mxu0 %v2202
    %3052 = vmatprep.subr.bf16.mxu0 0
    %3053 = vmatpush1.bf16.msra.mxu0 %v2203
    %3054 = vmatprep.subr.bf16.mxu0 0
    %3055 = vmatpush1.bf16.msra.mxu0 %v2204
    %3056 = vmatprep.subr.bf16.mxu0 0
    %3057 = vmatpush1.bf16.msra.mxu0 %v2205
    %3058 = vmatprep.subr.bf16.mxu0 0
    %3059 = vmatpush1.bf16.msra.mxu0 %v2206
    %3060 = vmatprep.subr.bf16.mxu0 0
    %3061 = vmatpush1.bf16.msra.mxu0 %v2207
    %3062 = vmatprep.subr.bf16.mxu0 0
    %3063 = vmatpush1.bf16.msra.mxu0 %v2208
    %3064 = vmatprep.subr.bf16.mxu0 0
    %3065 = vmatpush1.bf16.msra.mxu0 %v2209
    %3066 = vmatprep.subr.bf16.mxu0 0
    %3067 = vmatpush1.bf16.msra.mxu0 %v2210
    %3068 = vmatprep.subr.bf16.mxu0 0
    %3069 = vmatpush1.bf16.msra.mxu0 %v2211
    %3070 = vmatprep.mubr.bf16.mxu0 %v457
    %3071 = vmatmul.mubr.bf16.gmra.mrb[0].mxu0 %v456
    %v3072 = vpop.f32.mrb[0].mxu0
    %v3073 = vadd.f32 %v3024, %v3072
    %v3074 = vpop.f32.mrb[0].mxu0
    %v3075 = vpop.f32.mrb[0].mxu0
    %v3076 = vadd.f32 %v3027, %v3075
    %v3077 = vpop.f32.mrb[0].mxu0
    %3078 = vmatprep.mubr.bf16.mxu0 %v489
    %3079 = vmatmul.mubr.bf16.gmra.mrb[0].mxu0 %v488
    %v3080 = vpop.f32.mrb[0].mxu0
    %v3081 = vadd.f32 %v3032, %v3080
    %v3082 = vpop.f32.mrb[0].mxu0
    %v3083 = vpop.f32.mrb[0].mxu0
    %v3084 = vadd.f32 %v3035, %v3083
    %v3085 = vpop.f32.mrb[0].mxu0
    %3086 = vdwg.mxu0
    %3087 = vmatprep.subr.bf16.mxu0 0
    %3088 = vmatpush1.bf16.msra.mxu0 %v2212
    %3089 = vmatprep.subr.bf16.mxu0 0
    %3090 = vmatpush1.bf16.msra.mxu0 %v2213
    %3091 = vmatprep.subr.bf16.mxu0 0
    %3092 = vmatpush1.bf16.msra.mxu0 %v2214
    %3093 = vmatprep.subr.bf16.mxu0 0
    %3094 = vmatpush1.bf16.msra.mxu0 %v2215
    %3095 = vmatprep.subr.bf16.mxu0 0
    %3096 = vmatpush1.bf16.msra.mxu0 %v2216
    %3097 = vmatprep.subr.bf16.mxu0 0
    %3098 = vmatpush1.bf16.msra.mxu0 %v2217
    %3099 = vmatprep.subr.bf16.mxu0 0
    %3100 = vmatpush1.bf16.msra.mxu0 %v2218
    %3101 = vmatprep.subr.bf16.mxu0 0
    %3102 = vmatpush1.bf16.msra.mxu0 %v2219
    %3103 = vmatprep.subr.bf16.mxu0 0
    %3104 = vmatpush1.bf16.msra.mxu0 %v2220
    %3105 = vmatprep.subr.bf16.mxu0 0
    %3106 = vmatpush1.bf16.msra.mxu0 %v2221
    %3107 = vmatprep.subr.bf16.mxu0 0
    %3108 = vmatpush1.bf16.msra.mxu0 %v2222
    %3109 = vmatprep.subr.bf16.mxu0 0
    %3110 = vmatpush1.bf16.msra.mxu0 %v2223
    %3111 = vmatprep.subr.bf16.mxu0 0
    %3112 = vmatpush1.bf16.msra.mxu0 %v2224
    %3113 = vmatprep.subr.bf16.mxu0 0
    %3114 = vmatpush1.bf16.msra.mxu0 %v2225
    %3115 = vmatprep.subr.bf16.mxu0 0
    %3116 = vmatpush1.bf16.msra.mxu0 %v2226
    %3117 = vmatprep.subr.bf16.mxu0 0
    %3118 = vmatpush1.bf16.msra.mxu0 %v2227
    %3119 = vmatprep.mubr.bf16.mxu0 %v459
    %3120 = vmatmul.mubr.bf16.gmra.mrb[0].mxu0 %v458
    %v3121 = vpop.f32.mrb[0].mxu0
    %v3122 = vadd.f32 %v3073, %v3121
    %v3123 = vpop.f32.mrb[0].mxu0
    %v3124 = vpop.f32.mrb[0].mxu0
    %v3125 = vadd.f32 %v3076, %v3124
    %v3126 = vpop.f32.mrb[0].mxu0
    %3127 = vmatprep.mubr.bf16.mxu0 %v491
    %3128 = vmatmul.mubr.bf16.gmra.mrb[0].mxu0 %v490
    %v3129 = vpop.f32.mrb[0].mxu0
    %v3130 = vadd.f32 %v3081, %v3129
    %v3131 = vpop.f32.mrb[0].mxu0
    %v3132 = vpop.f32.mrb[0].mxu0
    %v3133 = vadd.f32 %v3084, %v3132
    %v3134 = vpop.f32.mrb[0].mxu0
    %3135 = vdwg.mxu0
    %3136 = vmatprep.subr.bf16.mxu0 0
    %3137 = vmatpush1.bf16.msra.mxu0 %v2228
    %3138 = vmatprep.subr.bf16.mxu0 0
    %3139 = vmatpush1.bf16.msra.mxu0 %v2229
    %3140 = vmatprep.subr.bf16.mxu0 0
    %3141 = vmatpush1.bf16.msra.mxu0 %v2230
    %3142 = vmatprep.subr.bf16.mxu0 0
    %3143 = vmatpush1.bf16.msra.mxu0 %v2231
    %3144 = vmatprep.subr.bf16.mxu0 0
    %3145 = vmatpush1.bf16.msra.mxu0 %v2232
    %3146 = vmatprep.subr.bf16.mxu0 0
    %3147 = vmatpush1.bf16.msra.mxu0 %v2233
    %3148 = vmatprep.subr.bf16.mxu0 0
    %3149 = vmatpush1.bf16.msra.mxu0 %v2234
    %3150 = vmatprep.subr.bf16.mxu0 0
    %3151 = vmatpush1.bf16.msra.mxu0 %v2235
    %3152 = vmatprep.subr.bf16.mxu0 0
    %3153 = vmatpush1.bf16.msra.mxu0 %v2236
    %3154 = vmatprep.subr.bf16.mxu0 0
    %3155 = vmatpush1.bf16.msra.mxu0 %v2237
    %3156 = vmatprep.subr.bf16.mxu0 0
    %3157 = vmatpush1.bf16.msra.mxu0 %v2238
    %3158 = vmatprep.subr.bf16.mxu0 0
    %3159 = vmatpush1.bf16.msra.mxu0 %v2239
    %3160 = vmatprep.subr.bf16.mxu0 0
    %3161 = vmatpush1.bf16.msra.mxu0 %v2240
    %3162 = vmatprep.subr.bf16.mxu0 0
    %3163 = vmatpush1.bf16.msra.mxu0 %v2241
    %3164 = vmatprep.subr.bf16.mxu0 0
    %3165 = vmatpush1.bf16.msra.mxu0 %v2242
    %3166 = vmatprep.subr.bf16.mxu0 0
    %3167 = vmatpush1.bf16.msra.mxu0 %v2243
    %3168 = vmatprep.mubr.bf16.mxu0 %v461
    %3169 = vmatmul.mubr.bf16.gmra.mrb[0].mxu0 %v460
    %v3170 = vpop.f32.mrb[0].mxu0
    %v3171 = vadd.f32 %v3122, %v3170
    %v3172 = vpop.f32.mrb[0].mxu0
    %v3173 = vpop.f32.mrb[0].mxu0
    %v3174 = vadd.f32 %v3125, %v3173
    %v3175 = vpop.f32.mrb[0].mxu0
    %3176 = vmatprep.mubr.bf16.mxu0 %v493
    %3177 = vmatmul.mubr.bf16.gmra.mrb[0].mxu0 %v492
    %v3178 = vpop.f32.mrb[0].mxu0
    %v3179 = vadd.f32 %v3130, %v3178
    %v3180 = vpop.f32.mrb[0].mxu0
    %v3181 = vpop.f32.mrb[0].mxu0
    %v3182 = vadd.f32 %v3133, %v3181
    %v3183 = vpop.f32.mrb[0].mxu0
    %3184 = vdwg.mxu0
    %3185 = vmatprep.subr.bf16.mxu0 0
    %3186 = vmatpush1.bf16.msra.mxu0 %v2244
    %3187 = vmatprep.subr.bf16.mxu0 0
    %3188 = vmatpush1.bf16.msra.mxu0 %v2245
    %3189 = vmatprep.subr.bf16.mxu0 0
    %3190 = vmatpush1.bf16.msra.mxu0 %v2246
    %3191 = vmatprep.subr.bf16.mxu0 0
    %3192 = vmatpush1.bf16.msra.mxu0 %v2247
    %3193 = vmatprep.subr.bf16.mxu0 0
    %3194 = vmatpush1.bf16.msra.mxu0 %v2248
    %3195 = vmatprep.subr.bf16.mxu0 0
    %3196 = vmatpush1.bf16.msra.mxu0 %v2249
    %3197 = vmatprep.subr.bf16.mxu0 0
    %3198 = vmatpush1.bf16.msra.mxu0 %v2250
    %3199 = vmatprep.subr.bf16.mxu0 0
    %3200 = vmatpush1.bf16.msra.mxu0 %v2251
    %3201 = vmatprep.subr.bf16.mxu0 0
    %3202 = vmatpush1.bf16.msra.mxu0 %v2252
    %3203 = vmatprep.subr.bf16.mxu0 0
    %3204 = vmatpush1.bf16.msra.mxu0 %v2253
    %3205 = vmatprep.subr.bf16.mxu0 0
    %3206 = vmatpush1.bf16.msra.mxu0 %v2254
    %3207 = vmatprep.subr.bf16.mxu0 0
    %3208 = vmatpush1.bf16.msra.mxu0 %v2255
    %3209 = vmatprep.subr.bf16.mxu0 0
    %3210 = vmatpush1.bf16.msra.mxu0 %v2256
    %3211 = vmatprep.subr.bf16.mxu0 0
    %3212 = vmatpush1.bf16.msra.mxu0 %v2257
    %3213 = vmatprep.subr.bf16.mxu0 0
    %3214 = vmatpush1.bf16.msra.mxu0 %v2258
    %3215 = vmatprep.subr.bf16.mxu0 0
    %3216 = vmatpush1.bf16.msra.mxu0 %v2259
    %3217 = vmatprep.mubr.bf16.mxu0 %v463
    %3218 = vmatmul.mubr.bf16.gmra.mrb[0].mxu0 %v462
    %v3219 = vpop.f32.mrb[0].mxu0
    %v3220 = vadd.f32 %v3171, %v3219
    %v3221 = vpop.f32.mrb[0].mxu0
    %v3222 = vpop.f32.mrb[0].mxu0
    %v3223 = vadd.f32 %v3174, %v3222
    %v3224 = vpop.f32.mrb[0].mxu0
    %3225 = vmatprep.mubr.bf16.mxu0 %v495
    %3226 = vmatmul.mubr.bf16.gmra.mrb[0].mxu0 %v494
    %v3227 = vpop.f32.mrb[0].mxu0
    %v3228 = vadd.f32 %v3179, %v3227
    %v3229 = vpop.f32.mrb[0].mxu0
    %v3230 = vpop.f32.mrb[0].mxu0
    %v3231 = vadd.f32 %v3182, %v3230
    %v3232 = vpop.f32.mrb[0].mxu0
    %3233 = vdwg.mxu0
    %3234 = vmatprep.subr.bf16.mxu0 0
    %3235 = vmatpush1.bf16.msra.mxu0 %v2260
    %3236 = vmatprep.subr.bf16.mxu0 0
    %3237 = vmatpush1.bf16.msra.mxu0 %v2261
    %3238 = vmatprep.subr.bf16.mxu0 0
    %3239 = vmatpush1.bf16.msra.mxu0 %v2262
    %3240 = vmatprep.subr.bf16.mxu0 0
    %3241 = vmatpush1.bf16.msra.mxu0 %v2263
    %3242 = vmatprep.subr.bf16.mxu0 0
    %3243 = vmatpush1.bf16.msra.mxu0 %v2264
    %3244 = vmatprep.subr.bf16.mxu0 0
    %3245 = vmatpush1.bf16.msra.mxu0 %v2265
    %3246 = vmatprep.subr.bf16.mxu0 0
    %3247 = vmatpush1.bf16.msra.mxu0 %v2266
    %3248 = vmatprep.subr.bf16.mxu0 0
    %3249 = vmatpush1.bf16.msra.mxu0 %v2267
    %3250 = vmatprep.subr.bf16.mxu0 0
    %3251 = vmatpush1.bf16.msra.mxu0 %v2268
    %3252 = vmatprep.subr.bf16.mxu0 0
    %3253 = vmatpush1.bf16.msra.mxu0 %v2269
    %3254 = vmatprep.subr.bf16.mxu0 0
    %3255 = vmatpush1.bf16.msra.mxu0 %v2270
    %3256 = vmatprep.subr.bf16.mxu0 0
    %3257 = vmatpush1.bf16.msra.mxu0 %v2271
    %3258 = vmatprep.subr.bf16.mxu0 0
    %3259 = vmatpush1.bf16.msra.mxu0 %v2272
    %3260 = vmatprep.subr.bf16.mxu0 0
    %3261 = vmatpush1.bf16.msra.mxu0 %v2273
    %3262 = vmatprep.subr.bf16.mxu0 0
    %3263 = vmatpush1.bf16.msra.mxu0 %v2274
    %3264 = vmatprep.subr.bf16.mxu0 0
    %3265 = vmatpush1.bf16.msra.mxu0 %v2275
    %3266 = vmatprep.mubr.bf16.mxu0 %v465
    %3267 = vmatmul.mubr.bf16.gmra.mrb[0].mxu0 %v464
    %v3268 = vpop.f32.mrb[0].mxu0
    %v3269 = vadd.f32 %v3220, %v3268
    %v3270 = vpop.f32.mrb[0].mxu0
    %v3271 = vpop.f32.mrb[0].mxu0
    %v3272 = vadd.f32 %v3223, %v3271
    %v3273 = vpop.f32.mrb[0].mxu0
    %3274 = vmatprep.mubr.bf16.mxu0 %v497
    %3275 = vmatmul.mubr.bf16.gmra.mrb[0].mxu0 %v496
    %v3276 = vpop.f32.mrb[0].mxu0
    %v3277 = vadd.f32 %v3228, %v3276
    %v3278 = vpop.f32.mrb[0].mxu0
    %v3279 = vpop.f32.mrb[0].mxu0
    %v3280 = vadd.f32 %v3231, %v3279
    %v3281 = vpop.f32.mrb[0].mxu0
    %3282 = vdwg.mxu0
    %3283 = vmatprep.subr.bf16.mxu0 0
    %3284 = vmatpush1.bf16.msra.mxu0 %v2276
    %3285 = vmatprep.subr.bf16.mxu0 0
    %3286 = vmatpush1.bf16.msra.mxu0 %v2277
    %3287 = vmatprep.subr.bf16.mxu0 0
    %3288 = vmatpush1.bf16.msra.mxu0 %v2278
    %3289 = vmatprep.subr.bf16.mxu0 0
    %3290 = vmatpush1.bf16.msra.mxu0 %v2279
    %3291 = vmatprep.subr.bf16.mxu0 0
    %3292 = vmatpush1.bf16.msra.mxu0 %v2280
    %3293 = vmatprep.subr.bf16.mxu0 0
    %3294 = vmatpush1.bf16.msra.mxu0 %v2281
    %3295 = vmatprep.subr.bf16.mxu0 0
    %3296 = vmatpush1.bf16.msra.mxu0 %v2282
    %3297 = vmatprep.subr.bf16.mxu0 0
    %3298 = vmatpush1.bf16.msra.mxu0 %v2283
    %3299 = vmatprep.subr.bf16.mxu0 0
    %3300 = vmatpush1.bf16.msra.mxu0 %v2284
    %3301 = vmatprep.subr.bf16.mxu0 0
    %3302 = vmatpush1.bf16.msra.mxu0 %v2285
    %3303 = vmatprep.subr.bf16.mxu0 0
    %3304 = vmatpush1.bf16.msra.mxu0 %v2286
    %3305 = vmatprep.subr.bf16.mxu0 0
    %3306 = vmatpush1.bf16.msra.mxu0 %v2287
    %3307 = vmatprep.subr.bf16.mxu0 0
    %3308 = vmatpush1.bf16.msra.mxu0 %v2288
    %3309 = vmatprep.subr.bf16.mxu0 0
    %3310 = vmatpush1.bf16.msra.mxu0 %v2289
    %3311 = vmatprep.subr.bf16.mxu0 0
    %3312 = vmatpush1.bf16.msra.mxu0 %v2290
    %3313 = vmatprep.subr.bf16.mxu0 0
    %3314 = vmatpush1.bf16.msra.mxu0 %v2291
    %3315 = vmatprep.mubr.bf16.mxu0 %v467
    %3316 = vmatmul.mubr.bf16.gmra.mrb[0].mxu0 %v466
    %v3317 = vpop.f32.mrb[0].mxu0
    %v3318 = vadd.f32 %v3269, %v3317
    %v3319 = vpop.f32.mrb[0].mxu0
    %v3320 = vpop.f32.mrb[0].mxu0
    %v3321 = vadd.f32 %v3272, %v3320
    %v3322 = vpop.f32.mrb[0].mxu0
    %3323 = vmatprep.mubr.bf16.mxu0 %v499
    %3324 = vmatmul.mubr.bf16.gmra.mrb[0].mxu0 %v498
    %v3325 = vpop.f32.mrb[0].mxu0
    %v3326 = vadd.f32 %v3277, %v3325
    %v3327 = vpop.f32.mrb[0].mxu0
    %v3328 = vpop.f32.mrb[0].mxu0
    %v3329 = vadd.f32 %v3280, %v3328
    %v3330 = vpop.f32.mrb[0].mxu0
    %3331 = vdwg.mxu0
    %v3332 = vld [vmem:[%s3] sm:$0xf]
    %v3333 = vld [vmem:[%s3 + $0x4] sm:$0xf]
    %v3334 = vld [vmem:[%s3 + $0x8] sm:$0xf]
    %v3335 = vld [vmem:[%s3 + $0xc] sm:$0xf]
    %v3336 = vpack.c.bf16 %v3321, %v3318
    %v3337 = vpack.c.bf16 %v3329, %v3326
    %v3338 = vld [vmem:[%s4] sm:$0xff]
    %v3339 = vld [vmem:[%s4 + $0x8] sm:$0xff]
    %v3340 = vld [vmem:[%s4 + $0x10] sm:$0xff]
    %v3341 = vld [vmem:[%s4 + $0x18] sm:$0xff]
    %3343 = vset.pattern.permute.xlu0 0
    %3344 = vperm.xlu0 %3343, %v3338
    %v3345 = vpop.permute.xlu0 %3344
    %3348 = vset.pattern.permute.xlu0 0
    %3349 = vperm.xlu0 %3348, %v3339
    %v3350 = vpop.permute.xlu0 %3349
    %3353 = vset.pattern.permute.xlu0 0
    %3354 = vperm.xlu0 %3353, %v3340
    %v3355 = vpop.permute.xlu0 %3354
    %3358 = vset.pattern.permute.xlu0 0
    %3359 = vperm.xlu0 %3358, %v3341
    %v3360 = vpop.permute.xlu0 %3359
    %v3366 = vunpack.c.l.b16 %v3332
    %v3367 = vunpack.c.l.b16 %v3333
    %v3368 = vunpack.c.l.b16 %v3334
    %v3369 = vunpack.c.l.b16 %v3335
    %v3370 = vpack.c.b16 %v3367, %v3366
    %v3371 = vpack.c.b16 %v3369, %v3368
    %vm3372 = vcmask 261120
    %v3374 = vsel %vm3372, %v3370, 0
    %v3377 = vsel %vm3372, %v3371, 0
    %3379 = vmatprep.subr.bf16.mxu0 0
    %3380 = vmatpush1.bf16.msra.mxu0 %v3336
    %3381 = vmatprep.subr.bf16.mxu0 0
    %3382 = vmatpush1.bf16.msra.mxu0 %v3337
    %3383 = vmatprep.subr.bf16.mxu0 0
    %3384 = vmatpush1.bf16.msra.mxu0 0
    %3385 = vmatprep.subr.bf16.mxu0 0
    %3386 = vmatpush1.bf16.msra.mxu0 0
    %3387 = vmatprep.subr.bf16.mxu0 0
    %3388 = vmatpush1.bf16.msra.mxu0 0
    %3389 = vmatprep.subr.bf16.mxu0 0
    %3390 = vmatpush1.bf16.msra.mxu0 0
    %3391 = vmatprep.subr.bf16.mxu0 0
    %3392 = vmatpush1.bf16.msra.mxu0 0
    %3393 = vmatprep.subr.bf16.mxu0 0
    %3394 = vmatpush1.bf16.msra.mxu0 0
    %3395 = vmatprep.subr.bf16.mxu0 0
    %3396 = vmatpush1.bf16.msra.mxu0 0
    %3397 = vmatprep.subr.bf16.mxu0 0
    %3398 = vmatpush1.bf16.msra.mxu0 0
    %3399 = vmatprep.subr.bf16.mxu0 0
    %3400 = vmatpush1.bf16.msra.mxu0 0
    %3401 = vmatprep.subr.bf16.mxu0 0
    %3402 = vmatpush1.bf16.msra.mxu0 0
    %3403 = vmatprep.subr.bf16.mxu0 0
    %3404 = vmatpush1.bf16.msra.mxu0 0
    %3405 = vmatprep.subr.bf16.mxu0 0
    %3406 = vmatpush1.bf16.msra.mxu0 0
    %3407 = vmatprep.subr.bf16.mxu0 0
    %3408 = vmatpush1.bf16.msra.mxu0 0
    %3409 = vmatprep.subr.bf16.mxu0 0
    %3410 = vmatpush1.bf16.msra.mxu0 0
    %3411 = vmatprep.mubr.bf16.mxu0 0
    %3412 = vmatmul.mubr.bf16.gmra.mrb[0].mxu0 %v3374
    %v3413 = vpop.f32.mrb[0].mxu0
    %v3414 = vadd.f32 %v3345, %v3413
    %v3415 = vpop.f32.mrb[0].mxu0
    %v3416 = vpop.f32.mrb[0].mxu0
    %v3417 = vadd.f32 %v3350, %v3416
    %v3418 = vpop.f32.mrb[0].mxu0
    %3419 = vmatprep.mubr.bf16.mxu0 0
    %3420 = vmatmul.mubr.bf16.gmra.mrb[0].mxu0 %v3377
    %v3421 = vpop.f32.mrb[0].mxu0
    %v3422 = vadd.f32 %v3355, %v3421
    %v3423 = vpop.f32.mrb[0].mxu0
    %v3424 = vpop.f32.mrb[0].mxu0
    %v3425 = vadd.f32 %v3360, %v3424
    %v3426 = vpop.f32.mrb[0].mxu0
    %3427 = vdwg.mxu0
    %v3428 = vmax.f32 %v3414, 0.0
    %v3429 = vmax.f32 %v3417, 0.0
    %v3430 = vmax.f32 %v3422, 0.0
    %v3431 = vmax.f32 %v3425, 0.0
    %v3432 = vld [vmem:[#allocation4] sm:$0xff]
    %v3433 = vld [vmem:[#allocation4 + $0x8] sm:$0xff]
    %v3434 = vld [vmem:[#allocation4 + $0x10] sm:$0xff]
    %v3435 = vld [vmem:[#allocation4 + $0x18] sm:$0xff]
    %v3436 = vmul.f32 %v3428, %v3432
    %v3437 = vmul.f32 %v3429, %v3433
    %v3438 = vmul.f32 %v3430, %v3434
    %v3439 = vmul.f32 %v3431, %v3435
    %v3440 = vpack.c.bf16 %v3437, %v3436
    %v3441 = vpack.c.bf16 %v3439, %v3438
    %v3442 = vld [vmem:[#allocation2] sm:$0xff]
    %v3443 = vld [vmem:[#allocation2 + $0x8] sm:$0xff]
    %v3444 = vld [vmem:[#allocation2 + $0x10] sm:$0xff]
    %v3445 = vld [vmem:[#allocation2 + $0x18] sm:$0xff]
    %v3446 = vld [vmem:[#allocation2 + $0x20] sm:$0xff]
    %v3447 = vld [vmem:[#allocation2 + $0x28] sm:$0xff]
    %v3448 = vld [vmem:[#allocation2 + $0x30] sm:$0xff]
    %v3449 = vld [vmem:[#allocation2 + $0x38] sm:$0xff]
    %v3450 = vld [vmem:[#allocation2 + $0x40] sm:$0xff]
    %v3451 = vld [vmem:[#allocation2 + $0x48] sm:$0xff]
    %v3452 = vld [vmem:[#allocation2 + $0x50] sm:$0xff]
    %v3453 = vld [vmem:[#allocation2 + $0x58] sm:$0xff]
    %v3454 = vld [vmem:[#allocation2 + $0x60] sm:$0xff]
    %v3455 = vld [vmem:[#allocation2 + $0x68] sm:$0xff]
    %v3456 = vld [vmem:[#allocation2 + $0x70] sm:$0xff]
    %v3457 = vld [vmem:[#allocation2 + $0x78] sm:$0xff]
    %v3458 = vld [vmem:[#allocation2 + $0x80] sm:$0xff]
    %v3459 = vld [vmem:[#allocation2 + $0x88] sm:$0xff]
    %v3460 = vld [vmem:[#allocation2 + $0x90] sm:$0xff]
    %v3461 = vld [vmem:[#allocation2 + $0x98] sm:$0xff]
    %v3462 = vld [vmem:[#allocation2 + $0xa0] sm:$0xff]
    %v3463 = vld [vmem:[#allocation2 + $0xa8] sm:$0xff]
    %v3464 = vld [vmem:[#allocation2 + $0xb0] sm:$0xff]
    %v3465 = vld [vmem:[#allocation2 + $0xb8] sm:$0xff]
    %v3466 = vld [vmem:[#allocation2 + $0xc0] sm:$0xff]
    %v3467 = vld [vmem:[#allocation2 + $0xc8] sm:$0xff]
    %v3468 = vld [vmem:[#allocation2 + $0xd0] sm:$0xff]
    %v3469 = vld [vmem:[#allocation2 + $0xd8] sm:$0xff]
    %v3470 = vld [vmem:[#allocation2 + $0xe0] sm:$0xff]
    %v3471 = vld [vmem:[#allocation2 + $0xe8] sm:$0xff]
    %v3472 = vld [vmem:[#allocation2 + $0xf0] sm:$0xff]
    %v3473 = vld [vmem:[#allocation2 + $0xf8] sm:$0xff]
    %v3474 = vld [vmem:[#allocation2 + $0x100] sm:$0xff]
    %v3475 = vld [vmem:[#allocation2 + $0x108] sm:$0xff]
    %v3476 = vld [vmem:[#allocation2 + $0x110] sm:$0xff]
    %v3477 = vld [vmem:[#allocation2 + $0x118] sm:$0xff]
    %v3478 = vld [vmem:[#allocation2 + $0x120] sm:$0xff]
    %v3479 = vld [vmem:[#allocation2 + $0x128] sm:$0xff]
    %v3480 = vld [vmem:[#allocation2 + $0x130] sm:$0xff]
    %v3481 = vld [vmem:[#allocation2 + $0x138] sm:$0xff]
    %v3482 = vld [vmem:[#allocation2 + $0x140] sm:$0xff]
    %v3483 = vld [vmem:[#allocation2 + $0x148] sm:$0xff]
    %v3484 = vld [vmem:[#allocation2 + $0x150] sm:$0xff]
    %v3485 = vld [vmem:[#allocation2 + $0x158] sm:$0xff]
    %v3486 = vld [vmem:[#allocation2 + $0x160] sm:$0xff]
    %v3487 = vld [vmem:[#allocation2 + $0x168] sm:$0xff]
    %v3488 = vld [vmem:[#allocation2 + $0x170] sm:$0xff]
    %v3489 = vld [vmem:[#allocation2 + $0x178] sm:$0xff]
    %v3490 = vld [vmem:[#allocation2 + $0x180] sm:$0xff]
    %v3491 = vld [vmem:[#allocation2 + $0x188] sm:$0xff]
    %v3492 = vld [vmem:[#allocation2 + $0x190] sm:$0xff]
    %v3493 = vld [vmem:[#allocation2 + $0x198] sm:$0xff]
    %v3494 = vld [vmem:[#allocation2 + $0x1a0] sm:$0xff]
    %v3495 = vld [vmem:[#allocation2 + $0x1a8] sm:$0xff]
    %v3496 = vld [vmem:[#allocation2 + $0x1b0] sm:$0xff]
    %v3497 = vld [vmem:[#allocation2 + $0x1b8] sm:$0xff]
    %v3498 = vld [vmem:[#allocation2 + $0x1c0] sm:$0xff]
    %v3499 = vld [vmem:[#allocation2 + $0x1c8] sm:$0xff]
    %v3500 = vld [vmem:[#allocation2 + $0x1d0] sm:$0xff]
    %v3501 = vld [vmem:[#allocation2 + $0x1d8] sm:$0xff]
    %v3502 = vld [vmem:[#allocation2 + $0x1e0] sm:$0xff]
    %v3503 = vld [vmem:[#allocation2 + $0x1e8] sm:$0xff]
    %v3504 = vld [vmem:[#allocation2 + $0x1f0] sm:$0xff]
    %v3505 = vld [vmem:[#allocation2 + $0x1f8] sm:$0xff]
    %v3506 = vld [vmem:[#allocation2 + $0x200] sm:$0xff]
    %v3507 = vld [vmem:[#allocation2 + $0x208] sm:$0xff]
    %v3508 = vld [vmem:[#allocation2 + $0x210] sm:$0xff]
    %v3509 = vld [vmem:[#allocation2 + $0x218] sm:$0xff]
    %v3510 = vld [vmem:[#allocation2 + $0x220] sm:$0xff]
    %v3511 = vld [vmem:[#allocation2 + $0x228] sm:$0xff]
    %v3512 = vld [vmem:[#allocation2 + $0x230] sm:$0xff]
    %v3513 = vld [vmem:[#allocation2 + $0x238] sm:$0xff]
    %v3514 = vld [vmem:[#allocation2 + $0x240] sm:$0xff]
    %v3515 = vld [vmem:[#allocation2 + $0x248] sm:$0xff]
    %v3516 = vld [vmem:[#allocation2 + $0x250] sm:$0xff]
    %v3517 = vld [vmem:[#allocation2 + $0x258] sm:$0xff]
    %v3518 = vld [vmem:[#allocation2 + $0x260] sm:$0xff]
    %v3519 = vld [vmem:[#allocation2 + $0x268] sm:$0xff]
    %v3520 = vld [vmem:[#allocation2 + $0x270] sm:$0xff]
    %v3521 = vld [vmem:[#allocation2 + $0x278] sm:$0xff]
    %v3522 = vld [vmem:[#allocation2 + $0x280] sm:$0xff]
    %v3523 = vld [vmem:[#allocation2 + $0x288] sm:$0xff]
    %v3524 = vld [vmem:[#allocation2 + $0x290] sm:$0xff]
    %v3525 = vld [vmem:[#allocation2 + $0x298] sm:$0xff]
    %v3526 = vld [vmem:[#allocation2 + $0x2a0] sm:$0xff]
    %v3527 = vld [vmem:[#allocation2 + $0x2a8] sm:$0xff]
    %v3528 = vld [vmem:[#allocation2 + $0x2b0] sm:$0xff]
    %v3529 = vld [vmem:[#allocation2 + $0x2b8] sm:$0xff]
    %v3530 = vld [vmem:[#allocation2 + $0x2c0] sm:$0xff]
    %v3531 = vld [vmem:[#allocation2 + $0x2c8] sm:$0xff]
    %v3532 = vld [vmem:[#allocation2 + $0x2d0] sm:$0xff]
    %v3533 = vld [vmem:[#allocation2 + $0x2d8] sm:$0xff]
    %v3534 = vld [vmem:[#allocation2 + $0x2e0] sm:$0xff]
    %v3535 = vld [vmem:[#allocation2 + $0x2e8] sm:$0xff]
    %v3536 = vld [vmem:[#allocation2 + $0x2f0] sm:$0xff]
    %v3537 = vld [vmem:[#allocation2 + $0x2f8] sm:$0xff]
    %v3538 = vld [vmem:[#allocation2 + $0x300] sm:$0xff]
    %v3539 = vld [vmem:[#allocation2 + $0x308] sm:$0xff]
    %v3540 = vld [vmem:[#allocation2 + $0x310] sm:$0xff]
    %v3541 = vld [vmem:[#allocation2 + $0x318] sm:$0xff]
    %v3542 = vld [vmem:[#allocation2 + $0x320] sm:$0xff]
    %v3543 = vld [vmem:[#allocation2 + $0x328] sm:$0xff]
    %v3544 = vld [vmem:[#allocation2 + $0x330] sm:$0xff]
    %v3545 = vld [vmem:[#allocation2 + $0x338] sm:$0xff]
    %v3546 = vld [vmem:[#allocation2 + $0x340] sm:$0xff]
    %v3547 = vld [vmem:[#allocation2 + $0x348] sm:$0xff]
    %v3548 = vld [vmem:[#allocation2 + $0x350] sm:$0xff]
    %v3549 = vld [vmem:[#allocation2 + $0x358] sm:$0xff]
    %v3550 = vld [vmem:[#allocation2 + $0x360] sm:$0xff]
    %v3551 = vld [vmem:[#allocation2 + $0x368] sm:$0xff]
    %v3552 = vld [vmem:[#allocation2 + $0x370] sm:$0xff]
    %v3553 = vld [vmem:[#allocation2 + $0x378] sm:$0xff]
    %v3554 = vld [vmem:[#allocation2 + $0x380] sm:$0xff]
    %v3555 = vld [vmem:[#allocation2 + $0x388] sm:$0xff]
    %v3556 = vld [vmem:[#allocation2 + $0x390] sm:$0xff]
    %v3557 = vld [vmem:[#allocation2 + $0x398] sm:$0xff]
    %v3558 = vld [vmem:[#allocation2 + $0x3a0] sm:$0xff]
    %v3559 = vld [vmem:[#allocation2 + $0x3a8] sm:$0xff]
    %v3560 = vld [vmem:[#allocation2 + $0x3b0] sm:$0xff]
    %v3561 = vld [vmem:[#allocation2 + $0x3b8] sm:$0xff]
    %v3562 = vld [vmem:[#allocation2 + $0x3c0] sm:$0xff]
    %v3563 = vld [vmem:[#allocation2 + $0x3c8] sm:$0xff]
    %v3564 = vld [vmem:[#allocation2 + $0x3d0] sm:$0xff]
    %v3565 = vld [vmem:[#allocation2 + $0x3d8] sm:$0xff]
    %v3566 = vld [vmem:[#allocation2 + $0x3e0] sm:$0xff]
    %v3567 = vld [vmem:[#allocation2 + $0x3e8] sm:$0xff]
    %v3568 = vld [vmem:[#allocation2 + $0x3f0] sm:$0xff]
    %v3569 = vld [vmem:[#allocation2 + $0x3f8] sm:$0xff]
    %v3570 = vld [vmem:[#allocation2 + $0x400] sm:$0xff]
    %v3571 = vld [vmem:[#allocation2 + $0x408] sm:$0xff]
    %v3572 = vld [vmem:[#allocation2 + $0x410] sm:$0xff]
    %v3573 = vld [vmem:[#allocation2 + $0x418] sm:$0xff]
    %v3574 = vld [vmem:[#allocation2 + $0x420] sm:$0xff]
    %v3575 = vld [vmem:[#allocation2 + $0x428] sm:$0xff]
    %v3576 = vld [vmem:[#allocation2 + $0x430] sm:$0xff]
    %v3577 = vld [vmem:[#allocation2 + $0x438] sm:$0xff]
    %v3578 = vld [vmem:[#allocation2 + $0x440] sm:$0xff]
    %v3579 = vld [vmem:[#allocation2 + $0x448] sm:$0xff]
    %v3580 = vld [vmem:[#allocation2 + $0x450] sm:$0xff]
    %v3581 = vld [vmem:[#allocation2 + $0x458] sm:$0xff]
    %v3582 = vld [vmem:[#allocation2 + $0x460] sm:$0xff]
    %v3583 = vld [vmem:[#allocation2 + $0x468] sm:$0xff]
    %v3584 = vld [vmem:[#allocation2 + $0x470] sm:$0xff]
    %v3585 = vld [vmem:[#allocation2 + $0x478] sm:$0xff]
    %v3586 = vld [vmem:[#allocation2 + $0x480] sm:$0xff]
    %v3587 = vld [vmem:[#allocation2 + $0x488] sm:$0xff]
    %v3588 = vld [vmem:[#allocation2 + $0x490] sm:$0xff]
    %v3589 = vld [vmem:[#allocation2 + $0x498] sm:$0xff]
    %v3590 = vld [vmem:[#allocation2 + $0x4a0] sm:$0xff]
    %v3591 = vld [vmem:[#allocation2 + $0x4a8] sm:$0xff]
    %v3592 = vld [vmem:[#allocation2 + $0x4b0] sm:$0xff]
    %v3593 = vld [vmem:[#allocation2 + $0x4b8] sm:$0xff]
    %v3594 = vld [vmem:[#allocation2 + $0x4c0] sm:$0xff]
    %v3595 = vld [vmem:[#allocation2 + $0x4c8] sm:$0xff]
    %v3596 = vld [vmem:[#allocation2 + $0x4d0] sm:$0xff]
    %v3597 = vld [vmem:[#allocation2 + $0x4d8] sm:$0xff]
    %v3598 = vld [vmem:[#allocation2 + $0x4e0] sm:$0xff]
    %v3599 = vld [vmem:[#allocation2 + $0x4e8] sm:$0xff]
    %v3600 = vld [vmem:[#allocation2 + $0x4f0] sm:$0xff]
    %v3601 = vld [vmem:[#allocation2 + $0x4f8] sm:$0xff]
    %v3602 = vld [vmem:[#allocation2 + $0x500] sm:$0xff]
    %v3603 = vld [vmem:[#allocation2 + $0x508] sm:$0xff]
    %v3604 = vld [vmem:[#allocation2 + $0x510] sm:$0xff]
    %v3605 = vld [vmem:[#allocation2 + $0x518] sm:$0xff]
    %v3606 = vld [vmem:[#allocation2 + $0x520] sm:$0xff]
    %v3607 = vld [vmem:[#allocation2 + $0x528] sm:$0xff]
    %v3608 = vld [vmem:[#allocation2 + $0x530] sm:$0xff]
    %v3609 = vld [vmem:[#allocation2 + $0x538] sm:$0xff]
    %v3610 = vld [vmem:[#allocation2 + $0x540] sm:$0xff]
    %v3611 = vld [vmem:[#allocation2 + $0x548] sm:$0xff]
    %v3612 = vld [vmem:[#allocation2 + $0x550] sm:$0xff]
    %v3613 = vld [vmem:[#allocation2 + $0x558] sm:$0xff]
    %v3614 = vld [vmem:[#allocation2 + $0x560] sm:$0xff]
    %v3615 = vld [vmem:[#allocation2 + $0x568] sm:$0xff]
    %v3616 = vld [vmem:[#allocation2 + $0x570] sm:$0xff]
    %v3617 = vld [vmem:[#allocation2 + $0x578] sm:$0xff]
    %v3618 = vld [vmem:[#allocation2 + $0x580] sm:$0xff]
    %v3619 = vld [vmem:[#allocation2 + $0x588] sm:$0xff]
    %v3620 = vld [vmem:[#allocation2 + $0x590] sm:$0xff]
    %v3621 = vld [vmem:[#allocation2 + $0x598] sm:$0xff]
    %v3622 = vld [vmem:[#allocation2 + $0x5a0] sm:$0xff]
    %v3623 = vld [vmem:[#allocation2 + $0x5a8] sm:$0xff]
    %v3624 = vld [vmem:[#allocation2 + $0x5b0] sm:$0xff]
    %v3625 = vld [vmem:[#allocation2 + $0x5b8] sm:$0xff]
    %v3626 = vld [vmem:[#allocation2 + $0x5c0] sm:$0xff]
    %v3627 = vld [vmem:[#allocation2 + $0x5c8] sm:$0xff]
    %v3628 = vld [vmem:[#allocation2 + $0x5d0] sm:$0xff]
    %v3629 = vld [vmem:[#allocation2 + $0x5d8] sm:$0xff]
    %v3630 = vld [vmem:[#allocation2 + $0x5e0] sm:$0xff]
    %v3631 = vld [vmem:[#allocation2 + $0x5e8] sm:$0xff]
    %v3632 = vld [vmem:[#allocation2 + $0x5f0] sm:$0xff]
    %v3633 = vld [vmem:[#allocation2 + $0x5f8] sm:$0xff]
    %v3634 = vld [vmem:[#allocation2 + $0x600] sm:$0xff]
    %v3635 = vld [vmem:[#allocation2 + $0x608] sm:$0xff]
    %v3636 = vld [vmem:[#allocation2 + $0x610] sm:$0xff]
    %v3637 = vld [vmem:[#allocation2 + $0x618] sm:$0xff]
    %v3638 = vld [vmem:[#allocation2 + $0x620] sm:$0xff]
    %v3639 = vld [vmem:[#allocation2 + $0x628] sm:$0xff]
    %v3640 = vld [vmem:[#allocation2 + $0x630] sm:$0xff]
    %v3641 = vld [vmem:[#allocation2 + $0x638] sm:$0xff]
    %v3642 = vld [vmem:[#allocation2 + $0x640] sm:$0xff]
    %v3643 = vld [vmem:[#allocation2 + $0x648] sm:$0xff]
    %v3644 = vld [vmem:[#allocation2 + $0x650] sm:$0xff]
    %v3645 = vld [vmem:[#allocation2 + $0x658] sm:$0xff]
    %v3646 = vld [vmem:[#allocation2 + $0x660] sm:$0xff]
    %v3647 = vld [vmem:[#allocation2 + $0x668] sm:$0xff]
    %v3648 = vld [vmem:[#allocation2 + $0x670] sm:$0xff]
    %v3649 = vld [vmem:[#allocation2 + $0x678] sm:$0xff]
    %v3650 = vld [vmem:[#allocation2 + $0x680] sm:$0xff]
    %v3651 = vld [vmem:[#allocation2 + $0x688] sm:$0xff]
    %v3652 = vld [vmem:[#allocation2 + $0x690] sm:$0xff]
    %v3653 = vld [vmem:[#allocation2 + $0x698] sm:$0xff]
    %v3654 = vld [vmem:[#allocation2 + $0x6a0] sm:$0xff]
    %v3655 = vld [vmem:[#allocation2 + $0x6a8] sm:$0xff]
    %v3656 = vld [vmem:[#allocation2 + $0x6b0] sm:$0xff]
    %v3657 = vld [vmem:[#allocation2 + $0x6b8] sm:$0xff]
    %v3658 = vld [vmem:[#allocation2 + $0x6c0] sm:$0xff]
    %v3659 = vld [vmem:[#allocation2 + $0x6c8] sm:$0xff]
    %v3660 = vld [vmem:[#allocation2 + $0x6d0] sm:$0xff]
    %v3661 = vld [vmem:[#allocation2 + $0x6d8] sm:$0xff]
    %v3662 = vld [vmem:[#allocation2 + $0x6e0] sm:$0xff]
    %v3663 = vld [vmem:[#allocation2 + $0x6e8] sm:$0xff]
    %v3664 = vld [vmem:[#allocation2 + $0x6f0] sm:$0xff]
    %v3665 = vld [vmem:[#allocation2 + $0x6f8] sm:$0xff]
    %v3666 = vld [vmem:[#allocation2 + $0x700] sm:$0xff]
    %v3667 = vld [vmem:[#allocation2 + $0x708] sm:$0xff]
    %v3668 = vld [vmem:[#allocation2 + $0x710] sm:$0xff]
    %v3669 = vld [vmem:[#allocation2 + $0x718] sm:$0xff]
    %v3670 = vld [vmem:[#allocation2 + $0x720] sm:$0xff]
    %v3671 = vld [vmem:[#allocation2 + $0x728] sm:$0xff]
    %v3672 = vld [vmem:[#allocation2 + $0x730] sm:$0xff]
    %v3673 = vld [vmem:[#allocation2 + $0x738] sm:$0xff]
    %v3674 = vld [vmem:[#allocation2 + $0x740] sm:$0xff]
    %v3675 = vld [vmem:[#allocation2 + $0x748] sm:$0xff]
    %v3676 = vld [vmem:[#allocation2 + $0x750] sm:$0xff]
    %v3677 = vld [vmem:[#allocation2 + $0x758] sm:$0xff]
    %v3678 = vld [vmem:[#allocation2 + $0x760] sm:$0xff]
    %v3679 = vld [vmem:[#allocation2 + $0x768] sm:$0xff]
    %v3680 = vld [vmem:[#allocation2 + $0x770] sm:$0xff]
    %v3681 = vld [vmem:[#allocation2 + $0x778] sm:$0xff]
    %v3682 = vld [vmem:[#allocation2 + $0x780] sm:$0xff]
    %v3683 = vld [vmem:[#allocation2 + $0x788] sm:$0xff]
    %v3684 = vld [vmem:[#allocation2 + $0x790] sm:$0xff]
    %v3685 = vld [vmem:[#allocation2 + $0x798] sm:$0xff]
    %v3686 = vld [vmem:[#allocation2 + $0x7a0] sm:$0xff]
    %v3687 = vld [vmem:[#allocation2 + $0x7a8] sm:$0xff]
    %v3688 = vld [vmem:[#allocation2 + $0x7b0] sm:$0xff]
    %v3689 = vld [vmem:[#allocation2 + $0x7b8] sm:$0xff]
    %v3690 = vld [vmem:[#allocation2 + $0x7c0] sm:$0xff]
    %v3691 = vld [vmem:[#allocation2 + $0x7c8] sm:$0xff]
    %v3692 = vld [vmem:[#allocation2 + $0x7d0] sm:$0xff]
    %v3693 = vld [vmem:[#allocation2 + $0x7d8] sm:$0xff]
    %v3694 = vld [vmem:[#allocation2 + $0x7e0] sm:$0xff]
    %v3695 = vld [vmem:[#allocation2 + $0x7e8] sm:$0xff]
    %v3696 = vld [vmem:[#allocation2 + $0x7f0] sm:$0xff]
    %v3697 = vld [vmem:[#allocation2 + $0x7f8] sm:$0xff]
    %v3954 = vunpack.c.l.b16 %v3442
    %v3955 = vunpack.c.h.b16 %v3442
    %v3956 = vunpack.c.l.b16 %v3443
    %v3957 = vunpack.c.h.b16 %v3443
    %v3958 = vunpack.c.l.b16 %v3444
    %v3959 = vunpack.c.h.b16 %v3444
    %v3960 = vunpack.c.l.b16 %v3445
    %v3961 = vunpack.c.h.b16 %v3445
    %v3962 = vunpack.c.l.b16 %v3446
    %v3963 = vunpack.c.h.b16 %v3446
    %v3964 = vunpack.c.l.b16 %v3447
    %v3965 = vunpack.c.h.b16 %v3447
    %v3966 = vunpack.c.l.b16 %v3448
    %v3967 = vunpack.c.h.b16 %v3448
    %v3968 = vunpack.c.l.b16 %v3449
    %v3969 = vunpack.c.h.b16 %v3449
    %v3970 = vunpack.c.l.b16 %v3450
    %v3971 = vunpack.c.h.b16 %v3450
    %v3972 = vunpack.c.l.b16 %v3451
    %v3973 = vunpack.c.h.b16 %v3451
    %v3974 = vunpack.c.l.b16 %v3452
    %v3975 = vunpack.c.h.b16 %v3452
    %v3976 = vunpack.c.l.b16 %v3453
    %v3977 = vunpack.c.h.b16 %v3453
    %v3978 = vunpack.c.l.b16 %v3454
    %v3979 = vunpack.c.h.b16 %v3454
    %v3980 = vunpack.c.l.b16 %v3455
    %v3981 = vunpack.c.h.b16 %v3455
    %v3982 = vunpack.c.l.b16 %v3456
    %v3983 = vunpack.c.h.b16 %v3456
    %v3984 = vunpack.c.l.b16 %v3457
    %v3985 = vunpack.c.h.b16 %v3457
    %v3986 = vunpack.c.l.b16 %v3458
    %v3987 = vunpack.c.h.b16 %v3458
    %v3988 = vunpack.c.l.b16 %v3459
    %v3989 = vunpack.c.h.b16 %v3459
    %v3990 = vunpack.c.l.b16 %v3460
    %v3991 = vunpack.c.h.b16 %v3460
    %v3992 = vunpack.c.l.b16 %v3461
    %v3993 = vunpack.c.h.b16 %v3461
    %v3994 = vunpack.c.l.b16 %v3462
    %v3995 = vunpack.c.h.b16 %v3462
    %v3996 = vunpack.c.l.b16 %v3463
    %v3997 = vunpack.c.h.b16 %v3463
    %v3998 = vunpack.c.l.b16 %v3464
    %v3999 = vunpack.c.h.b16 %v3464
    %v4000 = vunpack.c.l.b16 %v3465
    %v4001 = vunpack.c.h.b16 %v3465
    %v4002 = vunpack.c.l.b16 %v3466
    %v4003 = vunpack.c.h.b16 %v3466
    %v4004 = vunpack.c.l.b16 %v3467
    %v4005 = vunpack.c.h.b16 %v3467
    %v4006 = vunpack.c.l.b16 %v3468
    %v4007 = vunpack.c.h.b16 %v3468
    %v4008 = vunpack.c.l.b16 %v3469
    %v4009 = vunpack.c.h.b16 %v3469
    %v4010 = vunpack.c.l.b16 %v3470
    %v4011 = vunpack.c.h.b16 %v3470
    %v4012 = vunpack.c.l.b16 %v3471
    %v4013 = vunpack.c.h.b16 %v3471
    %v4014 = vunpack.c.l.b16 %v3472
    %v4015 = vunpack.c.h.b16 %v3472
    %v4016 = vunpack.c.l.b16 %v3473
    %v4017 = vunpack.c.h.b16 %v3473
    %v4018 = vunpack.c.l.b16 %v3474
    %v4019 = vunpack.c.h.b16 %v3474
    %v4020 = vunpack.c.l.b16 %v3475
    %v4021 = vunpack.c.h.b16 %v3475
    %v4022 = vunpack.c.l.b16 %v3476
    %v4023 = vunpack.c.h.b16 %v3476
    %v4024 = vunpack.c.l.b16 %v3477
    %v4025 = vunpack.c.h.b16 %v3477
    %v4026 = vunpack.c.l.b16 %v3478
    %v4027 = vunpack.c.h.b16 %v3478
    %v4028 = vunpack.c.l.b16 %v3479
    %v4029 = vunpack.c.h.b16 %v3479
    %v4030 = vunpack.c.l.b16 %v3480
    %v4031 = vunpack.c.h.b16 %v3480
    %v4032 = vunpack.c.l.b16 %v3481
    %v4033 = vunpack.c.h.b16 %v3481
    %v4034 = vunpack.c.l.b16 %v3482
    %v4035 = vunpack.c.h.b16 %v3482
    %v4036 = vunpack.c.l.b16 %v3483
    %v4037 = vunpack.c.h.b16 %v3483
    %v4038 = vunpack.c.l.b16 %v3484
    %v4039 = vunpack.c.h.b16 %v3484
    %v4040 = vunpack.c.l.b16 %v3485
    %v4041 = vunpack.c.h.b16 %v3485
    %v4042 = vunpack.c.l.b16 %v3486
    %v4043 = vunpack.c.h.b16 %v3486
    %v4044 = vunpack.c.l.b16 %v3487
    %v4045 = vunpack.c.h.b16 %v3487
    %v4046 = vunpack.c.l.b16 %v3488
    %v4047 = vunpack.c.h.b16 %v3488
    %v4048 = vunpack.c.l.b16 %v3489
    %v4049 = vunpack.c.h.b16 %v3489
    %v4050 = vunpack.c.l.b16 %v3490
    %v4051 = vunpack.c.h.b16 %v3490
    %v4052 = vunpack.c.l.b16 %v3491
    %v4053 = vunpack.c.h.b16 %v3491
    %v4054 = vunpack.c.l.b16 %v3492
    %v4055 = vunpack.c.h.b16 %v3492
    %v4056 = vunpack.c.l.b16 %v3493
    %v4057 = vunpack.c.h.b16 %v3493
    %v4058 = vunpack.c.l.b16 %v3494
    %v4059 = vunpack.c.h.b16 %v3494
    %v4060 = vunpack.c.l.b16 %v3495
    %v4061 = vunpack.c.h.b16 %v3495
    %v4062 = vunpack.c.l.b16 %v3496
    %v4063 = vunpack.c.h.b16 %v3496
    %v4064 = vunpack.c.l.b16 %v3497
    %v4065 = vunpack.c.h.b16 %v3497
    %v4066 = vunpack.c.l.b16 %v3498
    %v4067 = vunpack.c.h.b16 %v3498
    %v4068 = vunpack.c.l.b16 %v3499
    %v4069 = vunpack.c.h.b16 %v3499
    %v4070 = vunpack.c.l.b16 %v3500
    %v4071 = vunpack.c.h.b16 %v3500
    %v4072 = vunpack.c.l.b16 %v3501
    %v4073 = vunpack.c.h.b16 %v3501
    %v4074 = vunpack.c.l.b16 %v3502
    %v4075 = vunpack.c.h.b16 %v3502
    %v4076 = vunpack.c.l.b16 %v3503
    %v4077 = vunpack.c.h.b16 %v3503
    %v4078 = vunpack.c.l.b16 %v3504
    %v4079 = vunpack.c.h.b16 %v3504
    %v4080 = vunpack.c.l.b16 %v3505
    %v4081 = vunpack.c.h.b16 %v3505
    %v4082 = vunpack.c.l.b16 %v3506
    %v4083 = vunpack.c.h.b16 %v3506
    %v4084 = vunpack.c.l.b16 %v3507
    %v4085 = vunpack.c.h.b16 %v3507
    %v4086 = vunpack.c.l.b16 %v3508
    %v4087 = vunpack.c.h.b16 %v3508
    %v4088 = vunpack.c.l.b16 %v3509
    %v4089 = vunpack.c.h.b16 %v3509
    %v4090 = vunpack.c.l.b16 %v3510
    %v4091 = vunpack.c.h.b16 %v3510
    %v4092 = vunpack.c.l.b16 %v3511
    %v4093 = vunpack.c.h.b16 %v3511
    %v4094 = vunpack.c.l.b16 %v3512
    %v4095 = vunpack.c.h.b16 %v3512
    %v4096 = vunpack.c.l.b16 %v3513
    %v4097 = vunpack.c.h.b16 %v3513
    %v4098 = vunpack.c.l.b16 %v3514
    %v4099 = vunpack.c.h.b16 %v3514
    %v4100 = vunpack.c.l.b16 %v3515
    %v4101 = vunpack.c.h.b16 %v3515
    %v4102 = vunpack.c.l.b16 %v3516
    %v4103 = vunpack.c.h.b16 %v3516
    %v4104 = vunpack.c.l.b16 %v3517
    %v4105 = vunpack.c.h.b16 %v3517
    %v4106 = vunpack.c.l.b16 %v3518
    %v4107 = vunpack.c.h.b16 %v3518
    %v4108 = vunpack.c.l.b16 %v3519
    %v4109 = vunpack.c.h.b16 %v3519
    %v4110 = vunpack.c.l.b16 %v3520
    %v4111 = vunpack.c.h.b16 %v3520
    %v4112 = vunpack.c.l.b16 %v3521
    %v4113 = vunpack.c.h.b16 %v3521
    %v4114 = vunpack.c.l.b16 %v3522
    %v4115 = vunpack.c.h.b16 %v3522
    %v4116 = vunpack.c.l.b16 %v3523
    %v4117 = vunpack.c.h.b16 %v3523
    %v4118 = vunpack.c.l.b16 %v3524
    %v4119 = vunpack.c.h.b16 %v3524
    %v4120 = vunpack.c.l.b16 %v3525
    %v4121 = vunpack.c.h.b16 %v3525
    %v4122 = vunpack.c.l.b16 %v3526
    %v4123 = vunpack.c.h.b16 %v3526
    %v4124 = vunpack.c.l.b16 %v3527
    %v4125 = vunpack.c.h.b16 %v3527
    %v4126 = vunpack.c.l.b16 %v3528
    %v4127 = vunpack.c.h.b16 %v3528
    %v4128 = vunpack.c.l.b16 %v3529
    %v4129 = vunpack.c.h.b16 %v3529
    %v4130 = vunpack.c.l.b16 %v3530
    %v4131 = vunpack.c.h.b16 %v3530
    %v4132 = vunpack.c.l.b16 %v3531
    %v4133 = vunpack.c.h.b16 %v3531
    %v4134 = vunpack.c.l.b16 %v3532
    %v4135 = vunpack.c.h.b16 %v3532
    %v4136 = vunpack.c.l.b16 %v3533
    %v4137 = vunpack.c.h.b16 %v3533
    %v4138 = vunpack.c.l.b16 %v3534
    %v4139 = vunpack.c.h.b16 %v3534
    %v4140 = vunpack.c.l.b16 %v3535
    %v4141 = vunpack.c.h.b16 %v3535
    %v4142 = vunpack.c.l.b16 %v3536
    %v4143 = vunpack.c.h.b16 %v3536
    %v4144 = vunpack.c.l.b16 %v3537
    %v4145 = vunpack.c.h.b16 %v3537
    %v4146 = vunpack.c.l.b16 %v3538
    %v4147 = vunpack.c.h.b16 %v3538
    %v4148 = vunpack.c.l.b16 %v3539
    %v4149 = vunpack.c.h.b16 %v3539
    %v4150 = vunpack.c.l.b16 %v3540
    %v4151 = vunpack.c.h.b16 %v3540
    %v4152 = vunpack.c.l.b16 %v3541
    %v4153 = vunpack.c.h.b16 %v3541
    %v4154 = vunpack.c.l.b16 %v3542
    %v4155 = vunpack.c.h.b16 %v3542
    %v4156 = vunpack.c.l.b16 %v3543
    %v4157 = vunpack.c.h.b16 %v3543
    %v4158 = vunpack.c.l.b16 %v3544
    %v4159 = vunpack.c.h.b16 %v3544
    %v4160 = vunpack.c.l.b16 %v3545
    %v4161 = vunpack.c.h.b16 %v3545
    %v4162 = vunpack.c.l.b16 %v3546
    %v4163 = vunpack.c.h.b16 %v3546
    %v4164 = vunpack.c.l.b16 %v3547
    %v4165 = vunpack.c.h.b16 %v3547
    %v4166 = vunpack.c.l.b16 %v3548
    %v4167 = vunpack.c.h.b16 %v3548
    %v4168 = vunpack.c.l.b16 %v3549
    %v4169 = vunpack.c.h.b16 %v3549
    %v4170 = vunpack.c.l.b16 %v3550
    %v4171 = vunpack.c.h.b16 %v3550
    %v4172 = vunpack.c.l.b16 %v3551
    %v4173 = vunpack.c.h.b16 %v3551
    %v4174 = vunpack.c.l.b16 %v3552
    %v4175 = vunpack.c.h.b16 %v3552
    %v4176 = vunpack.c.l.b16 %v3553
    %v4177 = vunpack.c.h.b16 %v3553
    %v4178 = vunpack.c.l.b16 %v3554
    %v4179 = vunpack.c.h.b16 %v3554
    %v4180 = vunpack.c.l.b16 %v3555
    %v4181 = vunpack.c.h.b16 %v3555
    %v4182 = vunpack.c.l.b16 %v3556
    %v4183 = vunpack.c.h.b16 %v3556
    %v4184 = vunpack.c.l.b16 %v3557
    %v4185 = vunpack.c.h.b16 %v3557
    %v4186 = vunpack.c.l.b16 %v3558
    %v4187 = vunpack.c.h.b16 %v3558
    %v4188 = vunpack.c.l.b16 %v3559
    %v4189 = vunpack.c.h.b16 %v3559
    %v4190 = vunpack.c.l.b16 %v3560
    %v4191 = vunpack.c.h.b16 %v3560
    %v4192 = vunpack.c.l.b16 %v3561
    %v4193 = vunpack.c.h.b16 %v3561
    %v4194 = vunpack.c.l.b16 %v3562
    %v4195 = vunpack.c.h.b16 %v3562
    %v4196 = vunpack.c.l.b16 %v3563
    %v4197 = vunpack.c.h.b16 %v3563
    %v4198 = vunpack.c.l.b16 %v3564
    %v4199 = vunpack.c.h.b16 %v3564
    %v4200 = vunpack.c.l.b16 %v3565
    %v4201 = vunpack.c.h.b16 %v3565
    %v4202 = vunpack.c.l.b16 %v3566
    %v4203 = vunpack.c.h.b16 %v3566
    %v4204 = vunpack.c.l.b16 %v3567
    %v4205 = vunpack.c.h.b16 %v3567
    %v4206 = vunpack.c.l.b16 %v3568
    %v4207 = vunpack.c.h.b16 %v3568
    %v4208 = vunpack.c.l.b16 %v3569
    %v4209 = vunpack.c.h.b16 %v3569
    %v4210 = vunpack.c.l.b16 %v3570
    %v4211 = vunpack.c.h.b16 %v3570
    %v4212 = vunpack.c.l.b16 %v3571
    %v4213 = vunpack.c.h.b16 %v3571
    %v4214 = vunpack.c.l.b16 %v3572
    %v4215 = vunpack.c.h.b16 %v3572
    %v4216 = vunpack.c.l.b16 %v3573
    %v4217 = vunpack.c.h.b16 %v3573
    %v4218 = vunpack.c.l.b16 %v3574
    %v4219 = vunpack.c.h.b16 %v3574
    %v4220 = vunpack.c.l.b16 %v3575
    %v4221 = vunpack.c.h.b16 %v3575
    %v4222 = vunpack.c.l.b16 %v3576
    %v4223 = vunpack.c.h.b16 %v3576
    %v4224 = vunpack.c.l.b16 %v3577
    %v4225 = vunpack.c.h.b16 %v3577
    %v4226 = vunpack.c.l.b16 %v3578
    %v4227 = vunpack.c.h.b16 %v3578
    %v4228 = vunpack.c.l.b16 %v3579
    %v4229 = vunpack.c.h.b16 %v3579
    %v4230 = vunpack.c.l.b16 %v3580
    %v4231 = vunpack.c.h.b16 %v3580
    %v4232 = vunpack.c.l.b16 %v3581
    %v4233 = vunpack.c.h.b16 %v3581
    %v4234 = vunpack.c.l.b16 %v3582
    %v4235 = vunpack.c.h.b16 %v3582
    %v4236 = vunpack.c.l.b16 %v3583
    %v4237 = vunpack.c.h.b16 %v3583
    %v4238 = vunpack.c.l.b16 %v3584
    %v4239 = vunpack.c.h.b16 %v3584
    %v4240 = vunpack.c.l.b16 %v3585
    %v4241 = vunpack.c.h.b16 %v3585
    %v4242 = vunpack.c.l.b16 %v3586
    %v4243 = vunpack.c.h.b16 %v3586
    %v4244 = vunpack.c.l.b16 %v3587
    %v4245 = vunpack.c.h.b16 %v3587
    %v4246 = vunpack.c.l.b16 %v3588
    %v4247 = vunpack.c.h.b16 %v3588
    %v4248 = vunpack.c.l.b16 %v3589
    %v4249 = vunpack.c.h.b16 %v3589
    %v4250 = vunpack.c.l.b16 %v3590
    %v4251 = vunpack.c.h.b16 %v3590
    %v4252 = vunpack.c.l.b16 %v3591
    %v4253 = vunpack.c.h.b16 %v3591
    %v4254 = vunpack.c.l.b16 %v3592
    %v4255 = vunpack.c.h.b16 %v3592
    %v4256 = vunpack.c.l.b16 %v3593
    %v4257 = vunpack.c.h.b16 %v3593
    %v4258 = vunpack.c.l.b16 %v3594
    %v4259 = vunpack.c.h.b16 %v3594
    %v4260 = vunpack.c.l.b16 %v3595
    %v4261 = vunpack.c.h.b16 %v3595
    %v4262 = vunpack.c.l.b16 %v3596
    %v4263 = vunpack.c.h.b16 %v3596
    %v4264 = vunpack.c.l.b16 %v3597
    %v4265 = vunpack.c.h.b16 %v3597
    %v4266 = vunpack.c.l.b16 %v3598
    %v4267 = vunpack.c.h.b16 %v3598
    %v4268 = vunpack.c.l.b16 %v3599
    %v4269 = vunpack.c.h.b16 %v3599
    %v4270 = vunpack.c.l.b16 %v3600
    %v4271 = vunpack.c.h.b16 %v3600
    %v4272 = vunpack.c.l.b16 %v3601
    %v4273 = vunpack.c.h.b16 %v3601
    %v4274 = vunpack.c.l.b16 %v3602
    %v4275 = vunpack.c.h.b16 %v3602
    %v4276 = vunpack.c.l.b16 %v3603
    %v4277 = vunpack.c.h.b16 %v3603
    %v4278 = vunpack.c.l.b16 %v3604
    %v4279 = vunpack.c.h.b16 %v3604
    %v4280 = vunpack.c.l.b16 %v3605
    %v4281 = vunpack.c.h.b16 %v3605
    %v4282 = vunpack.c.l.b16 %v3606
    %v4283 = vunpack.c.h.b16 %v3606
    %v4284 = vunpack.c.l.b16 %v3607
    %v4285 = vunpack.c.h.b16 %v3607
    %v4286 = vunpack.c.l.b16 %v3608
    %v4287 = vunpack.c.h.b16 %v3608
    %v4288 = vunpack.c.l.b16 %v3609
    %v4289 = vunpack.c.h.b16 %v3609
    %v4290 = vunpack.c.l.b16 %v3610
    %v4291 = vunpack.c.h.b16 %v3610
    %v4292 = vunpack.c.l.b16 %v3611
    %v4293 = vunpack.c.h.b16 %v3611
    %v4294 = vunpack.c.l.b16 %v3612
    %v4295 = vunpack.c.h.b16 %v3612
    %v4296 = vunpack.c.l.b16 %v3613
    %v4297 = vunpack.c.h.b16 %v3613
    %v4298 = vunpack.c.l.b16 %v3614
    %v4299 = vunpack.c.h.b16 %v3614
    %v4300 = vunpack.c.l.b16 %v3615
    %v4301 = vunpack.c.h.b16 %v3615
    %v4302 = vunpack.c.l.b16 %v3616
    %v4303 = vunpack.c.h.b16 %v3616
    %v4304 = vunpack.c.l.b16 %v3617
    %v4305 = vunpack.c.h.b16 %v3617
    %v4306 = vunpack.c.l.b16 %v3618
    %v4307 = vunpack.c.h.b16 %v3618
    %v4308 = vunpack.c.l.b16 %v3619
    %v4309 = vunpack.c.h.b16 %v3619
    %v4310 = vunpack.c.l.b16 %v3620
    %v4311 = vunpack.c.h.b16 %v3620
    %v4312 = vunpack.c.l.b16 %v3621
    %v4313 = vunpack.c.h.b16 %v3621
    %v4314 = vunpack.c.l.b16 %v3622
    %v4315 = vunpack.c.h.b16 %v3622
    %v4316 = vunpack.c.l.b16 %v3623
    %v4317 = vunpack.c.h.b16 %v3623
    %v4318 = vunpack.c.l.b16 %v3624
    %v4319 = vunpack.c.h.b16 %v3624
    %v4320 = vunpack.c.l.b16 %v3625
    %v4321 = vunpack.c.h.b16 %v3625
    %v4322 = vunpack.c.l.b16 %v3626
    %v4323 = vunpack.c.h.b16 %v3626
    %v4324 = vunpack.c.l.b16 %v3627
    %v4325 = vunpack.c.h.b16 %v3627
    %v4326 = vunpack.c.l.b16 %v3628
    %v4327 = vunpack.c.h.b16 %v3628
    %v4328 = vunpack.c.l.b16 %v3629
    %v4329 = vunpack.c.h.b16 %v3629
    %v4330 = vunpack.c.l.b16 %v3630
    %v4331 = vunpack.c.h.b16 %v3630
    %v4332 = vunpack.c.l.b16 %v3631
    %v4333 = vunpack.c.h.b16 %v3631
    %v4334 = vunpack.c.l.b16 %v3632
    %v4335 = vunpack.c.h.b16 %v3632
    %v4336 = vunpack.c.l.b16 %v3633
    %v4337 = vunpack.c.h.b16 %v3633
    %v4338 = vunpack.c.l.b16 %v3634
    %v4339 = vunpack.c.h.b16 %v3634
    %v4340 = vunpack.c.l.b16 %v3635
    %v4341 = vunpack.c.h.b16 %v3635
    %v4342 = vunpack.c.l.b16 %v3636
    %v4343 = vunpack.c.h.b16 %v3636
    %v4344 = vunpack.c.l.b16 %v3637
    %v4345 = vunpack.c.h.b16 %v3637
    %v4346 = vunpack.c.l.b16 %v3638
    %v4347 = vunpack.c.h.b16 %v3638
    %v4348 = vunpack.c.l.b16 %v3639
    %v4349 = vunpack.c.h.b16 %v3639
    %v4350 = vunpack.c.l.b16 %v3640
    %v4351 = vunpack.c.h.b16 %v3640
    %v4352 = vunpack.c.l.b16 %v3641
    %v4353 = vunpack.c.h.b16 %v3641
    %v4354 = vunpack.c.l.b16 %v3642
    %v4355 = vunpack.c.h.b16 %v3642
    %v4356 = vunpack.c.l.b16 %v3643
    %v4357 = vunpack.c.h.b16 %v3643
    %v4358 = vunpack.c.l.b16 %v3644
    %v4359 = vunpack.c.h.b16 %v3644
    %v4360 = vunpack.c.l.b16 %v3645
    %v4361 = vunpack.c.h.b16 %v3645
    %v4362 = vunpack.c.l.b16 %v3646
    %v4363 = vunpack.c.h.b16 %v3646
    %v4364 = vunpack.c.l.b16 %v3647
    %v4365 = vunpack.c.h.b16 %v3647
    %v4366 = vunpack.c.l.b16 %v3648
    %v4367 = vunpack.c.h.b16 %v3648
    %v4368 = vunpack.c.l.b16 %v3649
    %v4369 = vunpack.c.h.b16 %v3649
    %v4370 = vunpack.c.l.b16 %v3650
    %v4371 = vunpack.c.h.b16 %v3650
    %v4372 = vunpack.c.l.b16 %v3651
    %v4373 = vunpack.c.h.b16 %v3651
    %v4374 = vunpack.c.l.b16 %v3652
    %v4375 = vunpack.c.h.b16 %v3652
    %v4376 = vunpack.c.l.b16 %v3653
    %v4377 = vunpack.c.h.b16 %v3653
    %v4378 = vunpack.c.l.b16 %v3654
    %v4379 = vunpack.c.h.b16 %v3654
    %v4380 = vunpack.c.l.b16 %v3655
    %v4381 = vunpack.c.h.b16 %v3655
    %v4382 = vunpack.c.l.b16 %v3656
    %v4383 = vunpack.c.h.b16 %v3656
    %v4384 = vunpack.c.l.b16 %v3657
    %v4385 = vunpack.c.h.b16 %v3657
    %v4386 = vunpack.c.l.b16 %v3658
    %v4387 = vunpack.c.h.b16 %v3658
    %v4388 = vunpack.c.l.b16 %v3659
    %v4389 = vunpack.c.h.b16 %v3659
    %v4390 = vunpack.c.l.b16 %v3660
    %v4391 = vunpack.c.h.b16 %v3660
    %v4392 = vunpack.c.l.b16 %v3661
    %v4393 = vunpack.c.h.b16 %v3661
    %v4394 = vunpack.c.l.b16 %v3662
    %v4395 = vunpack.c.h.b16 %v3662
    %v4396 = vunpack.c.l.b16 %v3663
    %v4397 = vunpack.c.h.b16 %v3663
    %v4398 = vunpack.c.l.b16 %v3664
    %v4399 = vunpack.c.h.b16 %v3664
    %v4400 = vunpack.c.l.b16 %v3665
    %v4401 = vunpack.c.h.b16 %v3665
    %v4402 = vunpack.c.l.b16 %v3666
    %v4403 = vunpack.c.h.b16 %v3666
    %v4404 = vunpack.c.l.b16 %v3667
    %v4405 = vunpack.c.h.b16 %v3667
    %v4406 = vunpack.c.l.b16 %v3668
    %v4407 = vunpack.c.h.b16 %v3668
    %v4408 = vunpack.c.l.b16 %v3669
    %v4409 = vunpack.c.h.b16 %v3669
    %v4410 = vunpack.c.l.b16 %v3670
    %v4411 = vunpack.c.h.b16 %v3670
    %v4412 = vunpack.c.l.b16 %v3671
    %v4413 = vunpack.c.h.b16 %v3671
    %v4414 = vunpack.c.l.b16 %v3672
    %v4415 = vunpack.c.h.b16 %v3672
    %v4416 = vunpack.c.l.b16 %v3673
    %v4417 = vunpack.c.h.b16 %v3673
    %v4418 = vunpack.c.l.b16 %v3674
    %v4419 = vunpack.c.h.b16 %v3674
    %v4420 = vunpack.c.l.b16 %v3675
    %v4421 = vunpack.c.h.b16 %v3675
    %v4422 = vunpack.c.l.b16 %v3676
    %v4423 = vunpack.c.h.b16 %v3676
    %v4424 = vunpack.c.l.b16 %v3677
    %v4425 = vunpack.c.h.b16 %v3677
    %v4426 = vunpack.c.l.b16 %v3678
    %v4427 = vunpack.c.h.b16 %v3678
    %v4428 = vunpack.c.l.b16 %v3679
    %v4429 = vunpack.c.h.b16 %v3679
    %v4430 = vunpack.c.l.b16 %v3680
    %v4431 = vunpack.c.h.b16 %v3680
    %v4432 = vunpack.c.l.b16 %v3681
    %v4433 = vunpack.c.h.b16 %v3681
    %v4434 = vunpack.c.l.b16 %v3682
    %v4435 = vunpack.c.h.b16 %v3682
    %v4436 = vunpack.c.l.b16 %v3683
    %v4437 = vunpack.c.h.b16 %v3683
    %v4438 = vunpack.c.l.b16 %v3684
    %v4439 = vunpack.c.h.b16 %v3684
    %v4440 = vunpack.c.l.b16 %v3685
    %v4441 = vunpack.c.h.b16 %v3685
    %v4442 = vunpack.c.l.b16 %v3686
    %v4443 = vunpack.c.h.b16 %v3686
    %v4444 = vunpack.c.l.b16 %v3687
    %v4445 = vunpack.c.h.b16 %v3687
    %v4446 = vunpack.c.l.b16 %v3688
    %v4447 = vunpack.c.h.b16 %v3688
    %v4448 = vunpack.c.l.b16 %v3689
    %v4449 = vunpack.c.h.b16 %v3689
    %v4450 = vunpack.c.l.b16 %v3690
    %v4451 = vunpack.c.h.b16 %v3690
    %v4452 = vunpack.c.l.b16 %v3691
    %v4453 = vunpack.c.h.b16 %v3691
    %v4454 = vunpack.c.l.b16 %v3692
    %v4455 = vunpack.c.h.b16 %v3692
    %v4456 = vunpack.c.l.b16 %v3693
    %v4457 = vunpack.c.h.b16 %v3693
    %v4458 = vunpack.c.l.b16 %v3694
    %v4459 = vunpack.c.h.b16 %v3694
    %v4460 = vunpack.c.l.b16 %v3695
    %v4461 = vunpack.c.h.b16 %v3695
    %v4462 = vunpack.c.l.b16 %v3696
    %v4463 = vunpack.c.h.b16 %v3696
    %v4464 = vunpack.c.l.b16 %v3697
    %v4465 = vunpack.c.h.b16 %v3697
    %v4466 = vpack.c.b16 %v3986, %v3954
    %v4467 = vpack.c.b16 %v3987, %v3955
    %v4468 = vpack.c.b16 %v3988, %v3956
    %v4469 = vpack.c.b16 %v3989, %v3957
    %v4470 = vpack.c.b16 %v3990, %v3958
    %v4471 = vpack.c.b16 %v3991, %v3959
    %v4472 = vpack.c.b16 %v3992, %v3960
    %v4473 = vpack.c.b16 %v3993, %v3961
    %v4474 = vpack.c.b16 %v3994, %v3962
    %v4475 = vpack.c.b16 %v3995, %v3963
    %v4476 = vpack.c.b16 %v3996, %v3964
    %v4477 = vpack.c.b16 %v3997, %v3965
    %v4478 = vpack.c.b16 %v3998, %v3966
    %v4479 = vpack.c.b16 %v3999, %v3967
    %v4480 = vpack.c.b16 %v4000, %v3968
    %v4481 = vpack.c.b16 %v4001, %v3969
    %v4482 = vpack.c.b16 %v4002, %v3970
    %v4483 = vpack.c.b16 %v4003, %v3971
    %v4484 = vpack.c.b16 %v4004, %v3972
    %v4485 = vpack.c.b16 %v4005, %v3973
    %v4486 = vpack.c.b16 %v4006, %v3974
    %v4487 = vpack.c.b16 %v4007, %v3975
    %v4488 = vpack.c.b16 %v4008, %v3976
    %v4489 = vpack.c.b16 %v4009, %v3977
    %v4490 = vpack.c.b16 %v4010, %v3978
    %v4491 = vpack.c.b16 %v4011, %v3979
    %v4492 = vpack.c.b16 %v4012, %v3980
    %v4493 = vpack.c.b16 %v4013, %v3981
    %v4494 = vpack.c.b16 %v4014, %v3982
    %v4495 = vpack.c.b16 %v4015, %v3983
    %v4496 = vpack.c.b16 %v4016, %v3984
    %v4497 = vpack.c.b16 %v4017, %v3985
    %v4498 = vpack.c.b16 %v4050, %v4018
    %v4499 = vpack.c.b16 %v4051, %v4019
    %v4500 = vpack.c.b16 %v4052, %v4020
    %v4501 = vpack.c.b16 %v4053, %v4021
    %v4502 = vpack.c.b16 %v4054, %v4022
    %v4503 = vpack.c.b16 %v4055, %v4023
    %v4504 = vpack.c.b16 %v4056, %v4024
    %v4505 = vpack.c.b16 %v4057, %v4025
    %v4506 = vpack.c.b16 %v4058, %v4026
    %v4507 = vpack.c.b16 %v4059, %v4027
    %v4508 = vpack.c.b16 %v4060, %v4028
    %v4509 = vpack.c.b16 %v4061, %v4029
    %v4510 = vpack.c.b16 %v4062, %v4030
    %v4511 = vpack.c.b16 %v4063, %v4031
    %v4512 = vpack.c.b16 %v4064, %v4032
    %v4513 = vpack.c.b16 %v4065, %v4033
    %v4514 = vpack.c.b16 %v4066, %v4034
    %v4515 = vpack.c.b16 %v4067, %v4035
    %v4516 = vpack.c.b16 %v4068, %v4036
    %v4517 = vpack.c.b16 %v4069, %v4037
    %v4518 = vpack.c.b16 %v4070, %v4038
    %v4519 = vpack.c.b16 %v4071, %v4039
    %v4520 = vpack.c.b16 %v4072, %v4040
    %v4521 = vpack.c.b16 %v4073, %v4041
    %v4522 = vpack.c.b16 %v4074, %v4042
    %v4523 = vpack.c.b16 %v4075, %v4043
    %v4524 = vpack.c.b16 %v4076, %v4044
    %v4525 = vpack.c.b16 %v4077, %v4045
    %v4526 = vpack.c.b16 %v4078, %v4046
    %v4527 = vpack.c.b16 %v4079, %v4047
    %v4528 = vpack.c.b16 %v4080, %v4048
    %v4529 = vpack.c.b16 %v4081, %v4049
    %v4530 = vpack.c.b16 %v4114, %v4082
    %v4531 = vpack.c.b16 %v4115, %v4083
    %v4532 = vpack.c.b16 %v4116, %v4084
    %v4533 = vpack.c.b16 %v4117, %v4085
    %v4534 = vpack.c.b16 %v4118, %v4086
    %v4535 = vpack.c.b16 %v4119, %v4087
    %v4536 = vpack.c.b16 %v4120, %v4088
    %v4537 = vpack.c.b16 %v4121, %v4089
    %v4538 = vpack.c.b16 %v4122, %v4090
    %v4539 = vpack.c.b16 %v4123, %v4091
    %v4540 = vpack.c.b16 %v4124, %v4092
    %v4541 = vpack.c.b16 %v4125, %v4093
    %v4542 = vpack.c.b16 %v4126, %v4094
    %v4543 = vpack.c.b16 %v4127, %v4095
    %v4544 = vpack.c.b16 %v4128, %v4096
    %v4545 = vpack.c.b16 %v4129, %v4097
    %v4546 = vpack.c.b16 %v4130, %v4098
    %v4547 = vpack.c.b16 %v4131, %v4099
    %v4548 = vpack.c.b16 %v4132, %v4100
    %v4549 = vpack.c.b16 %v4133, %v4101
    %v4550 = vpack.c.b16 %v4134, %v4102
    %v4551 = vpack.c.b16 %v4135, %v4103
    %v4552 = vpack.c.b16 %v4136, %v4104
    %v4553 = vpack.c.b16 %v4137, %v4105
    %v4554 = vpack.c.b16 %v4138, %v4106
    %v4555 = vpack.c.b16 %v4139, %v4107
    %v4556 = vpack.c.b16 %v4140, %v4108
    %v4557 = vpack.c.b16 %v4141, %v4109
    %v4558 = vpack.c.b16 %v4142, %v4110
    %v4559 = vpack.c.b16 %v4143, %v4111
    %v4560 = vpack.c.b16 %v4144, %v4112
    %v4561 = vpack.c.b16 %v4145, %v4113
    %v4562 = vpack.c.b16 %v4178, %v4146
    %v4563 = vpack.c.b16 %v4179, %v4147
    %v4564 = vpack.c.b16 %v4180, %v4148
    %v4565 = vpack.c.b16 %v4181, %v4149
    %v4566 = vpack.c.b16 %v4182, %v4150
    %v4567 = vpack.c.b16 %v4183, %v4151
    %v4568 = vpack.c.b16 %v4184, %v4152
    %v4569 = vpack.c.b16 %v4185, %v4153
    %v4570 = vpack.c.b16 %v4186, %v4154
    %v4571 = vpack.c.b16 %v4187, %v4155
    %v4572 = vpack.c.b16 %v4188, %v4156
    %v4573 = vpack.c.b16 %v4189, %v4157
    %v4574 = vpack.c.b16 %v4190, %v4158
    %v4575 = vpack.c.b16 %v4191, %v4159
    %v4576 = vpack.c.b16 %v4192, %v4160
    %v4577 = vpack.c.b16 %v4193, %v4161
    %v4578 = vpack.c.b16 %v4194, %v4162
    %v4579 = vpack.c.b16 %v4195, %v4163
    %v4580 = vpack.c.b16 %v4196, %v4164
    %v4581 = vpack.c.b16 %v4197, %v4165
    %v4582 = vpack.c.b16 %v4198, %v4166
    %v4583 = vpack.c.b16 %v4199, %v4167
    %v4584 = vpack.c.b16 %v4200, %v4168
    %v4585 = vpack.c.b16 %v4201, %v4169
    %v4586 = vpack.c.b16 %v4202, %v4170
    %v4587 = vpack.c.b16 %v4203, %v4171
    %v4588 = vpack.c.b16 %v4204, %v4172
    %v4589 = vpack.c.b16 %v4205, %v4173
    %v4590 = vpack.c.b16 %v4206, %v4174
    %v4591 = vpack.c.b16 %v4207, %v4175
    %v4592 = vpack.c.b16 %v4208, %v4176
    %v4593 = vpack.c.b16 %v4209, %v4177
    %v4594 = vpack.c.b16 %v4242, %v4210
    %v4595 = vpack.c.b16 %v4243, %v4211
    %v4596 = vpack.c.b16 %v4244, %v4212
    %v4597 = vpack.c.b16 %v4245, %v4213
    %v4598 = vpack.c.b16 %v4246, %v4214
    %v4599 = vpack.c.b16 %v4247, %v4215
    %v4600 = vpack.c.b16 %v4248, %v4216
    %v4601 = vpack.c.b16 %v4249, %v4217
    %v4602 = vpack.c.b16 %v4250, %v4218
    %v4603 = vpack.c.b16 %v4251, %v4219
    %v4604 = vpack.c.b16 %v4252, %v4220
    %v4605 = vpack.c.b16 %v4253, %v4221
    %v4606 = vpack.c.b16 %v4254, %v4222
    %v4607 = vpack.c.b16 %v4255, %v4223
    %v4608 = vpack.c.b16 %v4256, %v4224
    %v4609 = vpack.c.b16 %v4257, %v4225
    %v4610 = vpack.c.b16 %v4258, %v4226
    %v4611 = vpack.c.b16 %v4259, %v4227
    %v4612 = vpack.c.b16 %v4260, %v4228
    %v4613 = vpack.c.b16 %v4261, %v4229
    %v4614 = vpack.c.b16 %v4262, %v4230
    %v4615 = vpack.c.b16 %v4263, %v4231
    %v4616 = vpack.c.b16 %v4264, %v4232
    %v4617 = vpack.c.b16 %v4265, %v4233
    %v4618 = vpack.c.b16 %v4266, %v4234
    %v4619 = vpack.c.b16 %v4267, %v4235
    %v4620 = vpack.c.b16 %v4268, %v4236
    %v4621 = vpack.c.b16 %v4269, %v4237
    %v4622 = vpack.c.b16 %v4270, %v4238
    %v4623 = vpack.c.b16 %v4271, %v4239
    %v4624 = vpack.c.b16 %v4272, %v4240
    %v4625 = vpack.c.b16 %v4273, %v4241
    %v4626 = vpack.c.b16 %v4306, %v4274
    %v4627 = vpack.c.b16 %v4307, %v4275
    %v4628 = vpack.c.b16 %v4308, %v4276
    %v4629 = vpack.c.b16 %v4309, %v4277
    %v4630 = vpack.c.b16 %v4310, %v4278
    %v4631 = vpack.c.b16 %v4311, %v4279
    %v4632 = vpack.c.b16 %v4312, %v4280
    %v4633 = vpack.c.b16 %v4313, %v4281
    %v4634 = vpack.c.b16 %v4314, %v4282
    %v4635 = vpack.c.b16 %v4315, %v4283
    %v4636 = vpack.c.b16 %v4316, %v4284
    %v4637 = vpack.c.b16 %v4317, %v4285
    %v4638 = vpack.c.b16 %v4318, %v4286
    %v4639 = vpack.c.b16 %v4319, %v4287
    %v4640 = vpack.c.b16 %v4320, %v4288
    %v4641 = vpack.c.b16 %v4321, %v4289
    %v4642 = vpack.c.b16 %v4322, %v4290
    %v4643 = vpack.c.b16 %v4323, %v4291
    %v4644 = vpack.c.b16 %v4324, %v4292
    %v4645 = vpack.c.b16 %v4325, %v4293
    %v4646 = vpack.c.b16 %v4326, %v4294
    %v4647 = vpack.c.b16 %v4327, %v4295
    %v4648 = vpack.c.b16 %v4328, %v4296
    %v4649 = vpack.c.b16 %v4329, %v4297
    %v4650 = vpack.c.b16 %v4330, %v4298
    %v4651 = vpack.c.b16 %v4331, %v4299
    %v4652 = vpack.c.b16 %v4332, %v4300
    %v4653 = vpack.c.b16 %v4333, %v4301
    %v4654 = vpack.c.b16 %v4334, %v4302
    %v4655 = vpack.c.b16 %v4335, %v4303
    %v4656 = vpack.c.b16 %v4336, %v4304
    %v4657 = vpack.c.b16 %v4337, %v4305
    %v4658 = vpack.c.b16 %v4370, %v4338
    %v4659 = vpack.c.b16 %v4371, %v4339
    %v4660 = vpack.c.b16 %v4372, %v4340
    %v4661 = vpack.c.b16 %v4373, %v4341
    %v4662 = vpack.c.b16 %v4374, %v4342
    %v4663 = vpack.c.b16 %v4375, %v4343
    %v4664 = vpack.c.b16 %v4376, %v4344
    %v4665 = vpack.c.b16 %v4377, %v4345
    %v4666 = vpack.c.b16 %v4378, %v4346
    %v4667 = vpack.c.b16 %v4379, %v4347
    %v4668 = vpack.c.b16 %v4380, %v4348
    %v4669 = vpack.c.b16 %v4381, %v4349
    %v4670 = vpack.c.b16 %v4382, %v4350
    %v4671 = vpack.c.b16 %v4383, %v4351
    %v4672 = vpack.c.b16 %v4384, %v4352
    %v4673 = vpack.c.b16 %v4385, %v4353
    %v4674 = vpack.c.b16 %v4386, %v4354
    %v4675 = vpack.c.b16 %v4387, %v4355
    %v4676 = vpack.c.b16 %v4388, %v4356
    %v4677 = vpack.c.b16 %v4389, %v4357
    %v4678 = vpack.c.b16 %v4390, %v4358
    %v4679 = vpack.c.b16 %v4391, %v4359
    %v4680 = vpack.c.b16 %v4392, %v4360
    %v4681 = vpack.c.b16 %v4393, %v4361
    %v4682 = vpack.c.b16 %v4394, %v4362
    %v4683 = vpack.c.b16 %v4395, %v4363
    %v4684 = vpack.c.b16 %v4396, %v4364
    %v4685 = vpack.c.b16 %v4397, %v4365
    %v4686 = vpack.c.b16 %v4398, %v4366
    %v4687 = vpack.c.b16 %v4399, %v4367
    %v4688 = vpack.c.b16 %v4400, %v4368
    %v4689 = vpack.c.b16 %v4401, %v4369
    %v4690 = vpack.c.b16 %v4434, %v4402
    %v4691 = vpack.c.b16 %v4435, %v4403
    %v4692 = vpack.c.b16 %v4436, %v4404
    %v4693 = vpack.c.b16 %v4437, %v4405
    %v4694 = vpack.c.b16 %v4438, %v4406
    %v4695 = vpack.c.b16 %v4439, %v4407
    %v4696 = vpack.c.b16 %v4440, %v4408
    %v4697 = vpack.c.b16 %v4441, %v4409
    %v4698 = vpack.c.b16 %v4442, %v4410
    %v4699 = vpack.c.b16 %v4443, %v4411
    %v4700 = vpack.c.b16 %v4444, %v4412
    %v4701 = vpack.c.b16 %v4445, %v4413
    %v4702 = vpack.c.b16 %v4446, %v4414
    %v4703 = vpack.c.b16 %v4447, %v4415
    %v4704 = vpack.c.b16 %v4448, %v4416
    %v4705 = vpack.c.b16 %v4449, %v4417
    %v4706 = vpack.c.b16 %v4450, %v4418
    %v4707 = vpack.c.b16 %v4451, %v4419
    %v4708 = vpack.c.b16 %v4452, %v4420
    %v4709 = vpack.c.b16 %v4453, %v4421
    %v4710 = vpack.c.b16 %v4454, %v4422
    %v4711 = vpack.c.b16 %v4455, %v4423
    %v4712 = vpack.c.b16 %v4456, %v4424
    %v4713 = vpack.c.b16 %v4457, %v4425
    %v4714 = vpack.c.b16 %v4458, %v4426
    %v4715 = vpack.c.b16 %v4459, %v4427
    %v4716 = vpack.c.b16 %v4460, %v4428
    %v4717 = vpack.c.b16 %v4461, %v4429
    %v4718 = vpack.c.b16 %v4462, %v4430
    %v4719 = vpack.c.b16 %v4463, %v4431
    %v4720 = vpack.c.b16 %v4464, %v4432
    %v4721 = vpack.c.b16 %v4465, %v4433
    %4978 = vmatprep.subr.bf16.mxu0 %v4467
    %4979 = vmatpush1.bf16.msra.mxu0 %v4466
    %4980 = vmatprep.subr.bf16.mxu0 %v4499
    %4981 = vmatpush1.bf16.msra.mxu0 %v4498
    %4982 = vmatprep.subr.bf16.mxu0 %v4531
    %4983 = vmatpush1.bf16.msra.mxu0 %v4530
    %4984 = vmatprep.subr.bf16.mxu0 %v4563
    %4985 = vmatpush1.bf16.msra.mxu0 %v4562
    %4986 = vmatprep.subr.bf16.mxu0 %v4595
    %4987 = vmatpush1.bf16.msra.mxu0 %v4594
    %4988 = vmatprep.subr.bf16.mxu0 %v4627
    %4989 = vmatpush1.bf16.msra.mxu0 %v4626
    %4990 = vmatprep.subr.bf16.mxu0 %v4659
    %4991 = vmatpush1.bf16.msra.mxu0 %v4658
    %4992 = vmatprep.subr.bf16.mxu0 %v4691
    %4993 = vmatpush1.bf16.msra.mxu0 %v4690
    %4994 = vmatprep.subr.bf16.mxu0 0
    %4995 = vmatpush1.bf16.msra.mxu0 0
    %4996 = vmatprep.subr.bf16.mxu0 0
    %4997 = vmatpush1.bf16.msra.mxu0 0
    %4998 = vmatprep.subr.bf16.mxu0 0
    %4999 = vmatpush1.bf16.msra.mxu0 0
    %5000 = vmatprep.subr.bf16.mxu0 0
    %5001 = vmatpush1.bf16.msra.mxu0 0
    %5002 = vmatprep.subr.bf16.mxu0 0
    %5003 = vmatpush1.bf16.msra.mxu0 0
    %5004 = vmatprep.subr.bf16.mxu0 0
    %5005 = vmatpush1.bf16.msra.mxu0 0
    %5006 = vmatprep.subr.bf16.mxu0 0
    %5007 = vmatpush1.bf16.msra.mxu0 0
    %5008 = vmatprep.subr.bf16.mxu0 0
    %5009 = vmatpush1.bf16.msra.mxu0 0
    %5010 = vmatprep.mubr.bf16.mxu0 0
    %5011 = vmatmul.mubr.bf16.gmra.mrb[0].mxu0 %v3440
    %v5012 = vpop.f32.mrb[0].mxu0
    %v5013 = vadd.f32 0.0, %v5012
    %v5014 = vpop.f32.mrb[0].mxu0
    %v5015 = vadd.f32 0.0, %v5014
    %v5016 = vpop.f32.mrb[0].mxu0
    %v5017 = vadd.f32 0.0, %v5016
    %v5018 = vpop.f32.mrb[0].mxu0
    %v5019 = vadd.f32 0.0, %v5018
    %5020 = vmatprep.mubr.bf16.mxu0 0
    %5021 = vmatmul.mubr.bf16.gmra.mrb[0].mxu0 %v3441
    %v5022 = vpop.f32.mrb[0].mxu0
    %v5023 = vadd.f32 0.0, %v5022
    %v5024 = vpop.f32.mrb[0].mxu0
    %v5025 = vadd.f32 0.0, %v5024
    %v5026 = vpop.f32.mrb[0].mxu0
    %v5027 = vadd.f32 0.0, %v5026
    %v5028 = vpop.f32.mrb[0].mxu0
    %v5029 = vadd.f32 0.0, %v5028
    %5030 = vdwg.mxu0
    %5031 = vmatprep.subr.bf16.mxu0 %v4469
    %5032 = vmatpush1.bf16.msra.mxu0 %v4468
    %5033 = vmatprep.subr.bf16.mxu0 %v4501
    %5034 = vmatpush1.bf16.msra.mxu0 %v4500
    %5035 = vmatprep.subr.bf16.mxu0 %v4533
    %5036 = vmatpush1.bf16.msra.mxu0 %v4532
    %5037 = vmatprep.subr.bf16.mxu0 %v4565
    %5038 = vmatpush1.bf16.msra.mxu0 %v4564
    %5039 = vmatprep.subr.bf16.mxu0 %v4597
    %5040 = vmatpush1.bf16.msra.mxu0 %v4596
    %5041 = vmatprep.subr.bf16.mxu0 %v4629
    %5042 = vmatpush1.bf16.msra.mxu0 %v4628
    %5043 = vmatprep.subr.bf16.mxu0 %v4661
    %5044 = vmatpush1.bf16.msra.mxu0 %v4660
    %5045 = vmatprep.subr.bf16.mxu0 %v4693
    %5046 = vmatpush1.bf16.msra.mxu0 %v4692
    %5047 = vmatprep.subr.bf16.mxu0 0
    %5048 = vmatpush1.bf16.msra.mxu0 0
    %5049 = vmatprep.subr.bf16.mxu0 0
    %5050 = vmatpush1.bf16.msra.mxu0 0
    %5051 = vmatprep.subr.bf16.mxu0 0
    %5052 = vmatpush1.bf16.msra.mxu0 0
    %5053 = vmatprep.subr.bf16.mxu0 0
    %5054 = vmatpush1.bf16.msra.mxu0 0
    %5055 = vmatprep.subr.bf16.mxu0 0
    %5056 = vmatpush1.bf16.msra.mxu0 0
    %5057 = vmatprep.subr.bf16.mxu0 0
    %5058 = vmatpush1.bf16.msra.mxu0 0
    %5059 = vmatprep.subr.bf16.mxu0 0
    %5060 = vmatpush1.bf16.msra.mxu0 0
    %5061 = vmatprep.subr.bf16.mxu0 0
    %5062 = vmatpush1.bf16.msra.mxu0 0
    %5063 = vmatprep.mubr.bf16.mxu0 0
    %5064 = vmatmul.mubr.bf16.gmra.mrb[0].mxu0 %v3440
    %v5065 = vpop.f32.mrb[0].mxu0
    %v5066 = vadd.f32 0.0, %v5065
    %v5067 = vpop.f32.mrb[0].mxu0
    %v5068 = vadd.f32 0.0, %v5067
    %v5069 = vpop.f32.mrb[0].mxu0
    %v5070 = vadd.f32 0.0, %v5069
    %v5071 = vpop.f32.mrb[0].mxu0
    %v5072 = vadd.f32 0.0, %v5071
    %5073 = vmatprep.mubr.bf16.mxu0 0
    %5074 = vmatmul.mubr.bf16.gmra.mrb[0].mxu0 %v3441
    %v5075 = vpop.f32.mrb[0].mxu0
    %v5076 = vadd.f32 0.0, %v5075
    %v5077 = vpop.f32.mrb[0].mxu0
    %v5078 = vadd.f32 0.0, %v5077
    %v5079 = vpop.f32.mrb[0].mxu0
    %v5080 = vadd.f32 0.0, %v5079
    %v5081 = vpop.f32.mrb[0].mxu0
    %v5082 = vadd.f32 0.0, %v5081
    %5083 = vdwg.mxu0
    %5084 = vmatprep.subr.bf16.mxu0 %v4471
    %5085 = vmatpush1.bf16.msra.mxu0 %v4470
    %5086 = vmatprep.subr.bf16.mxu0 %v4503
    %5087 = vmatpush1.bf16.msra.mxu0 %v4502
    %5088 = vmatprep.subr.bf16.mxu0 %v4535
    %5089 = vmatpush1.bf16.msra.mxu0 %v4534
    %5090 = vmatprep.subr.bf16.mxu0 %v4567
    %5091 = vmatpush1.bf16.msra.mxu0 %v4566
    %5092 = vmatprep.subr.bf16.mxu0 %v4599
    %5093 = vmatpush1.bf16.msra.mxu0 %v4598
    %5094 = vmatprep.subr.bf16.mxu0 %v4631
    %5095 = vmatpush1.bf16.msra.mxu0 %v4630
    %5096 = vmatprep.subr.bf16.mxu0 %v4663
    %5097 = vmatpush1.bf16.msra.mxu0 %v4662
    %5098 = vmatprep.subr.bf16.mxu0 %v4695
    %5099 = vmatpush1.bf16.msra.mxu0 %v4694
    %5100 = vmatprep.subr.bf16.mxu0 0
    %5101 = vmatpush1.bf16.msra.mxu0 0
    %5102 = vmatprep.subr.bf16.mxu0 0
    %5103 = vmatpush1.bf16.msra.mxu0 0
    %5104 = vmatprep.subr.bf16.mxu0 0
    %5105 = vmatpush1.bf16.msra.mxu0 0
    %5106 = vmatprep.subr.bf16.mxu0 0
    %5107 = vmatpush1.bf16.msra.mxu0 0
    %5108 = vmatprep.subr.bf16.mxu0 0
    %5109 = vmatpush1.bf16.msra.mxu0 0
    %5110 = vmatprep.subr.bf16.mxu0 0
    %5111 = vmatpush1.bf16.msra.mxu0 0
    %5112 = vmatprep.subr.bf16.mxu0 0
    %5113 = vmatpush1.bf16.msra.mxu0 0
    %5114 = vmatprep.subr.bf16.mxu0 0
    %5115 = vmatpush1.bf16.msra.mxu0 0
    %5116 = vmatprep.mubr.bf16.mxu0 0
    %5117 = vmatmul.mubr.bf16.gmra.mrb[0].mxu0 %v3440
    %v5118 = vpop.f32.mrb[0].mxu0
    %v5119 = vadd.f32 0.0, %v5118
    %v5120 = vpop.f32.mrb[0].mxu0
    %v5121 = vadd.f32 0.0, %v5120
    %v5122 = vpop.f32.mrb[0].mxu0
    %v5123 = vadd.f32 0.0, %v5122
    %v5124 = vpop.f32.mrb[0].mxu0
    %v5125 = vadd.f32 0.0, %v5124
    %5126 = vmatprep.mubr.bf16.mxu0 0
    %5127 = vmatmul.mubr.bf16.gmra.mrb[0].mxu0 %v3441
    %v5128 = vpop.f32.mrb[0].mxu0
    %v5129 = vadd.f32 0.0, %v5128
    %v5130 = vpop.f32.mrb[0].mxu0
    %v5131 = vadd.f32 0.0, %v5130
    %v5132 = vpop.f32.mrb[0].mxu0
    %v5133 = vadd.f32 0.0, %v5132
    %v5134 = vpop.f32.mrb[0].mxu0
    %v5135 = vadd.f32 0.0, %v5134
    %5136 = vdwg.mxu0
    %5137 = vmatprep.subr.bf16.mxu0 %v4473
    %5138 = vmatpush1.bf16.msra.mxu0 %v4472
    %5139 = vmatprep.subr.bf16.mxu0 %v4505
    %5140 = vmatpush1.bf16.msra.mxu0 %v4504
    %5141 = vmatprep.subr.bf16.mxu0 %v4537
    %5142 = vmatpush1.bf16.msra.mxu0 %v4536
    %5143 = vmatprep.subr.bf16.mxu0 %v4569
    %5144 = vmatpush1.bf16.msra.mxu0 %v4568
    %5145 = vmatprep.subr.bf16.mxu0 %v4601
    %5146 = vmatpush1.bf16.msra.mxu0 %v4600
    %5147 = vmatprep.subr.bf16.mxu0 %v4633
    %5148 = vmatpush1.bf16.msra.mxu0 %v4632
    %5149 = vmatprep.subr.bf16.mxu0 %v4665
    %5150 = vmatpush1.bf16.msra.mxu0 %v4664
    %5151 = vmatprep.subr.bf16.mxu0 %v4697
    %5152 = vmatpush1.bf16.msra.mxu0 %v4696
    %5153 = vmatprep.subr.bf16.mxu0 0
    %5154 = vmatpush1.bf16.msra.mxu0 0
    %5155 = vmatprep.subr.bf16.mxu0 0
    %5156 = vmatpush1.bf16.msra.mxu0 0
    %5157 = vmatprep.subr.bf16.mxu0 0
    %5158 = vmatpush1.bf16.msra.mxu0 0
    %5159 = vmatprep.subr.bf16.mxu0 0
    %5160 = vmatpush1.bf16.msra.mxu0 0
    %5161 = vmatprep.subr.bf16.mxu0 0
    %5162 = vmatpush1.bf16.msra.mxu0 0
    %5163 = vmatprep.subr.bf16.mxu0 0
    %5164 = vmatpush1.bf16.msra.mxu0 0
    %5165 = vmatprep.subr.bf16.mxu0 0
    %5166 = vmatpush1.bf16.msra.mxu0 0
    %5167 = vmatprep.subr.bf16.mxu0 0
    %5168 = vmatpush1.bf16.msra.mxu0 0
    %5169 = vmatprep.mubr.bf16.mxu0 0
    %5170 = vmatmul.mubr.bf16.gmra.mrb[0].mxu0 %v3440
    %v5171 = vpop.f32.mrb[0].mxu0
    %v5172 = vadd.f32 0.0, %v5171
    %v5173 = vpop.f32.mrb[0].mxu0
    %v5174 = vadd.f32 0.0, %v5173
    %v5175 = vpop.f32.mrb[0].mxu0
    %v5176 = vadd.f32 0.0, %v5175
    %v5177 = vpop.f32.mrb[0].mxu0
    %v5178 = vadd.f32 0.0, %v5177
    %5179 = vmatprep.mubr.bf16.mxu0 0
    %5180 = vmatmul.mubr.bf16.gmra.mrb[0].mxu0 %v3441
    %v5181 = vpop.f32.mrb[0].mxu0
    %v5182 = vadd.f32 0.0, %v5181
    %v5183 = vpop.f32.mrb[0].mxu0
    %v5184 = vadd.f32 0.0, %v5183
    %v5185 = vpop.f32.mrb[0].mxu0
    %v5186 = vadd.f32 0.0, %v5185
    %v5187 = vpop.f32.mrb[0].mxu0
    %v5188 = vadd.f32 0.0, %v5187
    %5189 = vdwg.mxu0
    %5190 = vmatprep.subr.bf16.mxu0 %v4475
    %5191 = vmatpush1.bf16.msra.mxu0 %v4474
    %5192 = vmatprep.subr.bf16.mxu0 %v4507
    %5193 = vmatpush1.bf16.msra.mxu0 %v4506
    %5194 = vmatprep.subr.bf16.mxu0 %v4539
    %5195 = vmatpush1.bf16.msra.mxu0 %v4538
    %5196 = vmatprep.subr.bf16.mxu0 %v4571
    %5197 = vmatpush1.bf16.msra.mxu0 %v4570
    %5198 = vmatprep.subr.bf16.mxu0 %v4603
    %5199 = vmatpush1.bf16.msra.mxu0 %v4602
    %5200 = vmatprep.subr.bf16.mxu0 %v4635
    %5201 = vmatpush1.bf16.msra.mxu0 %v4634
    %5202 = vmatprep.subr.bf16.mxu0 %v4667
    %5203 = vmatpush1.bf16.msra.mxu0 %v4666
    %5204 = vmatprep.subr.bf16.mxu0 %v4699
    %5205 = vmatpush1.bf16.msra.mxu0 %v4698
    %5206 = vmatprep.subr.bf16.mxu0 0
    %5207 = vmatpush1.bf16.msra.mxu0 0
    %5208 = vmatprep.subr.bf16.mxu0 0
    %5209 = vmatpush1.bf16.msra.mxu0 0
    %5210 = vmatprep.subr.bf16.mxu0 0
    %5211 = vmatpush1.bf16.msra.mxu0 0
    %5212 = vmatprep.subr.bf16.mxu0 0
    %5213 = vmatpush1.bf16.msra.mxu0 0
    %5214 = vmatprep.subr.bf16.mxu0 0
    %5215 = vmatpush1.bf16.msra.mxu0 0
    %5216 = vmatprep.subr.bf16.mxu0 0
    %5217 = vmatpush1.bf16.msra.mxu0 0
    %5218 = vmatprep.subr.bf16.mxu0 0
    %5219 = vmatpush1.bf16.msra.mxu0 0
    %5220 = vmatprep.subr.bf16.mxu0 0
    %5221 = vmatpush1.bf16.msra.mxu0 0
    %5222 = vmatprep.mubr.bf16.mxu0 0
    %5223 = vmatmul.mubr.bf16.gmra.mrb[0].mxu0 %v3440
    %v5224 = vpop.f32.mrb[0].mxu0
    %v5225 = vadd.f32 0.0, %v5224
    %v5226 = vpop.f32.mrb[0].mxu0
    %v5227 = vadd.f32 0.0, %v5226
    %v5228 = vpop.f32.mrb[0].mxu0
    %v5229 = vadd.f32 0.0, %v5228
    %v5230 = vpop.f32.mrb[0].mxu0
    %v5231 = vadd.f32 0.0, %v5230
    %5232 = vmatprep.mubr.bf16.mxu0 0
    %5233 = vmatmul.mubr.bf16.gmra.mrb[0].mxu0 %v3441
    %v5234 = vpop.f32.mrb[0].mxu0
    %v5235 = vadd.f32 0.0, %v5234
    %v5236 = vpop.f32.mrb[0].mxu0
    %v5237 = vadd.f32 0.0, %v5236
    %v5238 = vpop.f32.mrb[0].mxu0
    %v5239 = vadd.f32 0.0, %v5238
    %v5240 = vpop.f32.mrb[0].mxu0
    %v5241 = vadd.f32 0.0, %v5240
    %5242 = vdwg.mxu0
    %5243 = vmatprep.subr.bf16.mxu0 %v4477
    %5244 = vmatpush1.bf16.msra.mxu0 %v4476
    %5245 = vmatprep.subr.bf16.mxu0 %v4509
    %5246 = vmatpush1.bf16.msra.mxu0 %v4508
    %5247 = vmatprep.subr.bf16.mxu0 %v4541
    %5248 = vmatpush1.bf16.msra.mxu0 %v4540
    %5249 = vmatprep.subr.bf16.mxu0 %v4573
    %5250 = vmatpush1.bf16.msra.mxu0 %v4572
    %5251 = vmatprep.subr.bf16.mxu0 %v4605
    %5252 = vmatpush1.bf16.msra.mxu0 %v4604
    %5253 = vmatprep.subr.bf16.mxu0 %v4637
    %5254 = vmatpush1.bf16.msra.mxu0 %v4636
    %5255 = vmatprep.subr.bf16.mxu0 %v4669
    %5256 = vmatpush1.bf16.msra.mxu0 %v4668
    %5257 = vmatprep.subr.bf16.mxu0 %v4701
    %5258 = vmatpush1.bf16.msra.mxu0 %v4700
    %5259 = vmatprep.subr.bf16.mxu0 0
    %5260 = vmatpush1.bf16.msra.mxu0 0
    %5261 = vmatprep.subr.bf16.mxu0 0
    %5262 = vmatpush1.bf16.msra.mxu0 0
    %5263 = vmatprep.subr.bf16.mxu0 0
    %5264 = vmatpush1.bf16.msra.mxu0 0
    %5265 = vmatprep.subr.bf16.mxu0 0
    %5266 = vmatpush1.bf16.msra.mxu0 0
    %5267 = vmatprep.subr.bf16.mxu0 0
    %5268 = vmatpush1.bf16.msra.mxu0 0
    %5269 = vmatprep.subr.bf16.mxu0 0
    %5270 = vmatpush1.bf16.msra.mxu0 0
    %5271 = vmatprep.subr.bf16.mxu0 0
    %5272 = vmatpush1.bf16.msra.mxu0 0
    %5273 = vmatprep.subr.bf16.mxu0 0
    %5274 = vmatpush1.bf16.msra.mxu0 0
    %5275 = vmatprep.mubr.bf16.mxu0 0
    %5276 = vmatmul.mubr.bf16.gmra.mrb[0].mxu0 %v3440
    %v5277 = vpop.f32.mrb[0].mxu0
    %v5278 = vadd.f32 0.0, %v5277
    %v5279 = vpop.f32.mrb[0].mxu0
    %v5280 = vadd.f32 0.0, %v5279
    %v5281 = vpop.f32.mrb[0].mxu0
    %v5282 = vadd.f32 0.0, %v5281
    %v5283 = vpop.f32.mrb[0].mxu0
    %v5284 = vadd.f32 0.0, %v5283
    %5285 = vmatprep.mubr.bf16.mxu0 0
    %5286 = vmatmul.mubr.bf16.gmra.mrb[0].mxu0 %v3441
    %v5287 = vpop.f32.mrb[0].mxu0
    %v5288 = vadd.f32 0.0, %v5287
    %v5289 = vpop.f32.mrb[0].mxu0
    %v5290 = vadd.f32 0.0, %v5289
    %v5291 = vpop.f32.mrb[0].mxu0
    %v5292 = vadd.f32 0.0, %v5291
    %v5293 = vpop.f32.mrb[0].mxu0
    %v5294 = vadd.f32 0.0, %v5293
    %5295 = vdwg.mxu0
    %5296 = vmatprep.subr.bf16.mxu0 %v4479
    %5297 = vmatpush1.bf16.msra.mxu0 %v4478
    %5298 = vmatprep.subr.bf16.mxu0 %v4511
    %5299 = vmatpush1.bf16.msra.mxu0 %v4510
    %5300 = vmatprep.subr.bf16.mxu0 %v4543
    %5301 = vmatpush1.bf16.msra.mxu0 %v4542
    %5302 = vmatprep.subr.bf16.mxu0 %v4575
    %5303 = vmatpush1.bf16.msra.mxu0 %v4574
    %5304 = vmatprep.subr.bf16.mxu0 %v4607
    %5305 = vmatpush1.bf16.msra.mxu0 %v4606
    %5306 = vmatprep.subr.bf16.mxu0 %v4639
    %5307 = vmatpush1.bf16.msra.mxu0 %v4638
    %5308 = vmatprep.subr.bf16.mxu0 %v4671
    %5309 = vmatpush1.bf16.msra.mxu0 %v4670
    %5310 = vmatprep.subr.bf16.mxu0 %v4703
    %5311 = vmatpush1.bf16.msra.mxu0 %v4702
    %5312 = vmatprep.subr.bf16.mxu0 0
    %5313 = vmatpush1.bf16.msra.mxu0 0
    %5314 = vmatprep.subr.bf16.mxu0 0
    %5315 = vmatpush1.bf16.msra.mxu0 0
    %5316 = vmatprep.subr.bf16.mxu0 0
    %5317 = vmatpush1.bf16.msra.mxu0 0
    %5318 = vmatprep.subr.bf16.mxu0 0
    %5319 = vmatpush1.bf16.msra.mxu0 0
    %5320 = vmatprep.subr.bf16.mxu0 0
    %5321 = vmatpush1.bf16.msra.mxu0 0
    %5322 = vmatprep.subr.bf16.mxu0 0
    %5323 = vmatpush1.bf16.msra.mxu0 0
    %5324 = vmatprep.subr.bf16.mxu0 0
    %5325 = vmatpush1.bf16.msra.mxu0 0
    %5326 = vmatprep.subr.bf16.mxu0 0
    %5327 = vmatpush1.bf16.msra.mxu0 0
    %5328 = vmatprep.mubr.bf16.mxu0 0
    %5329 = vmatmul.mubr.bf16.gmra.mrb[0].mxu0 %v3440
    %v5330 = vpop.f32.mrb[0].mxu0
    %v5331 = vadd.f32 0.0, %v5330
    %v5332 = vpop.f32.mrb[0].mxu0
    %v5333 = vadd.f32 0.0, %v5332
    %v5334 = vpop.f32.mrb[0].mxu0
    %v5335 = vadd.f32 0.0, %v5334
    %v5336 = vpop.f32.mrb[0].mxu0
    %v5337 = vadd.f32 0.0, %v5336
    %5338 = vmatprep.mubr.bf16.mxu0 0
    %5339 = vmatmul.mubr.bf16.gmra.mrb[0].mxu0 %v3441
    %v5340 = vpop.f32.mrb[0].mxu0
    %v5341 = vadd.f32 0.0, %v5340
    %v5342 = vpop.f32.mrb[0].mxu0
    %v5343 = vadd.f32 0.0, %v5342
    %v5344 = vpop.f32.mrb[0].mxu0
    %v5345 = vadd.f32 0.0, %v5344
    %v5346 = vpop.f32.mrb[0].mxu0
    %v5347 = vadd.f32 0.0, %v5346
    %5348 = vdwg.mxu0
    %5349 = vmatprep.subr.bf16.mxu0 %v4481
    %5350 = vmatpush1.bf16.msra.mxu0 %v4480
    %5351 = vmatprep.subr.bf16.mxu0 %v4513
    %5352 = vmatpush1.bf16.msra.mxu0 %v4512
    %5353 = vmatprep.subr.bf16.mxu0 %v4545
    %5354 = vmatpush1.bf16.msra.mxu0 %v4544
    %5355 = vmatprep.subr.bf16.mxu0 %v4577
    %5356 = vmatpush1.bf16.msra.mxu0 %v4576
    %5357 = vmatprep.subr.bf16.mxu0 %v4609
    %5358 = vmatpush1.bf16.msra.mxu0 %v4608
    %5359 = vmatprep.subr.bf16.mxu0 %v4641
    %5360 = vmatpush1.bf16.msra.mxu0 %v4640
    %5361 = vmatprep.subr.bf16.mxu0 %v4673
    %5362 = vmatpush1.bf16.msra.mxu0 %v4672
    %5363 = vmatprep.subr.bf16.mxu0 %v4705
    %5364 = vmatpush1.bf16.msra.mxu0 %v4704
    %5365 = vmatprep.subr.bf16.mxu0 0
    %5366 = vmatpush1.bf16.msra.mxu0 0
    %5367 = vmatprep.subr.bf16.mxu0 0
    %5368 = vmatpush1.bf16.msra.mxu0 0
    %5369 = vmatprep.subr.bf16.mxu0 0
    %5370 = vmatpush1.bf16.msra.mxu0 0
    %5371 = vmatprep.subr.bf16.mxu0 0
    %5372 = vmatpush1.bf16.msra.mxu0 0
    %5373 = vmatprep.subr.bf16.mxu0 0
    %5374 = vmatpush1.bf16.msra.mxu0 0
    %5375 = vmatprep.subr.bf16.mxu0 0
    %5376 = vmatpush1.bf16.msra.mxu0 0
    %5377 = vmatprep.subr.bf16.mxu0 0
    %5378 = vmatpush1.bf16.msra.mxu0 0
    %5379 = vmatprep.subr.bf16.mxu0 0
    %5380 = vmatpush1.bf16.msra.mxu0 0
    %5381 = vmatprep.mubr.bf16.mxu0 0
    %5382 = vmatmul.mubr.bf16.gmra.mrb[0].mxu0 %v3440
    %v5383 = vpop.f32.mrb[0].mxu0
    %v5384 = vadd.f32 0.0, %v5383
    %v5385 = vpop.f32.mrb[0].mxu0
    %v5386 = vadd.f32 0.0, %v5385
    %v5387 = vpop.f32.mrb[0].mxu0
    %v5388 = vadd.f32 0.0, %v5387
    %v5389 = vpop.f32.mrb[0].mxu0
    %v5390 = vadd.f32 0.0, %v5389
    %5391 = vmatprep.mubr.bf16.mxu0 0
    %5392 = vmatmul.mubr.bf16.gmra.mrb[0].mxu0 %v3441
    %v5393 = vpop.f32.mrb[0].mxu0
    %v5394 = vadd.f32 0.0, %v5393
    %v5395 = vpop.f32.mrb[0].mxu0
    %v5396 = vadd.f32 0.0, %v5395
    %v5397 = vpop.f32.mrb[0].mxu0
    %v5398 = vadd.f32 0.0, %v5397
    %v5399 = vpop.f32.mrb[0].mxu0
    %v5400 = vadd.f32 0.0, %v5399
    %5401 = vdwg.mxu0
    %5402 = vmatprep.subr.bf16.mxu0 %v4483
    %5403 = vmatpush1.bf16.msra.mxu0 %v4482
    %5404 = vmatprep.subr.bf16.mxu0 %v4515
    %5405 = vmatpush1.bf16.msra.mxu0 %v4514
    %5406 = vmatprep.subr.bf16.mxu0 %v4547
    %5407 = vmatpush1.bf16.msra.mxu0 %v4546
    %5408 = vmatprep.subr.bf16.mxu0 %v4579
    %5409 = vmatpush1.bf16.msra.mxu0 %v4578
    %5410 = vmatprep.subr.bf16.mxu0 %v4611
    %5411 = vmatpush1.bf16.msra.mxu0 %v4610
    %5412 = vmatprep.subr.bf16.mxu0 %v4643
    %5413 = vmatpush1.bf16.msra.mxu0 %v4642
    %5414 = vmatprep.subr.bf16.mxu0 %v4675
    %5415 = vmatpush1.bf16.msra.mxu0 %v4674
    %5416 = vmatprep.subr.bf16.mxu0 %v4707
    %5417 = vmatpush1.bf16.msra.mxu0 %v4706
    %5418 = vmatprep.subr.bf16.mxu0 0
    %5419 = vmatpush1.bf16.msra.mxu0 0
    %5420 = vmatprep.subr.bf16.mxu0 0
    %5421 = vmatpush1.bf16.msra.mxu0 0
    %5422 = vmatprep.subr.bf16.mxu0 0
    %5423 = vmatpush1.bf16.msra.mxu0 0
    %5424 = vmatprep.subr.bf16.mxu0 0
    %5425 = vmatpush1.bf16.msra.mxu0 0
    %5426 = vmatprep.subr.bf16.mxu0 0
    %5427 = vmatpush1.bf16.msra.mxu0 0
    %5428 = vmatprep.subr.bf16.mxu0 0
    %5429 = vmatpush1.bf16.msra.mxu0 0
    %5430 = vmatprep.subr.bf16.mxu0 0
    %5431 = vmatpush1.bf16.msra.mxu0 0
    %5432 = vmatprep.subr.bf16.mxu0 0
    %5433 = vmatpush1.bf16.msra.mxu0 0
    %5434 = vmatprep.mubr.bf16.mxu0 0
    %5435 = vmatmul.mubr.bf16.gmra.mrb[0].mxu0 %v3440
    %v5436 = vpop.f32.mrb[0].mxu0
    %v5437 = vadd.f32 0.0, %v5436
    %v5438 = vpop.f32.mrb[0].mxu0
    %v5439 = vadd.f32 0.0, %v5438
    %v5440 = vpop.f32.mrb[0].mxu0
    %v5441 = vadd.f32 0.0, %v5440
    %v5442 = vpop.f32.mrb[0].mxu0
    %v5443 = vadd.f32 0.0, %v5442
    %5444 = vmatprep.mubr.bf16.mxu0 0
    %5445 = vmatmul.mubr.bf16.gmra.mrb[0].mxu0 %v3441
    %v5446 = vpop.f32.mrb[0].mxu0
    %v5447 = vadd.f32 0.0, %v5446
    %v5448 = vpop.f32.mrb[0].mxu0
    %v5449 = vadd.f32 0.0, %v5448
    %v5450 = vpop.f32.mrb[0].mxu0
    %v5451 = vadd.f32 0.0, %v5450
    %v5452 = vpop.f32.mrb[0].mxu0
    %v5453 = vadd.f32 0.0, %v5452
    %5454 = vdwg.mxu0
    %5455 = vmatprep.subr.bf16.mxu0 %v4485
    %5456 = vmatpush1.bf16.msra.mxu0 %v4484
    %5457 = vmatprep.subr.bf16.mxu0 %v4517
    %5458 = vmatpush1.bf16.msra.mxu0 %v4516
    %5459 = vmatprep.subr.bf16.mxu0 %v4549
    %5460 = vmatpush1.bf16.msra.mxu0 %v4548
    %5461 = vmatprep.subr.bf16.mxu0 %v4581
    %5462 = vmatpush1.bf16.msra.mxu0 %v4580
    %5463 = vmatprep.subr.bf16.mxu0 %v4613
    %5464 = vmatpush1.bf16.msra.mxu0 %v4612
    %5465 = vmatprep.subr.bf16.mxu0 %v4645
    %5466 = vmatpush1.bf16.msra.mxu0 %v4644
    %5467 = vmatprep.subr.bf16.mxu0 %v4677
    %5468 = vmatpush1.bf16.msra.mxu0 %v4676
    %5469 = vmatprep.subr.bf16.mxu0 %v4709
    %5470 = vmatpush1.bf16.msra.mxu0 %v4708
    %5471 = vmatprep.subr.bf16.mxu0 0
    %5472 = vmatpush1.bf16.msra.mxu0 0
    %5473 = vmatprep.subr.bf16.mxu0 0
    %5474 = vmatpush1.bf16.msra.mxu0 0
    %5475 = vmatprep.subr.bf16.mxu0 0
    %5476 = vmatpush1.bf16.msra.mxu0 0
    %5477 = vmatprep.subr.bf16.mxu0 0
    %5478 = vmatpush1.bf16.msra.mxu0 0
    %5479 = vmatprep.subr.bf16.mxu0 0
    %5480 = vmatpush1.bf16.msra.mxu0 0
    %5481 = vmatprep.subr.bf16.mxu0 0
    %5482 = vmatpush1.bf16.msra.mxu0 0
    %5483 = vmatprep.subr.bf16.mxu0 0
    %5484 = vmatpush1.bf16.msra.mxu0 0
    %5485 = vmatprep.subr.bf16.mxu0 0
    %5486 = vmatpush1.bf16.msra.mxu0 0
    %5487 = vmatprep.mubr.bf16.mxu0 0
    %5488 = vmatmul.mubr.bf16.gmra.mrb[0].mxu0 %v3440
    %v5489 = vpop.f32.mrb[0].mxu0
    %v5490 = vadd.f32 0.0, %v5489
    %v5491 = vpop.f32.mrb[0].mxu0
    %v5492 = vadd.f32 0.0, %v5491
    %v5493 = vpop.f32.mrb[0].mxu0
    %v5494 = vadd.f32 0.0, %v5493
    %v5495 = vpop.f32.mrb[0].mxu0
    %v5496 = vadd.f32 0.0, %v5495
    %5497 = vmatprep.mubr.bf16.mxu0 0
    %5498 = vmatmul.mubr.bf16.gmra.mrb[0].mxu0 %v3441
    %v5499 = vpop.f32.mrb[0].mxu0
    %v5500 = vadd.f32 0.0, %v5499
    %v5501 = vpop.f32.mrb[0].mxu0
    %v5502 = vadd.f32 0.0, %v5501
    %v5503 = vpop.f32.mrb[0].mxu0
    %v5504 = vadd.f32 0.0, %v5503
    %v5505 = vpop.f32.mrb[0].mxu0
    %v5506 = vadd.f32 0.0, %v5505
    %5507 = vdwg.mxu0
    %5508 = vmatprep.subr.bf16.mxu0 %v4487
    %5509 = vmatpush1.bf16.msra.mxu0 %v4486
    %5510 = vmatprep.subr.bf16.mxu0 %v4519
    %5511 = vmatpush1.bf16.msra.mxu0 %v4518
    %5512 = vmatprep.subr.bf16.mxu0 %v4551
    %5513 = vmatpush1.bf16.msra.mxu0 %v4550
    %5514 = vmatprep.subr.bf16.mxu0 %v4583
    %5515 = vmatpush1.bf16.msra.mxu0 %v4582
    %5516 = vmatprep.subr.bf16.mxu0 %v4615
    %5517 = vmatpush1.bf16.msra.mxu0 %v4614
    %5518 = vmatprep.subr.bf16.mxu0 %v4647
    %5519 = vmatpush1.bf16.msra.mxu0 %v4646
    %5520 = vmatprep.subr.bf16.mxu0 %v4679
    %5521 = vmatpush1.bf16.msra.mxu0 %v4678
    %5522 = vmatprep.subr.bf16.mxu0 %v4711
    %5523 = vmatpush1.bf16.msra.mxu0 %v4710
    %5524 = vmatprep.subr.bf16.mxu0 0
    %5525 = vmatpush1.bf16.msra.mxu0 0
    %5526 = vmatprep.subr.bf16.mxu0 0
    %5527 = vmatpush1.bf16.msra.mxu0 0
    %5528 = vmatprep.subr.bf16.mxu0 0
    %5529 = vmatpush1.bf16.msra.mxu0 0
    %5530 = vmatprep.subr.bf16.mxu0 0
    %5531 = vmatpush1.bf16.msra.mxu0 0
    %5532 = vmatprep.subr.bf16.mxu0 0
    %5533 = vmatpush1.bf16.msra.mxu0 0
    %5534 = vmatprep.subr.bf16.mxu0 0
    %5535 = vmatpush1.bf16.msra.mxu0 0
    %5536 = vmatprep.subr.bf16.mxu0 0
    %5537 = vmatpush1.bf16.msra.mxu0 0
    %5538 = vmatprep.subr.bf16.mxu0 0
    %5539 = vmatpush1.bf16.msra.mxu0 0
    %5540 = vmatprep.mubr.bf16.mxu0 0
    %5541 = vmatmul.mubr.bf16.gmra.mrb[0].mxu0 %v3440
    %v5542 = vpop.f32.mrb[0].mxu0
    %v5543 = vadd.f32 0.0, %v5542
    %v5544 = vpop.f32.mrb[0].mxu0
    %v5545 = vadd.f32 0.0, %v5544
    %v5546 = vpop.f32.mrb[0].mxu0
    %v5547 = vadd.f32 0.0, %v5546
    %v5548 = vpop.f32.mrb[0].mxu0
    %v5549 = vadd.f32 0.0, %v5548
    %5550 = vmatprep.mubr.bf16.mxu0 0
    %5551 = vmatmul.mubr.bf16.gmra.mrb[0].mxu0 %v3441
    %v5552 = vpop.f32.mrb[0].mxu0
    %v5553 = vadd.f32 0.0, %v5552
    %v5554 = vpop.f32.mrb[0].mxu0
    %v5555 = vadd.f32 0.0, %v5554
    %v5556 = vpop.f32.mrb[0].mxu0
    %v5557 = vadd.f32 0.0, %v5556
    %v5558 = vpop.f32.mrb[0].mxu0
    %v5559 = vadd.f32 0.0, %v5558
    %5560 = vdwg.mxu0
    %5561 = vmatprep.subr.bf16.mxu0 %v4489
    %5562 = vmatpush1.bf16.msra.mxu0 %v4488
    %5563 = vmatprep.subr.bf16.mxu0 %v4521
    %5564 = vmatpush1.bf16.msra.mxu0 %v4520
    %5565 = vmatprep.subr.bf16.mxu0 %v4553
    %5566 = vmatpush1.bf16.msra.mxu0 %v4552
    %5567 = vmatprep.subr.bf16.mxu0 %v4585
    %5568 = vmatpush1.bf16.msra.mxu0 %v4584
    %5569 = vmatprep.subr.bf16.mxu0 %v4617
    %5570 = vmatpush1.bf16.msra.mxu0 %v4616
    %5571 = vmatprep.subr.bf16.mxu0 %v4649
    %5572 = vmatpush1.bf16.msra.mxu0 %v4648
    %5573 = vmatprep.subr.bf16.mxu0 %v4681
    %5574 = vmatpush1.bf16.msra.mxu0 %v4680
    %5575 = vmatprep.subr.bf16.mxu0 %v4713
    %5576 = vmatpush1.bf16.msra.mxu0 %v4712
    %5577 = vmatprep.subr.bf16.mxu0 0
    %5578 = vmatpush1.bf16.msra.mxu0 0
    %5579 = vmatprep.subr.bf16.mxu0 0
    %5580 = vmatpush1.bf16.msra.mxu0 0
    %5581 = vmatprep.subr.bf16.mxu0 0
    %5582 = vmatpush1.bf16.msra.mxu0 0
    %5583 = vmatprep.subr.bf16.mxu0 0
    %5584 = vmatpush1.bf16.msra.mxu0 0
    %5585 = vmatprep.subr.bf16.mxu0 0
    %5586 = vmatpush1.bf16.msra.mxu0 0
    %5587 = vmatprep.subr.bf16.mxu0 0
    %5588 = vmatpush1.bf16.msra.mxu0 0
    %5589 = vmatprep.subr.bf16.mxu0 0
    %5590 = vmatpush1.bf16.msra.mxu0 0
    %5591 = vmatprep.subr.bf16.mxu0 0
    %5592 = vmatpush1.bf16.msra.mxu0 0
    %5593 = vmatprep.mubr.bf16.mxu0 0
    %5594 = vmatmul.mubr.bf16.gmra.mrb[0].mxu0 %v3440
    %v5595 = vpop.f32.mrb[0].mxu0
    %v5596 = vadd.f32 0.0, %v5595
    %v5597 = vpop.f32.mrb[0].mxu0
    %v5598 = vadd.f32 0.0, %v5597
    %v5599 = vpop.f32.mrb[0].mxu0
    %v5600 = vadd.f32 0.0, %v5599
    %v5601 = vpop.f32.mrb[0].mxu0
    %v5602 = vadd.f32 0.0, %v5601
    %5603 = vmatprep.mubr.bf16.mxu0 0
    %5604 = vmatmul.mubr.bf16.gmra.mrb[0].mxu0 %v3441
    %v5605 = vpop.f32.mrb[0].mxu0
    %v5606 = vadd.f32 0.0, %v5605
    %v5607 = vpop.f32.mrb[0].mxu0
    %v5608 = vadd.f32 0.0, %v5607
    %v5609 = vpop.f32.mrb[0].mxu0
    %v5610 = vadd.f32 0.0, %v5609
    %v5611 = vpop.f32.mrb[0].mxu0
    %v5612 = vadd.f32 0.0, %v5611
    %5613 = vdwg.mxu0
    %5614 = vmatprep.subr.bf16.mxu0 %v4491
    %5615 = vmatpush1.bf16.msra.mxu0 %v4490
    %5616 = vmatprep.subr.bf16.mxu0 %v4523
    %5617 = vmatpush1.bf16.msra.mxu0 %v4522
    %5618 = vmatprep.subr.bf16.mxu0 %v4555
    %5619 = vmatpush1.bf16.msra.mxu0 %v4554
    %5620 = vmatprep.subr.bf16.mxu0 %v4587
    %5621 = vmatpush1.bf16.msra.mxu0 %v4586
    %5622 = vmatprep.subr.bf16.mxu0 %v4619
    %5623 = vmatpush1.bf16.msra.mxu0 %v4618
    %5624 = vmatprep.subr.bf16.mxu0 %v4651
    %5625 = vmatpush1.bf16.msra.mxu0 %v4650
    %5626 = vmatprep.subr.bf16.mxu0 %v4683
    %5627 = vmatpush1.bf16.msra.mxu0 %v4682
    %5628 = vmatprep.subr.bf16.mxu0 %v4715
    %5629 = vmatpush1.bf16.msra.mxu0 %v4714
    %5630 = vmatprep.subr.bf16.mxu0 0
    %5631 = vmatpush1.bf16.msra.mxu0 0
    %5632 = vmatprep.subr.bf16.mxu0 0
    %5633 = vmatpush1.bf16.msra.mxu0 0
    %5634 = vmatprep.subr.bf16.mxu0 0
    %5635 = vmatpush1.bf16.msra.mxu0 0
    %5636 = vmatprep.subr.bf16.mxu0 0
    %5637 = vmatpush1.bf16.msra.mxu0 0
    %5638 = vmatprep.subr.bf16.mxu0 0
    %5639 = vmatpush1.bf16.msra.mxu0 0
    %5640 = vmatprep.subr.bf16.mxu0 0
    %5641 = vmatpush1.bf16.msra.mxu0 0
    %5642 = vmatprep.subr.bf16.mxu0 0
    %5643 = vmatpush1.bf16.msra.mxu0 0
    %5644 = vmatprep.subr.bf16.mxu0 0
    %5645 = vmatpush1.bf16.msra.mxu0 0
    %5646 = vmatprep.mubr.bf16.mxu0 0
    %5647 = vmatmul.mubr.bf16.gmra.mrb[0].mxu0 %v3440
    %v5648 = vpop.f32.mrb[0].mxu0
    %v5649 = vadd.f32 0.0, %v5648
    %v5650 = vpop.f32.mrb[0].mxu0
    %v5651 = vadd.f32 0.0, %v5650
    %v5652 = vpop.f32.mrb[0].mxu0
    %v5653 = vadd.f32 0.0, %v5652
    %v5654 = vpop.f32.mrb[0].mxu0
    %v5655 = vadd.f32 0.0, %v5654
    %5656 = vmatprep.mubr.bf16.mxu0 0
    %5657 = vmatmul.mubr.bf16.gmra.mrb[0].mxu0 %v3441
    %v5658 = vpop.f32.mrb[0].mxu0
    %v5659 = vadd.f32 0.0, %v5658
    %v5660 = vpop.f32.mrb[0].mxu0
    %v5661 = vadd.f32 0.0, %v5660
    %v5662 = vpop.f32.mrb[0].mxu0
    %v5663 = vadd.f32 0.0, %v5662
    %v5664 = vpop.f32.mrb[0].mxu0
    %v5665 = vadd.f32 0.0, %v5664
    %5666 = vdwg.mxu0
    %5667 = vmatprep.subr.bf16.mxu0 %v4493
    %5668 = vmatpush1.bf16.msra.mxu0 %v4492
    %5669 = vmatprep.subr.bf16.mxu0 %v4525
    %5670 = vmatpush1.bf16.msra.mxu0 %v4524
    %5671 = vmatprep.subr.bf16.mxu0 %v4557
    %5672 = vmatpush1.bf16.msra.mxu0 %v4556
    %5673 = vmatprep.subr.bf16.mxu0 %v4589
    %5674 = vmatpush1.bf16.msra.mxu0 %v4588
    %5675 = vmatprep.subr.bf16.mxu0 %v4621
    %5676 = vmatpush1.bf16.msra.mxu0 %v4620
    %5677 = vmatprep.subr.bf16.mxu0 %v4653
    %5678 = vmatpush1.bf16.msra.mxu0 %v4652
    %5679 = vmatprep.subr.bf16.mxu0 %v4685
    %5680 = vmatpush1.bf16.msra.mxu0 %v4684
    %5681 = vmatprep.subr.bf16.mxu0 %v4717
    %5682 = vmatpush1.bf16.msra.mxu0 %v4716
    %5683 = vmatprep.subr.bf16.mxu0 0
    %5684 = vmatpush1.bf16.msra.mxu0 0
    %5685 = vmatprep.subr.bf16.mxu0 0
    %5686 = vmatpush1.bf16.msra.mxu0 0
    %5687 = vmatprep.subr.bf16.mxu0 0
    %5688 = vmatpush1.bf16.msra.mxu0 0
    %5689 = vmatprep.subr.bf16.mxu0 0
    %5690 = vmatpush1.bf16.msra.mxu0 0
    %5691 = vmatprep.subr.bf16.mxu0 0
    %5692 = vmatpush1.bf16.msra.mxu0 0
    %5693 = vmatprep.subr.bf16.mxu0 0
    %5694 = vmatpush1.bf16.msra.mxu0 0
    %5695 = vmatprep.subr.bf16.mxu0 0
    %5696 = vmatpush1.bf16.msra.mxu0 0
    %5697 = vmatprep.subr.bf16.mxu0 0
    %5698 = vmatpush1.bf16.msra.mxu0 0
    %5699 = vmatprep.mubr.bf16.mxu0 0
    %5700 = vmatmul.mubr.bf16.gmra.mrb[0].mxu0 %v3440
    %v5701 = vpop.f32.mrb[0].mxu0
    %v5702 = vadd.f32 0.0, %v5701
    %v5703 = vpop.f32.mrb[0].mxu0
    %v5704 = vadd.f32 0.0, %v5703
    %v5705 = vpop.f32.mrb[0].mxu0
    %v5706 = vadd.f32 0.0, %v5705
    %v5707 = vpop.f32.mrb[0].mxu0
    %v5708 = vadd.f32 0.0, %v5707
    %5709 = vmatprep.mubr.bf16.mxu0 0
    %5710 = vmatmul.mubr.bf16.gmra.mrb[0].mxu0 %v3441
    %v5711 = vpop.f32.mrb[0].mxu0
    %v5712 = vadd.f32 0.0, %v5711
    %v5713 = vpop.f32.mrb[0].mxu0
    %v5714 = vadd.f32 0.0, %v5713
    %v5715 = vpop.f32.mrb[0].mxu0
    %v5716 = vadd.f32 0.0, %v5715
    %v5717 = vpop.f32.mrb[0].mxu0
    %v5718 = vadd.f32 0.0, %v5717
    %5719 = vdwg.mxu0
    %5720 = vmatprep.subr.bf16.mxu0 %v4495
    %5721 = vmatpush1.bf16.msra.mxu0 %v4494
    %5722 = vmatprep.subr.bf16.mxu0 %v4527
    %5723 = vmatpush1.bf16.msra.mxu0 %v4526
    %5724 = vmatprep.subr.bf16.mxu0 %v4559
    %5725 = vmatpush1.bf16.msra.mxu0 %v4558
    %5726 = vmatprep.subr.bf16.mxu0 %v4591
    %5727 = vmatpush1.bf16.msra.mxu0 %v4590
    %5728 = vmatprep.subr.bf16.mxu0 %v4623
    %5729 = vmatpush1.bf16.msra.mxu0 %v4622
    %5730 = vmatprep.subr.bf16.mxu0 %v4655
    %5731 = vmatpush1.bf16.msra.mxu0 %v4654
    %5732 = vmatprep.subr.bf16.mxu0 %v4687
    %5733 = vmatpush1.bf16.msra.mxu0 %v4686
    %5734 = vmatprep.subr.bf16.mxu0 %v4719
    %5735 = vmatpush1.bf16.msra.mxu0 %v4718
    %5736 = vmatprep.subr.bf16.mxu0 0
    %5737 = vmatpush1.bf16.msra.mxu0 0
    %5738 = vmatprep.subr.bf16.mxu0 0
    %5739 = vmatpush1.bf16.msra.mxu0 0
    %5740 = vmatprep.subr.bf16.mxu0 0
    %5741 = vmatpush1.bf16.msra.mxu0 0
    %5742 = vmatprep.subr.bf16.mxu0 0
    %5743 = vmatpush1.bf16.msra.mxu0 0
    %5744 = vmatprep.subr.bf16.mxu0 0
    %5745 = vmatpush1.bf16.msra.mxu0 0
    %5746 = vmatprep.subr.bf16.mxu0 0
    %5747 = vmatpush1.bf16.msra.mxu0 0
    %5748 = vmatprep.subr.bf16.mxu0 0
    %5749 = vmatpush1.bf16.msra.mxu0 0
    %5750 = vmatprep.subr.bf16.mxu0 0
    %5751 = vmatpush1.bf16.msra.mxu0 0
    %5752 = vmatprep.mubr.bf16.mxu0 0
    %5753 = vmatmul.mubr.bf16.gmra.mrb[0].mxu0 %v3440
    %v5754 = vpop.f32.mrb[0].mxu0
    %v5755 = vadd.f32 0.0, %v5754
    %v5756 = vpop.f32.mrb[0].mxu0
    %v5757 = vadd.f32 0.0, %v5756
    %v5758 = vpop.f32.mrb[0].mxu0
    %v5759 = vadd.f32 0.0, %v5758
    %v5760 = vpop.f32.mrb[0].mxu0
    %v5761 = vadd.f32 0.0, %v5760
    %5762 = vmatprep.mubr.bf16.mxu0 0
    %5763 = vmatmul.mubr.bf16.gmra.mrb[0].mxu0 %v3441
    %v5764 = vpop.f32.mrb[0].mxu0
    %v5765 = vadd.f32 0.0, %v5764
    %v5766 = vpop.f32.mrb[0].mxu0
    %v5767 = vadd.f32 0.0, %v5766
    %v5768 = vpop.f32.mrb[0].mxu0
    %v5769 = vadd.f32 0.0, %v5768
    %v5770 = vpop.f32.mrb[0].mxu0
    %v5771 = vadd.f32 0.0, %v5770
    %5772 = vdwg.mxu0
    %5773 = vmatprep.subr.bf16.mxu0 %v4497
    %5774 = vmatpush1.bf16.msra.mxu0 %v4496
    %5775 = vmatprep.subr.bf16.mxu0 %v4529
    %5776 = vmatpush1.bf16.msra.mxu0 %v4528
    %5777 = vmatprep.subr.bf16.mxu0 %v4561
    %5778 = vmatpush1.bf16.msra.mxu0 %v4560
    %5779 = vmatprep.subr.bf16.mxu0 %v4593
    %5780 = vmatpush1.bf16.msra.mxu0 %v4592
    %5781 = vmatprep.subr.bf16.mxu0 %v4625
    %5782 = vmatpush1.bf16.msra.mxu0 %v4624
    %5783 = vmatprep.subr.bf16.mxu0 %v4657
    %5784 = vmatpush1.bf16.msra.mxu0 %v4656
    %5785 = vmatprep.subr.bf16.mxu0 %v4689
    %5786 = vmatpush1.bf16.msra.mxu0 %v4688
    %5787 = vmatprep.subr.bf16.mxu0 %v4721
    %5788 = vmatpush1.bf16.msra.mxu0 %v4720
    %5789 = vmatprep.subr.bf16.mxu0 0
    %5790 = vmatpush1.bf16.msra.mxu0 0
    %5791 = vmatprep.subr.bf16.mxu0 0
    %5792 = vmatpush1.bf16.msra.mxu0 0
    %5793 = vmatprep.subr.bf16.mxu0 0
    %5794 = vmatpush1.bf16.msra.mxu0 0
    %5795 = vmatprep.subr.bf16.mxu0 0
    %5796 = vmatpush1.bf16.msra.mxu0 0
    %5797 = vmatprep.subr.bf16.mxu0 0
    %5798 = vmatpush1.bf16.msra.mxu0 0
    %5799 = vmatprep.subr.bf16.mxu0 0
    %5800 = vmatpush1.bf16.msra.mxu0 0
    %5801 = vmatprep.subr.bf16.mxu0 0
    %5802 = vmatpush1.bf16.msra.mxu0 0
    %5803 = vmatprep.subr.bf16.mxu0 0
    %5804 = vmatpush1.bf16.msra.mxu0 0
    %5805 = vmatprep.mubr.bf16.mxu0 0
    %5806 = vmatmul.mubr.bf16.gmra.mrb[0].mxu0 %v3440
    %v5807 = vpop.f32.mrb[0].mxu0
    %v5808 = vadd.f32 0.0, %v5807
    %v5809 = vpop.f32.mrb[0].mxu0
    %v5810 = vadd.f32 0.0, %v5809
    %v5811 = vpop.f32.mrb[0].mxu0
    %v5812 = vadd.f32 0.0, %v5811
    %v5813 = vpop.f32.mrb[0].mxu0
    %v5814 = vadd.f32 0.0, %v5813
    %5815 = vmatprep.mubr.bf16.mxu0 0
    %5816 = vmatmul.mubr.bf16.gmra.mrb[0].mxu0 %v3441
    %v5817 = vpop.f32.mrb[0].mxu0
    %v5818 = vadd.f32 0.0, %v5817
    %v5819 = vpop.f32.mrb[0].mxu0
    %v5820 = vadd.f32 0.0, %v5819
    %v5821 = vpop.f32.mrb[0].mxu0
    %v5822 = vadd.f32 0.0, %v5821
    %v5823 = vpop.f32.mrb[0].mxu0
    %v5824 = vadd.f32 0.0, %v5823
    %5825 = vdwg.mxu0
    %5826 = vst [vmem:[%s6 + $0x100] sm:$0xff] %v5013
    %5827 = vst [vmem:[%s6 + $0x108] sm:$0xff] %v5015
    %5828 = vst [vmem:[%s6 + $0x110] sm:$0xff] %v5066
    %5829 = vst [vmem:[%s6 + $0x118] sm:$0xff] %v5068
    %5830 = vst [vmem:[%s6 + $0x120] sm:$0xff] %v5119
    %5831 = vst [vmem:[%s6 + $0x128] sm:$0xff] %v5121
    %5832 = vst [vmem:[%s6 + $0x130] sm:$0xff] %v5172
    %5833 = vst [vmem:[%s6 + $0x138] sm:$0xff] %v5174
    %5834 = vst [vmem:[%s6 + $0x140] sm:$0xff] %v5225
    %5835 = vst [vmem:[%s6 + $0x148] sm:$0xff] %v5227
    %5836 = vst [vmem:[%s6 + $0x150] sm:$0xff] %v5278
    %5837 = vst [vmem:[%s6 + $0x158] sm:$0xff] %v5280
    %5838 = vst [vmem:[%s6 + $0x160] sm:$0xff] %v5331
    %5839 = vst [vmem:[%s6 + $0x168] sm:$0xff] %v5333
    %5840 = vst [vmem:[%s6 + $0x170] sm:$0xff] %v5384
    %5841 = vst [vmem:[%s6 + $0x178] sm:$0xff] %v5386
    %5842 = vst [vmem:[%s6 + $0x180] sm:$0xff] %v5437
    %5843 = vst [vmem:[%s6 + $0x188] sm:$0xff] %v5439
    %5844 = vst [vmem:[%s6 + $0x190] sm:$0xff] %v5490
    %5845 = vst [vmem:[%s6 + $0x198] sm:$0xff] %v5492
    %5846 = vst [vmem:[%s6 + $0x1a0] sm:$0xff] %v5543
    %5847 = vst [vmem:[%s6 + $0x1a8] sm:$0xff] %v5545
    %5848 = vst [vmem:[%s6 + $0x1b0] sm:$0xff] %v5596
    %5849 = vst [vmem:[%s6 + $0x1b8] sm:$0xff] %v5598
    %5850 = vst [vmem:[%s6 + $0x1c0] sm:$0xff] %v5649
    %5851 = vst [vmem:[%s6 + $0x1c8] sm:$0xff] %v5651
    %5852 = vst [vmem:[%s6 + $0x1d0] sm:$0xff] %v5702
    %5853 = vst [vmem:[%s6 + $0x1d8] sm:$0xff] %v5704
    %5854 = vst [vmem:[%s6 + $0x1e0] sm:$0xff] %v5755
    %5855 = vst [vmem:[%s6 + $0x1e8] sm:$0xff] %v5757
    %5856 = vst [vmem:[%s6 + $0x1f0] sm:$0xff] %v5808
    %5857 = vst [vmem:[%s6 + $0x1f8] sm:$0xff] %v5810
    %5858 = vst [vmem:[%s6 + $0x300] sm:$0xff] %v5017
    %5859 = vst [vmem:[%s6 + $0x308] sm:$0xff] %v5019
    %5860 = vst [vmem:[%s6 + $0x310] sm:$0xff] %v5070
    %5861 = vst [vmem:[%s6 + $0x318] sm:$0xff] %v5072
    %5862 = vst [vmem:[%s6 + $0x320] sm:$0xff] %v5123
    %5863 = vst [vmem:[%s6 + $0x328] sm:$0xff] %v5125
    %5864 = vst [vmem:[%s6 + $0x330] sm:$0xff] %v5176
    %5865 = vst [vmem:[%s6 + $0x338] sm:$0xff] %v5178
    %5866 = vst [vmem:[%s6 + $0x340] sm:$0xff] %v5229
    %5867 = vst [vmem:[%s6 + $0x348] sm:$0xff] %v5231
    %5868 = vst [vmem:[%s6 + $0x350] sm:$0xff] %v5282
    %5869 = vst [vmem:[%s6 + $0x358] sm:$0xff] %v5284
    %5870 = vst [vmem:[%s6 + $0x360] sm:$0xff] %v5335
    %5871 = vst [vmem:[%s6 + $0x368] sm:$0xff] %v5337
    %5872 = vst [vmem:[%s6 + $0x370] sm:$0xff] %v5388
    %5873 = vst [vmem:[%s6 + $0x378] sm:$0xff] %v5390
    %5874 = vst [vmem:[%s6 + $0x380] sm:$0xff] %v5441
    %5875 = vst [vmem:[%s6 + $0x388] sm:$0xff] %v5443
    %5876 = vst [vmem:[%s6 + $0x390] sm:$0xff] %v5494
    %5877 = vst [vmem:[%s6 + $0x398] sm:$0xff] %v5496
    %5878 = vst [vmem:[%s6 + $0x3a0] sm:$0xff] %v5547
    %5879 = vst [vmem:[%s6 + $0x3a8] sm:$0xff] %v5549
    %5880 = vst [vmem:[%s6 + $0x3b0] sm:$0xff] %v5600
    %5881 = vst [vmem:[%s6 + $0x3b8] sm:$0xff] %v5602
    %5882 = vst [vmem:[%s6 + $0x3c0] sm:$0xff] %v5653
    %5883 = vst [vmem:[%s6 + $0x3c8] sm:$0xff] %v5655
    %5884 = vst [vmem:[%s6 + $0x3d0] sm:$0xff] %v5706
    %5885 = vst [vmem:[%s6 + $0x3d8] sm:$0xff] %v5708
    %5886 = vst [vmem:[%s6 + $0x3e0] sm:$0xff] %v5759
    %5887 = vst [vmem:[%s6 + $0x3e8] sm:$0xff] %v5761
    %5888 = vst [vmem:[%s6 + $0x3f0] sm:$0xff] %v5812
    %5889 = vst [vmem:[%s6 + $0x3f8] sm:$0xff] %v5814
    %5890 = vst [vmem:[%s6 + $0x500] sm:$0xff] %v5023
    %5891 = vst [vmem:[%s6 + $0x508] sm:$0xff] %v5025
    %5892 = vst [vmem:[%s6 + $0x510] sm:$0xff] %v5076
    %5893 = vst [vmem:[%s6 + $0x518] sm:$0xff] %v5078
    %5894 = vst [vmem:[%s6 + $0x520] sm:$0xff] %v5129
    %5895 = vst [vmem:[%s6 + $0x528] sm:$0xff] %v5131
    %5896 = vst [vmem:[%s6 + $0x530] sm:$0xff] %v5182
    %5897 = vst [vmem:[%s6 + $0x538] sm:$0xff] %v5184
    %5898 = vst [vmem:[%s6 + $0x540] sm:$0xff] %v5235
    %5899 = vst [vmem:[%s6 + $0x548] sm:$0xff] %v5237
    %5900 = vst [vmem:[%s6 + $0x550] sm:$0xff] %v5288
    %5901 = vst [vmem:[%s6 + $0x558] sm:$0xff] %v5290
    %5902 = vst [vmem:[%s6 + $0x560] sm:$0xff] %v5341
    %5903 = vst [vmem:[%s6 + $0x568] sm:$0xff] %v5343
    %5904 = vst [vmem:[%s6 + $0x570] sm:$0xff] %v5394
    %5905 = vst [vmem:[%s6 + $0x578] sm:$0xff] %v5396
    %5906 = vst [vmem:[%s6 + $0x580] sm:$0xff] %v5447
    %5907 = vst [vmem:[%s6 + $0x588] sm:$0xff] %v5449
    %5908 = vst [vmem:[%s6 + $0x590] sm:$0xff] %v5500
    %5909 = vst [vmem:[%s6 + $0x598] sm:$0xff] %v5502
    %5910 = vst [vmem:[%s6 + $0x5a0] sm:$0xff] %v5553
    %5911 = vst [vmem:[%s6 + $0x5a8] sm:$0xff] %v5555
    %5912 = vst [vmem:[%s6 + $0x5b0] sm:$0xff] %v5606
    %5913 = vst [vmem:[%s6 + $0x5b8] sm:$0xff] %v5608
    %5914 = vst [vmem:[%s6 + $0x5c0] sm:$0xff] %v5659
    %5915 = vst [vmem:[%s6 + $0x5c8] sm:$0xff] %v5661
    %5916 = vst [vmem:[%s6 + $0x5d0] sm:$0xff] %v5712
    %5917 = vst [vmem:[%s6 + $0x5d8] sm:$0xff] %v5714
    %5918 = vst [vmem:[%s6 + $0x5e0] sm:$0xff] %v5765
    %5919 = vst [vmem:[%s6 + $0x5e8] sm:$0xff] %v5767
    %5920 = vst [vmem:[%s6 + $0x5f0] sm:$0xff] %v5818
    %5921 = vst [vmem:[%s6 + $0x5f8] sm:$0xff] %v5820
    %5922 = vst [vmem:[%s6 + $0x700] sm:$0xff] %v5027
    %5923 = vst [vmem:[%s6 + $0x708] sm:$0xff] %v5029
    %5924 = vst [vmem:[%s6 + $0x710] sm:$0xff] %v5080
    %5925 = vst [vmem:[%s6 + $0x718] sm:$0xff] %v5082
    %5926 = vst [vmem:[%s6 + $0x720] sm:$0xff] %v5133
    %5927 = vst [vmem:[%s6 + $0x728] sm:$0xff] %v5135
    %5928 = vst [vmem:[%s6 + $0x730] sm:$0xff] %v5186
    %5929 = vst [vmem:[%s6 + $0x738] sm:$0xff] %v5188
    %5930 = vst [vmem:[%s6 + $0x740] sm:$0xff] %v5239
    %5931 = vst [vmem:[%s6 + $0x748] sm:$0xff] %v5241
    %5932 = vst [vmem:[%s6 + $0x750] sm:$0xff] %v5292
    %5933 = vst [vmem:[%s6 + $0x758] sm:$0xff] %v5294
    %5934 = vst [vmem:[%s6 + $0x760] sm:$0xff] %v5345
    %5935 = vst [vmem:[%s6 + $0x768] sm:$0xff] %v5347
    %5936 = vst [vmem:[%s6 + $0x770] sm:$0xff] %v5398
    %5937 = vst [vmem:[%s6 + $0x778] sm:$0xff] %v5400
    %5938 = vst [vmem:[%s6 + $0x780] sm:$0xff] %v5451
    %5939 = vst [vmem:[%s6 + $0x788] sm:$0xff] %v5453
    %5940 = vst [vmem:[%s6 + $0x790] sm:$0xff] %v5504
    %5941 = vst [vmem:[%s6 + $0x798] sm:$0xff] %v5506
    %5942 = vst [vmem:[%s6 + $0x7a0] sm:$0xff] %v5557
    %5943 = vst [vmem:[%s6 + $0x7a8] sm:$0xff] %v5559
    %5944 = vst [vmem:[%s6 + $0x7b0] sm:$0xff] %v5610
    %5945 = vst [vmem:[%s6 + $0x7b8] sm:$0xff] %v5612
    %5946 = vst [vmem:[%s6 + $0x7c0] sm:$0xff] %v5663
    %5947 = vst [vmem:[%s6 + $0x7c8] sm:$0xff] %v5665
    %5948 = vst [vmem:[%s6 + $0x7d0] sm:$0xff] %v5716
    %5949 = vst [vmem:[%s6 + $0x7d8] sm:$0xff] %v5718
    %5950 = vst [vmem:[%s6 + $0x7e0] sm:$0xff] %v5769
    %5951 = vst [vmem:[%s6 + $0x7e8] sm:$0xff] %v5771
    %5952 = vst [vmem:[%s6 + $0x7f0] sm:$0xff] %v5822
    %5953 = vst [vmem:[%s6 + $0x7f8] sm:$0xff] %v5824
    // Predicated region
    $region34: #{fn.1} parent=1 // pred_check
      _
    $region35: #{fn.1} parent=1 // pred_check_branch
      %5955 = sbr.rel (0) target = $region37
    $region36: #{fn.1} parent=1 // pred_region
      _
    $region37: #{fn.1} parent=1 // pred_fallthru
      _
    // Predicated region
    $region38: #{fn.1} parent=1 // pred_check
      _
    $region39: #{fn.1} parent=1 // pred_check_branch
      %5957 = sbr.rel (0) target = $region41
    $region40: #{fn.1} parent=1 // pred_region
      _
    $region41: #{fn.1} parent=1 // pred_fallthru
      _
    %5958 = vsyncpa [#allocation3], 1
    %5959 = vsyncpa [#allocation5], 1

</llo_original>
